<compile_context>
chip_gen: v6e
topology: v6e:2x2x1
jax: 0.10.0
libtpu: 0.0.40
codegen_flags: <defaults>
</compile_context>

<pallas_src>
import functools
import math

import jax
import jax.numpy as jnp
from jax import lax
from jax.experimental import pallas as pl
from jax.experimental.pallas import tpu as pltpu

_INV_SQRT2 = 1.0 / math.sqrt(2.0)
# Safe scoped-VMEM budget on v5e/v6e (128 MiB phys) and v7x (64 MiB phys).
_VMEM_LIMIT = 32 * 1024 * 1024


def _gelu(y):
    # exact erf-based GELU (torch.nn.GELU default)
    return 0.5 * y * (1.0 + lax.erf(y * _INV_SQRT2))


def _pick_tile(dim, candidates):
    """Largest candidate that evenly divides `dim`; otherwise the full dim.

    Candidates are multiples of the TPU native tiling (8 sublane / 128 lane),
    so any non-full tile satisfies the (8, 128) BlockSpec constraint; a full
    dim is always legal.
    """
    for t in candidates:
        if dim > t and dim % t == 0:
            return t
    return dim


# ----------------------------------------------------------------------------
# Pallas kernels
# ----------------------------------------------------------------------------
def _dense_kernel(*refs, activation, has_residual):
    # Tiled matmul with K-accumulation: x (tm, tk) f32, w (tk, tn) bf16,
    # b (1, tn) f32 [, r (tm, tn) f32] -> o (tm, tn) f32.
    if has_residual:
        x_ref, w_ref, b_ref, r_ref, o_ref, acc_ref = refs
    else:
        x_ref, w_ref, b_ref, o_ref, acc_ref = refs
        r_ref = None

    @pl.when(pl.program_id(2) == 0)
    def _():
        acc_ref[...] = jnp.zeros_like(acc_ref)

    acc_ref[...] += jnp.dot(
        x_ref[...].astype(jnp.bfloat16), w_ref[...],
        preferred_element_type=jnp.float32)

    @pl.when(pl.program_id(2) == pl.num_programs(2) - 1)
    def _():
        y = acc_ref[...] + b_ref[...]
        if activation == "gelu":
            y = _gelu(y)
        if r_ref is not None:
            y = y + r_ref[...]
        o_ref[...] = y


def dense(x, w, b, activation=None, residual=None):
    M, K = x.shape
    N = w.shape[1]
    tm = _pick_tile(M, (256, 128))
    tn = _pick_tile(N, (256, 128))
    tk = _pick_tile(K, (512, 256, 128))
    grid = (M // tm, N // tn, K // tk)

    in_specs = [
        pl.BlockSpec((tm, tk), lambda i, j, k: (i, k)),
        pl.BlockSpec((tk, tn), lambda i, j, k: (k, j)),
        pl.BlockSpec((1, tn), lambda i, j, k: (0, j)),
    ]
    args = [x, w, b.reshape(1, N)]
    if residual is not None:
        in_specs.append(pl.BlockSpec((tm, tn), lambda i, j, k: (i, j)))
        args.append(residual)

    return pl.pallas_call(
        functools.partial(_dense_kernel, activation=activation,
                          has_residual=residual is not None),
        grid=grid,
        in_specs=in_specs,
        out_specs=pl.BlockSpec((tm, tn), lambda i, j, k: (i, j)),
        out_shape=jax.ShapeDtypeStruct((M, N), jnp.float32),
        scratch_shapes=[pltpu.VMEM((tm, tn), jnp.float32)],
        compiler_params=pltpu.CompilerParams(
            dimension_semantics=("parallel", "parallel", "arbitrary"),
            vmem_limit_bytes=_VMEM_LIMIT),
    )(*args)


def _ln_dense_kernel(x_ref, g_ref, bln_ref, w_ref, b_ref, o_ref, *, activation):
    # Fused LayerNorm (over full K, eps=1e-5, biased var: matches torch) +
    # matmul (+ optional GELU).  x (tm, K) f32, w (K, tn) bf16.
    x = x_ref[...]
    mean = jnp.mean(x, axis=-1, keepdims=True)
    c = x - mean
    var = jnp.mean(c * c, axis=-1, keepdims=True)
    xn = c * lax.rsqrt(var + 1e-5) * g_ref[...] + bln_ref[...]
    y = jnp.dot(xn.astype(jnp.bfloat16), w_ref[...],
                preferred_element_type=jnp.float32) + b_ref[...]
    if activation == "gelu":
        y = _gelu(y)
    o_ref[...] = y


def ln_dense(x, gamma, beta, w, b, activation=None):
    M, K = x.shape
    N = w.shape[1]
    tm = _pick_tile(M, (256, 128))
    tn = _pick_tile(N, (256, 128))
    grid = (M // tm, N // tn)
    return pl.pallas_call(
        functools.partial(_ln_dense_kernel, activation=activation),
        grid=grid,
        in_specs=[
            pl.BlockSpec((tm, K), lambda i, j: (i, 0)),
            pl.BlockSpec((1, K), lambda i, j: (0, 0)),
            pl.BlockSpec((1, K), lambda i, j: (0, 0)),
            pl.BlockSpec((K, tn), lambda i, j: (0, j)),
            pl.BlockSpec((1, tn), lambda i, j: (0, j)),
        ],
        out_specs=pl.BlockSpec((tm, tn), lambda i, j: (i, j)),
        out_shape=jax.ShapeDtypeStruct((M, N), jnp.float32),
        compiler_params=pltpu.CompilerParams(
            dimension_semantics=("parallel", "parallel"),
            vmem_limit_bytes=_VMEM_LIMIT),
    )(x, gamma.reshape(1, K), beta.reshape(1, K), w, b.reshape(1, N))


def _mha_proj_kernel(qkv_ref, wo_ref, bo_ref, res_ref, o_ref, *,
                     num_heads, seq_len, scale):
    # One batch element per grid step.  qkv block (1, S_pad, 3E) with all heads
    # packed in the lane axis; head split/merge done in-VMEM.  The attention
    # output projection (attn @ Wo + bo) and the residual add are fused so the
    # HBM store is a single lane-dense (S_pad, E) slab.
    x = qkv_ref[0]                                   # (S_pad, 3E) f32
    s_pad = x.shape[0]
    e = x.shape[1] // 3
    dh = e // num_heads
    key_mask = lax.broadcasted_iota(jnp.int32, (s_pad, s_pad), 1) < seq_len
    dnums = (((1,), (1,)), ((), ()))                 # q @ k^T (no explicit transpose)

    outs = []
    for h in range(num_heads):
        lo = h * dh
        qh = x[:, lo:lo + dh].astype(jnp.bfloat16)
        kh = x[:, e + lo:e + lo + dh].astype(jnp.bfloat16)
        vh = x[:, 2 * e + lo:2 * e + lo + dh].astype(jnp.bfloat16)
        s = lax.dot_general(qh, kh, dnums,
                            preferred_element_type=jnp.float32) * scale
        s = jnp.where(key_mask, s, -1e30)
        m = jnp.max(s, axis=-1, keepdims=True)
        p = jnp.exp(s - m)
        denom = jnp.sum(p, axis=-1, keepdims=True)
        p = p * pl.reciprocal(denom, approx=True)
        outs.append(jnp.dot(p.astype(jnp.bfloat16), vh,
                            preferred_element_type=jnp.float32))
    attn = jnp.concatenate(outs, axis=-1)            # (S_pad, E) f32
    y = jnp.dot(attn.astype(jnp.bfloat16), wo_ref[...],
                preferred_element_type=jnp.float32)
    o_ref[0] = y + bo_ref[...] + res_ref[0]


def mha_proj(qkv, wo, bo, resid, num_heads, seq_len):
    # qkv: (B, S_pad, 3E), resid: (B, S_pad, E) -> (B, S_pad, E).
    # Full-S block is fine at ViT-scale sequence lengths; heads handled inside
    # the kernel (no XLA reshape/transpose head shuffles).
    B, S_pad, E3 = qkv.shape
    E = E3 // 3
    Dh = E // num_heads
    scale = 1.0 / math.sqrt(Dh)
    return pl.pallas_call(
        functools.partial(_mha_proj_kernel, num_heads=num_heads,
                          seq_len=seq_len, scale=scale),
        grid=(B,),
        in_specs=[
            pl.BlockSpec((1, S_pad, E3), lambda b: (b, 0, 0)),
            pl.BlockSpec((E, E), lambda b: (0, 0)),
            pl.BlockSpec((1, E), lambda b: (0, 0)),
            pl.BlockSpec((1, S_pad, E), lambda b: (b, 0, 0)),
        ],
        out_specs=pl.BlockSpec((1, S_pad, E), lambda b: (b, 0, 0)),
        out_shape=jax.ShapeDtypeStruct((B, S_pad, E), jnp.float32),
        compiler_params=pltpu.CompilerParams(
            dimension_semantics=("parallel",),
            vmem_limit_bytes=_VMEM_LIMIT),
    )(qkv, wo, bo.reshape(1, E), resid)


# ----------------------------------------------------------------------------
# Model (glue in plain JAX: reshapes, padding, param setup)
# ----------------------------------------------------------------------------
def image_to_patch(x, patch_size):
    B, C, H, W = x.shape
    p = patch_size
    x = x.reshape(B, C, H // p, p, W // p, p)
    x = x.transpose(0, 2, 4, 1, 3, 5)                # (B, H/p, W/p, C, p, p)
    x = x.reshape(B, (H // p) * (W // p), C * p * p)
    return x


def init_params(key, embed_dim, hidden_dim, num_channels, num_heads, num_layers,
                num_classes, patch_size, num_patches):
    patch_dim = num_channels * patch_size * patch_size
    keys = iter(jax.random.split(key, 16 + 8 * num_layers))

    def nrm(shape, scale=0.02):
        # matmul weights live in bf16 (MXU-native); accumulation stays f32
        return (scale * jax.random.normal(next(keys), shape)).astype(jnp.bfloat16)

    params = {
        "proj_w": nrm((patch_dim, embed_dim)),
        "proj_b": jnp.zeros((embed_dim,), jnp.float32),
        "cls_token": jax.random.uniform(next(keys), (1, 1, embed_dim), jnp.float32),
        "pos_embed": jax.random.uniform(next(keys), (1, 1 + num_patches, embed_dim),
                                        jnp.float32),
        "head_ln_g": jnp.ones((embed_dim,), jnp.float32),
        "head_ln_b": jnp.zeros((embed_dim,), jnp.float32),
        "head_w1": nrm((embed_dim, hidden_dim)),
        "head_b1": jnp.zeros((hidden_dim,), jnp.float32),
        "head_w2": nrm((hidden_dim, num_classes)),
        "head_b2": jnp.zeros((num_classes,), jnp.float32),
        "blocks": [],
    }
    for _ in range(num_layers):
        blk = {
            "ln1_g": jnp.ones((embed_dim,), jnp.float32),
            "ln1_b": jnp.zeros((embed_dim,), jnp.float32),
            "w_qkv": nrm((embed_dim, 3 * embed_dim)),     # fused Q|K|V
            "b_qkv": jnp.zeros((3 * embed_dim,), jnp.float32),
            "wo": nrm((embed_dim, embed_dim)),
            "bo": jnp.zeros((embed_dim,), jnp.float32),
            "ln2_g": jnp.ones((embed_dim,), jnp.float32),
            "ln2_b": jnp.zeros((embed_dim,), jnp.float32),
            "w1": nrm((embed_dim, hidden_dim)),
            "b1": jnp.zeros((hidden_dim,), jnp.float32),
            "w2": nrm((hidden_dim, embed_dim)),
            "b2": jnp.zeros((embed_dim,), jnp.float32),
        }
        params["blocks"].append(blk)
    return params


def transformer_block(h, blk, num_heads, *, seq_len):
    # h: (B, S_pad, E); standard pre-LN ViT block.  3 pallas_calls total,
    # zero XLA elementwise ops.
    B, S_pad, E = h.shape
    h2d = h.reshape(B * S_pad, E)

    # fused LN1 + QKV projection (one HBM read of the activations)
    qkv = ln_dense(h2d, blk["ln1_g"], blk["ln1_b"], blk["w_qkv"], blk["b_qkv"])
    # fused MHA + output projection + residual
    h = mha_proj(qkv.reshape(B, S_pad, 3 * E), blk["wo"], blk["bo"], h,
                 num_heads, seq_len)

    # fused LN2 + MLP-up (+GELU), then MLP-down (+residual fused at finalize)
    m = ln_dense(h.reshape(B * S_pad, E), blk["ln2_g"], blk["ln2_b"],
                 blk["w1"], blk["b1"], activation="gelu")
    h2d = dense(m, blk["w2"], blk["b2"], residual=h.reshape(B * S_pad, E))
    return h2d.reshape(B, S_pad, E)


def vit_forward(x, params, *, patch_size, num_heads):
    # x: (B, C, H, W) NCHW, float32
    patches = image_to_patch(x, patch_size)           # (B, N, C*p*p)
    B, N, Dp = patches.shape
    E = params["pos_embed"].shape[-1]

    h = dense(patches.reshape(B * N, Dp), params["proj_w"], params["proj_b"])
    h = h.reshape(B, N, E)

    cls = jnp.broadcast_to(params["cls_token"], (B, 1, E))
    h = jnp.concatenate([cls, h], axis=1)             # (B, N+1, E)
    h = h + params["pos_embed"][:, : N + 1]
    # dropout p=0.0 -> identity

    # pad tokens to a sublane-friendly count; padded keys masked in attention,
    # padded rows never feed back into valid rows (row-wise ops only).
    S = N + 1
    S_pad = ((S + 7) // 8) * 8
    if S_pad != S:
        h = jnp.pad(h, ((0, 0), (0, S_pad - S), (0, 0)))

    for blk in params["blocks"]:
        h = transformer_block(h, blk, num_heads, seq_len=S)

    cls_out = h[:, 0]                                 # (B, E) == x[0] in (S,B,E) layout
    c = ln_dense(cls_out, params["head_ln_g"], params["head_ln_b"],
                 params["head_w1"], params["head_b1"], activation="gelu")
    out = dense(c, params["head_w2"], params["head_b2"])
    return out                                        # (B, num_classes)


# ----------------------------------------------------------------------------
if __name__ == "__main__":
    # small, shape-consistent config
    B, C, H, W = 2, 3, 16, 16
    patch_size = 4
    num_patches = (H // patch_size) * (W // patch_size)   # 16
    embed_dim = 32
    hidden_dim = 64
    num_heads = 4
    num_layers = 2
    num_classes = 10

    key = jax.random.PRNGKey(0)
    kx, kp = jax.random.split(key)
    x = jax.random.normal(kx, (B, C, H, W), dtype=jnp.float32)
    params = init_params(kp, embed_dim, hidden_dim, C, num_heads, num_layers,
                         num_classes, patch_size, num_patches)

    fwd = jax.jit(functools.partial(vit_forward, patch_size=patch_size,
                                    num_heads=num_heads))
    out = fwd(x, params)
    jax.block_until_ready(out)
    assert out.shape == (B, num_classes)
    print("KERNEL_OK")
</pallas_src>

<mosaic_0001>
module attributes {stable_mosaic.version = 11 : i64} {
  func.func @_ln_dense_kernel(%arg0: i32, %arg1: i32, %arg2: memref<48x32xf32, #tpu.memory_space<vmem>>, %arg3: memref<1x32xf32, #tpu.memory_space<vmem>>, %arg4: memref<1x32xf32, #tpu.memory_space<vmem>>, %arg5: memref<32x96xbf16, #tpu.memory_space<vmem>>, %arg6: memref<1x96xf32, #tpu.memory_space<vmem>>, %arg7: memref<48x96xf32, #tpu.memory_space<vmem>>) attributes {dimension_semantics = [#tpu.dimension_semantics<parallel>, #tpu.dimension_semantics<parallel>], iteration_bounds = array<i64: 1, 1>, scalar_prefetch = 0 : i64, scratch_operands = 0 : i64, tpu.core_type = #tpu.core_type<tc>, window_params = [{transform_indices = @transform_0, window_bounds = array<i64: 48, 32>}, {pipeline_mode = #tpu.pipeline_mode<synchronous>, transform_indices = @transform_1, window_bounds = array<i64: 1, 32>}, {pipeline_mode = #tpu.pipeline_mode<synchronous>, transform_indices = @transform_2, window_bounds = array<i64: 1, 32>}, {transform_indices = @transform_3, window_bounds = array<i64: 32, 96>}, {transform_indices = @transform_4, window_bounds = array<i64: 1, 96>}, {transform_indices = @transform_5, window_bounds = array<i64: 48, 96>}]} {
    %c0 = arith.constant 0 : index
    %c0_0 = arith.constant 0 : index
    %0 = vector.load %arg2[%c0, %c0_0] : memref<48x32xf32, #tpu.memory_space<vmem>>, vector<48x32xf32>
    %cst = arith.constant dense<0.000000e+00> : vector<48xf32>
    %1 = vector.multi_reduction <add>, %0, %cst [1] : vector<48x32xf32> to vector<48xf32>
    %2 = vector.shape_cast %1 : vector<48xf32> to vector<48x1xf32>
    %cst_1 = arith.constant 3.200000e+01 : f32
    %3 = vector.broadcast %cst_1 : f32 to vector<48x1xf32>
    %4 = arith.divf %2, %3 : vector<48x1xf32>
    %5 = vector.broadcast %4 : vector<48x1xf32> to vector<48x32xf32>
    %6 = arith.subf %0, %5 : vector<48x32xf32>
    %7 = arith.mulf %6, %6 : vector<48x32xf32>
    %cst_2 = arith.constant dense<0.000000e+00> : vector<48xf32>
    %8 = vector.multi_reduction <add>, %7, %cst_2 [1] : vector<48x32xf32> to vector<48xf32>
    %9 = vector.shape_cast %8 : vector<48xf32> to vector<48x1xf32>
    %cst_3 = arith.constant 3.200000e+01 : f32
    %10 = vector.broadcast %cst_3 : f32 to vector<48x1xf32>
    %11 = arith.divf %9, %10 : vector<48x1xf32>
    %cst_4 = arith.constant 9.99999974E-6 : f32
    %12 = vector.broadcast %cst_4 : f32 to vector<48x1xf32>
    %13 = arith.addf %11, %12 : vector<48x1xf32>
    %14 = math.rsqrt %13 : vector<48x1xf32>
    %15 = vector.broadcast %14 : vector<48x1xf32> to vector<48x32xf32>
    %16 = arith.mulf %6, %15 : vector<48x32xf32>
    %c0_5 = arith.constant 0 : index
    %c0_6 = arith.constant 0 : index
    %17 = vector.load %arg3[%c0_5, %c0_6] : memref<1x32xf32, #tpu.memory_space<vmem>>, vector<1x32xf32>
    %18 = vector.broadcast %17 : vector<1x32xf32> to vector<48x32xf32>
    %19 = arith.mulf %16, %18 : vector<48x32xf32>
    %c0_7 = arith.constant 0 : index
    %c0_8 = arith.constant 0 : index
    %20 = vector.load %arg4[%c0_7, %c0_8] : memref<1x32xf32, #tpu.memory_space<vmem>>, vector<1x32xf32>
    %21 = vector.broadcast %20 : vector<1x32xf32> to vector<48x32xf32>
    %22 = arith.addf %19, %21 : vector<48x32xf32>
    %23 = arith.truncf %22 : vector<48x32xf32> to vector<48x32xbf16>
    %c0_9 = arith.constant 0 : index
    %c0_10 = arith.constant 0 : index
    %24 = vector.load %arg5[%c0_9, %c0_10] : memref<32x96xbf16, #tpu.memory_space<vmem>>, vector<32x96xbf16>
    %cst_11 = arith.constant dense<0.000000e+00> : vector<48x96xf32>
    %25 = tpu.matmul %23, %24, %cst_11 {dimension_numbers = #tpu.dot_dimension_numbers<[1], [0], [0], [1], [0, 0, 1, 1], [], []>} : vector<48x32xbf16>, vector<32x96xbf16>, vector<48x96xf32> -> vector<48x96xf32>
    %c0_12 = arith.constant 0 : index
    %c0_13 = arith.constant 0 : index
    %26 = vector.load %arg6[%c0_12, %c0_13] : memref<1x96xf32, #tpu.memory_space<vmem>>, vector<1x96xf32>
    %27 = vector.broadcast %26 : vector<1x96xf32> to vector<48x96xf32>
    %28 = arith.addf %25, %27 : vector<48x96xf32>
    %c0_14 = arith.constant 0 : index
    %c0_15 = arith.constant 0 : index
    %29 = vector.load %arg7[%c0_14, %c0_15] : memref<48x96xf32, #tpu.memory_space<vmem>>, vector<48x96xf32>
    tpu.vector_store %arg7[%c0_14, %c0_15], %28 {strides = array<i32>} : memref<48x96xf32, #tpu.memory_space<vmem>>, vector<48x96xf32>,
    return
  }
  func.func @transform_0(%arg0: i32, %arg1: i32) -> (i32, i32) {
    %c0_i32 = arith.constant 0 : i32
    %c0_i32_0 = arith.constant 0 : i32
    return %arg0, %c0_i32 : i32, i32
  }
  func.func @transform_1(%arg0: i32, %arg1: i32) -> (i32, i32) {
    %c0_i32 = arith.constant 0 : i32
    %c0_i32_0 = arith.constant 0 : i32
    %c0_i32_1 = arith.constant 0 : i32
    return %c0_i32, %c0_i32_0 : i32, i32
  }
  func.func @transform_2(%arg0: i32, %arg1: i32) -> (i32, i32) {
    %c0_i32 = arith.constant 0 : i32
    %c0_i32_0 = arith.constant 0 : i32
    %c0_i32_1 = arith.constant 0 : i32
    return %c0_i32, %c0_i32_0 : i32, i32
  }
  func.func @transform_3(%arg0: i32, %arg1: i32) -> (i32, i32) {
    %c0_i32 = arith.constant 0 : i32
    %c0_i32_0 = arith.constant 0 : i32
    return %c0_i32, %arg1 : i32, i32
  }
  func.func @transform_4(%arg0: i32, %arg1: i32) -> (i32, i32) {
    %c0_i32 = arith.constant 0 : i32
    %c0_i32_0 = arith.constant 0 : i32
    return %c0_i32, %arg1 : i32, i32
  }
  func.func @transform_5(%arg0: i32, %arg1: i32) -> (i32, i32) {
    %c0_i32 = arith.constant 0 : i32
    return %arg0, %arg1 : i32, i32
  }
}

module attributes {stable_mosaic.version = 11 : i64} {
  func.func @_dense_kernel(%arg0: i32, %arg1: i32, %arg2: i32, %arg3: memref<32x48xf32, #tpu.memory_space<vmem>>, %arg4: memref<48x32xbf16, #tpu.memory_space<vmem>>, %arg5: memref<1x32xf32, #tpu.memory_space<vmem>>, %arg6: memref<32x32xf32, #tpu.memory_space<vmem>>, %arg7: memref<32x32xf32, #tpu.memory_space<vmem>>) attributes {dimension_semantics = [#tpu.dimension_semantics<parallel>, #tpu.dimension_semantics<parallel>, #tpu.dimension_semantics<arbitrary>], iteration_bounds = array<i64: 1, 1, 1>, scalar_prefetch = 0 : i64, scratch_operands = 1 : i64, tpu.core_type = #tpu.core_type<tc>, window_params = [{transform_indices = @transform_0, window_bounds = array<i64: 32, 48>}, {transform_indices = @transform_1, window_bounds = array<i64: 48, 32>}, {transform_indices = @transform_2, window_bounds = array<i64: 1, 32>}, {transform_indices = @transform_3, window_bounds = array<i64: 32, 32>}]} {
    %c0_i32 = arith.constant 0 : i32
    %0 = arith.cmpi eq, %arg2, %c0_i32 : i32
    %1 = arith.extui %0 : i1 to i32
    %c0_i32_0 = arith.constant 0 : i32
    %2 = arith.cmpi ne, %1, %c0_i32_0 : i32
    scf.if %2 {
      %cst_10 = arith.constant 0.000000e+00 : f32
      %13 = vector.broadcast %cst_10 : f32 to vector<32x32xf32>
      %c0_11 = arith.constant 0 : index
      %c0_12 = arith.constant 0 : index
      %14 = vector.load %arg7[%c0_11, %c0_12] : memref<32x32xf32, #tpu.memory_space<vmem>>, vector<32x32xf32>
      tpu.vector_store %arg7[%c0_11, %c0_12], %13 {strides = array<i32>} : memref<32x32xf32, #tpu.memory_space<vmem>>, vector<32x32xf32>,
    } else {
    }
    %c0 = arith.constant 0 : index
    %c0_1 = arith.constant 0 : index
    %3 = vector.load %arg7[%c0, %c0_1] : memref<32x32xf32, #tpu.memory_space<vmem>>, vector<32x32xf32>
    %c0_2 = arith.constant 0 : index
    %c0_3 = arith.constant 0 : index
    %4 = vector.load %arg3[%c0_2, %c0_3] : memref<32x48xf32, #tpu.memory_space<vmem>>, vector<32x48xf32>
    %5 = arith.truncf %4 : vector<32x48xf32> to vector<32x48xbf16>
    %c0_4 = arith.constant 0 : index
    %c0_5 = arith.constant 0 : index
    %6 = vector.load %arg4[%c0_4, %c0_5] : memref<48x32xbf16, #tpu.memory_space<vmem>>, vector<48x32xbf16>
    %cst = arith.constant dense<0.000000e+00> : vector<32x32xf32>
    %7 = tpu.matmul %5, %6, %cst {dimension_numbers = #tpu.dot_dimension_numbers<[1], [0], [0], [1], [0, 0, 1, 1], [], []>} : vector<32x48xbf16>, vector<48x32xbf16>, vector<32x32xf32> -> vector<32x32xf32>
    %8 = arith.addf %3, %7 : vector<32x32xf32>
    %c0_6 = arith.constant 0 : index
    %c0_7 = arith.constant 0 : index
    %9 = vector.load %arg7[%c0_6, %c0_7] : memref<32x32xf32, #tpu.memory_space<vmem>>, vector<32x32xf32>
    tpu.vector_store %arg7[%c0_6, %c0_7], %8 {strides = array<i32>} : memref<32x32xf32, #tpu.memory_space<vmem>>, vector<32x32xf32>,
    %c0_i32_8 = arith.constant 0 : i32
    %10 = arith.cmpi eq, %arg2, %c0_i32_8 : i32
    %11 = arith.extui %10 : i1 to i32
    %c0_i32_9 = arith.constant 0 : i32
    %12 = arith.cmpi ne, %11, %c0_i32_9 : i32
    scf.if %12 {
      %c0_10 = arith.constant 0 : index
      %c0_11 = arith.constant 0 : index
      %13 = vector.load %arg7[%c0_10, %c0_11] : memref<32x32xf32, #tpu.memory_space<vmem>>, vector<32x32xf32>
      %c0_12 = arith.constant 0 : index
      %c0_13 = arith.constant 0 : index
      %14 = vector.load %arg5[%c0_12, %c0_13] : memref<1x32xf32, #tpu.memory_space<vmem>>, vector<1x32xf32>
      %15 = vector.broadcast %14 : vector<1x32xf32> to vector<32x32xf32>
      %16 = arith.addf %13, %15 : vector<32x32xf32>
      %c0_14 = arith.constant 0 : index
      %c0_15 = arith.constant 0 : index
      %17 = vector.load %arg6[%c0_14, %c0_15] : memref<32x32xf32, #tpu.memory_space<vmem>>, vector<32x32xf32>
      tpu.vector_store %arg6[%c0_14, %c0_15], %16 {strides = array<i32>} : memref<32x32xf32, #tpu.memory_space<vmem>>, vector<32x32xf32>,
    } else {
    }
    return
  }
  func.func @transform_0(%arg0: i32, %arg1: i32, %arg2: i32) -> (i32, i32) {
    %c0_i32 = arith.constant 0 : i32
    return %arg0, %arg2 : i32, i32
  }
  func.func @transform_1(%arg0: i32, %arg1: i32, %arg2: i32) -> (i32, i32) {
    %c0_i32 = arith.constant 0 : i32
    return %arg2, %arg1 : i32, i32
  }
  func.func @transform_2(%arg0: i32, %arg1: i32, %arg2: i32) -> (i32, i32) {
    %c0_i32 = arith.constant 0 : i32
    %c0_i32_0 = arith.constant 0 : i32
    return %c0_i32, %arg1 : i32, i32
  }
  func.func @transform_3(%arg0: i32, %arg1: i32, %arg2: i32) -> (i32, i32) {
    %c0_i32 = arith.constant 0 : i32
    return %arg0, %arg1 : i32, i32
  }
}

module attributes {stable_mosaic.version = 11 : i64} {
  func.func @_mha_proj_kernel(%arg0: i32, %arg1: memref<1x24x96xf32, #tpu.memory_space<vmem>>, %arg2: memref<32x32xbf16, #tpu.memory_space<vmem>>, %arg3: memref<1x32xf32, #tpu.memory_space<vmem>>, %arg4: memref<1x24x32xf32, #tpu.memory_space<vmem>>, %arg5: memref<1x24x32xf32, #tpu.memory_space<vmem>>) attributes {dimension_semantics = [#tpu.dimension_semantics<parallel>], iteration_bounds = array<i64: 2>, scalar_prefetch = 0 : i64, scratch_operands = 0 : i64, tpu.core_type = #tpu.core_type<tc>, window_params = [{transform_indices = @transform_0, window_bounds = array<i64: 1, 24, 96>}, {pipeline_mode = #tpu.pipeline_mode<synchronous>, transform_indices = @transform_1, window_bounds = array<i64: 32, 32>}, {pipeline_mode = #tpu.pipeline_mode<synchronous>, transform_indices = @transform_2, window_bounds = array<i64: 1, 32>}, {transform_indices = @transform_3, window_bounds = array<i64: 1, 24, 32>}, {transform_indices = @transform_4, window_bounds = array<i64: 1, 24, 32>}]} {
    %c0 = arith.constant 0 : index
    %c0_0 = arith.constant 0 : index
    %c0_1 = arith.constant 0 : index
    %0 = vector.load %arg1[%c0, %c0_0, %c0_1] : memref<1x24x96xf32, #tpu.memory_space<vmem>>, vector<1x24x96xf32>
    %1 = vector.shape_cast %0 : vector<1x24x96xf32> to vector<24x96xf32>
    %2 = tpu.iota {dimensions = array<i32: 1>} : vector<24x24xi32>
    %c17_i32 = arith.constant 17 : i32
    %3 = vector.broadcast %c17_i32 : i32 to vector<24x24xi32>
    %4 = arith.cmpi slt, %2, %3 : vector<24x24xi32>
    %5 = vector.extract_strided_slice %1 {offsets = [0, 0], sizes = [24, 8], strides = [1, 1]} : vector<24x96xf32> to vector<24x8xf32>
    %6 = arith.truncf %5 : vector<24x8xf32> to vector<24x8xbf16>
    %7 = vector.extract_strided_slice %1 {offsets = [0, 32], sizes = [24, 8], strides = [1, 1]} : vector<24x96xf32> to vector<24x8xf32>
    %8 = arith.truncf %7 : vector<24x8xf32> to vector<24x8xbf16>
    %9 = vector.extract_strided_slice %1 {offsets = [0, 64], sizes = [24, 8], strides = [1, 1]} : vector<24x96xf32> to vector<24x8xf32>
    %10 = arith.truncf %9 : vector<24x8xf32> to vector<24x8xbf16>
    %cst = arith.constant dense<0.000000e+00> : vector<24x24xf32>
    %11 = tpu.matmul %6, %8, %cst {dimension_numbers = #tpu.dot_dimension_numbers<[1], [1], [0], [0], [0, 0, 1, 0], [], []>} : vector<24x8xbf16>, vector<24x8xbf16>, vector<24x24xf32> -> vector<24x24xf32>
    %cst_2 = arith.constant 0.353553385 : f32
    %12 = vector.broadcast %cst_2 : f32 to vector<24x24xf32>
    %13 = arith.mulf %11, %12 : vector<24x24xf32>
    %cst_3 = arith.constant -1.000000e+30 : f32
    %14 = vector.broadcast %cst_3 : f32 to vector<24x24xf32>
    %15 = arith.select %4, %13, %14 : vector<24x24xi1>, vector<24x24xf32>
    %cst_4 = arith.constant dense<0xFF800000> : vector<24xf32>
    %16 = vector.multi_reduction <maximumf>, %15, %cst_4 [1] : vector<24x24xf32> to vector<24xf32>
    %17 = vector.shape_cast %16 : vector<24xf32> to vector<24x1xf32>
    %18 = vector.broadcast %17 : vector<24x1xf32> to vector<24x24xf32>
    %19 = arith.subf %15, %18 : vector<24x24xf32>
    %20 = math.exp %19 : vector<24x24xf32>
    %cst_5 = arith.constant dense<0.000000e+00> : vector<24xf32>
    %21 = vector.multi_reduction <add>, %20, %cst_5 [1] : vector<24x24xf32> to vector<24xf32>
    %22 = vector.shape_cast %21 : vector<24xf32> to vector<24x1xf32>
    %23 = tpu.reciprocal %22 {approx = true} : vector<24x1xf32> -> vector<24x1xf32>
    %24 = vector.broadcast %23 : vector<24x1xf32> to vector<24x24xf32>
    %25 = arith.mulf %20, %24 : vector<24x24xf32>
    %26 = arith.truncf %25 : vector<24x24xf32> to vector<24x24xbf16>
    %cst_6 = arith.constant dense<0.000000e+00> : vector<24x8xf32>
    %27 = tpu.matmul %26, %10, %cst_6 {dimension_numbers = #tpu.dot_dimension_numbers<[1], [0], [0], [1], [0, 0, 1, 1], [], []>} : vector<24x24xbf16>, vector<24x8xbf16>, vector<24x8xf32> -> vector<24x8xf32>
    %28 = vector.extract_strided_slice %1 {offsets = [0, 8], sizes = [24, 8], strides = [1, 1]} : vector<24x96xf32> to vector<24x8xf32>
    %29 = arith.truncf %28 : vector<24x8xf32> to vector<24x8xbf16>
    %30 = vector.extract_strided_slice %1 {offsets = [0, 40], sizes = [24, 8], strides = [1, 1]} : vector<24x96xf32> to vector<24x8xf32>
    %31 = arith.truncf %30 : vector<24x8xf32> to vector<24x8xbf16>
    %32 = vector.extract_strided_slice %1 {offsets = [0, 72], sizes = [24, 8], strides = [1, 1]} : vector<24x96xf32> to vector<24x8xf32>
    %33 = arith.truncf %32 : vector<24x8xf32> to vector<24x8xbf16>
    %cst_7 = arith.constant dense<0.000000e+00> : vector<24x24xf32>
    %34 = tpu.matmul %29, %31, %cst_7 {dimension_numbers = #tpu.dot_dimension_numbers<[1], [1], [0], [0], [0, 0, 1, 0], [], []>} : vector<24x8xbf16>, vector<24x8xbf16>, vector<24x24xf32> -> vector<24x24xf32>
    %cst_8 = arith.constant 0.353553385 : f32
    %35 = vector.broadcast %cst_8 : f32 to vector<24x24xf32>
    %36 = arith.mulf %34, %35 : vector<24x24xf32>
    %cst_9 = arith.constant -1.000000e+30 : f32
    %37 = vector.broadcast %cst_9 : f32 to vector<24x24xf32>
    %38 = arith.select %4, %36, %37 : vector<24x24xi1>, vector<24x24xf32>
    %cst_10 = arith.constant dense<0xFF800000> : vector<24xf32>
    %39 = vector.multi_reduction <maximumf>, %38, %cst_10 [1] : vector<24x24xf32> to vector<24xf32>
    %40 = vector.shape_cast %39 : vector<24xf32> to vector<24x1xf32>
    %41 = vector.broadcast %40 : vector<24x1xf32> to vector<24x24xf32>
    %42 = arith.subf %38, %41 : vector<24x24xf32>
    %43 = math.exp %42 : vector<24x24xf32>
    %cst_11 = arith.constant dense<0.000000e+00> : vector<24xf32>
    %44 = vector.multi_reduction <add>, %43, %cst_11 [1] : vector<24x24xf32> to vector<24xf32>
    %45 = vector.shape_cast %44 : vector<24xf32> to vector<24x1xf32>
    %46 = tpu.reciprocal %45 {approx = true} : vector<24x1xf32> -> vector<24x1xf32>
    %47 = vector.broadcast %46 : vector<24x1xf32> to vector<24x24xf32>
    %48 = arith.mulf %43, %47 : vector<24x24xf32>
    %49 = arith.truncf %48 : vector<24x24xf32> to vector<24x24xbf16>
    %cst_12 = arith.constant dense<0.000000e+00> : vector<24x8xf32>
    %50 = tpu.matmul %49, %33, %cst_12 {dimension_numbers = #tpu.dot_dimension_numbers<[1], [0], [0], [1], [0, 0, 1, 1], [], []>} : vector<24x24xbf16>, vector<24x8xbf16>, vector<24x8xf32> -> vector<24x8xf32>
    %51 = vector.extract_strided_slice %1 {offsets = [0, 16], sizes = [24, 8], strides = [1, 1]} : vector<24x96xf32> to vector<24x8xf32>
    %52 = arith.truncf %51 : vector<24x8xf32> to vector<24x8xbf16>
    %53 = vector.extract_strided_slice %1 {offsets = [0, 48], sizes = [24, 8], strides = [1, 1]} : vector<24x96xf32> to vector<24x8xf32>
    %54 = arith.truncf %53 : vector<24x8xf32> to vector<24x8xbf16>
    %55 = vector.extract_strided_slice %1 {offsets = [0, 80], sizes = [24, 8], strides = [1, 1]} : vector<24x96xf32> to vector<24x8xf32>
    %56 = arith.truncf %55 : vector<24x8xf32> to vector<24x8xbf16>
    %cst_13 = arith.constant dense<0.000000e+00> : vector<24x24xf32>
    %57 = tpu.matmul %52, %54, %cst_13 {dimension_numbers = #tpu.dot_dimension_numbers<[1], [1], [0], [0], [0, 0, 1, 0], [], []>} : vector<24x8xbf16>, vector<24x8xbf16>, vector<24x24xf32> -> vector<24x24xf32>
    %cst_14 = arith.constant 0.353553385 : f32
    %58 = vector.broadcast %cst_14 : f32 to vector<24x24xf32>
    %59 = arith.mulf %57, %58 : vector<24x24xf32>
    %cst_15 = arith.constant -1.000000e+30 : f32
    %60 = vector.broadcast %cst_15 : f32 to vector<24x24xf32>
    %61 = arith.select %4, %59, %60 : vector<24x24xi1>, vector<24x24xf32>
    %cst_16 = arith.constant dense<0xFF800000> : vector<24xf32>
    %62 = vector.multi_reduction <maximumf>, %61, %cst_16 [1] : vector<24x24xf32> to vector<24xf32>
    %63 = vector.shape_cast %62 : vector<24xf32> to vector<24x1xf32>
    %64 = vector.broadcast %63 : vector<24x1xf32> to vector<24x24xf32>
    %65 = arith.subf %61, %64 : vector<24x24xf32>
    %66 = math.exp %65 : vector<24x24xf32>
    %cst_17 = arith.constant dense<0.000000e+00> : vector<24xf32>
    %67 = vector.multi_reduction <add>, %66, %cst_17 [1] : vector<24x24xf32> to vector<24xf32>
    %68 = vector.shape_cast %67 : vector<24xf32> to vector<24x1xf32>
    %69 = tpu.reciprocal %68 {approx = true} : vector<24x1xf32> -> vector<24x1xf32>
    %70 = vector.broadcast %69 : vector<24x1xf32> to vector<24x24xf32>
    %71 = arith.mulf %66, %70 : vector<24x24xf32>
    %72 = arith.truncf %71 : vector<24x24xf32> to vector<24x24xbf16>
    %cst_18 = arith.constant dense<0.000000e+00> : vector<24x8xf32>
    %73 = tpu.matmul %72, %56, %cst_18 {dimension_numbers = #tpu.dot_dimension_numbers<[1], [0], [0], [1], [0, 0, 1, 1], [], []>} : vector<24x24xbf16>, vector<24x8xbf16>, vector<24x8xf32> -> vector<24x8xf32>
    %74 = vector.extract_strided_slice %1 {offsets = [0, 24], sizes = [24, 8], strides = [1, 1]} : vector<24x96xf32> to vector<24x8xf32>
    %75 = arith.truncf %74 : vector<24x8xf32> to vector<24x8xbf16>
    %76 = vector.extract_strided_slice %1 {offsets = [0, 56], sizes = [24, 8], strides = [1, 1]} : vector<24x96xf32> to vector<24x8xf32>
    %77 = arith.truncf %76 : vector<24x8xf32> to vector<24x8xbf16>
    %78 = vector.extract_strided_slice %1 {offsets = [0, 88], sizes = [24, 8], strides = [1, 1]} : vector<24x96xf32> to vector<24x8xf32>
    %79 = arith.truncf %78 : vector<24x8xf32> to vector<24x8xbf16>
    %cst_19 = arith.constant dense<0.000000e+00> : vector<24x24xf32>
    %80 = tpu.matmul %75, %77, %cst_19 {dimension_numbers = #tpu.dot_dimension_numbers<[1], [1], [0], [0], [0, 0, 1, 0], [], []>} : vector<24x8xbf16>, vector<24x8xbf16>, vector<24x24xf32> -> vector<24x24xf32>
    %cst_20 = arith.constant 0.353553385 : f32
    %81 = vector.broadcast %cst_20 : f32 to vector<24x24xf32>
    %82 = arith.mulf %80, %81 : vector<24x24xf32>
    %cst_21 = arith.constant -1.000000e+30 : f32
    %83 = vector.broadcast %cst_21 : f32 to vector<24x24xf32>
    %84 = arith.select %4, %82, %83 : vector<24x24xi1>, vector<24x24xf32>
    %cst_22 = arith.constant dense<0xFF800000> : vector<24xf32>
    %85 = vector.multi_reduction <maximumf>, %84, %cst_22 [1] : vector<24x24xf32> to vector<24xf32>
    %86 = vector.shape_cast %85 : vector<24xf32> to vector<24x1xf32>
    %87 = vector.broadcast %86 : vector<24x1xf32> to vector<24x24xf32>
    %88 = arith.subf %84, %87 : vector<24x24xf32>
    %89 = math.exp %88 : vector<24x24xf32>
    %cst_23 = arith.constant dense<0.000000e+00> : vector<24xf32>
    %90 = vector.multi_reduction <add>, %89, %cst_23 [1] : vector<24x24xf32> to vector<24xf32>
    %91 = vector.shape_cast %90 : vector<24xf32> to vector<24x1xf32>
    %92 = tpu.reciprocal %91 {approx = true} : vector<24x1xf32> -> vector<24x1xf32>
    %93 = vector.broadcast %92 : vector<24x1xf32> to vector<24x24xf32>
    %94 = arith.mulf %89, %93 : vector<24x24xf32>
    %95 = arith.truncf %94 : vector<24x24xf32> to vector<24x24xbf16>
    %cst_24 = arith.constant dense<0.000000e+00> : vector<24x8xf32>
    %96 = tpu.matmul %95, %79, %cst_24 {dimension_numbers = #tpu.dot_dimension_numbers<[1], [0], [0], [1], [0, 0, 1, 1], [], []>} : vector<24x24xbf16>, vector<24x8xbf16>, vector<24x8xf32> -> vector<24x8xf32>
    %97 = tpu.concatenate %27, %50, %73, %96 in 1 : vector<24x8xf32>, vector<24x8xf32>, vector<24x8xf32>, vector<24x8xf32> -> vector<24x32xf32>
    %98 = arith.truncf %97 : vector<24x32xf32> to vector<24x32xbf16>
    %c0_25 = arith.constant 0 : index
    %c0_26 = arith.constant 0 : index
    %99 = vector.load %arg2[%c0_25, %c0_26] : memref<32x32xbf16, #tpu.memory_space<vmem>>, vector<32x32xbf16>
    %cst_27 = arith.constant dense<0.000000e+00> : vector<24x32xf32>
    %100 = tpu.matmul %98, %99, %cst_27 {dimension_numbers = #tpu.dot_dimension_numbers<[1], [0], [0], [1], [0, 0, 1, 1], [], []>} : vector<24x32xbf16>, vector<32x32xbf16>, vector<24x32xf32> -> vector<24x32xf32>
    %c0_28 = arith.constant 0 : index
    %c0_29 = arith.constant 0 : index
    %101 = vector.load %arg3[%c0_28, %c0_29] : memref<1x32xf32, #tpu.memory_space<vmem>>, vector<1x32xf32>
    %102 = vector.broadcast %101 : vector<1x32xf32> to vector<24x32xf32>
    %103 = arith.addf %100, %102 : vector<24x32xf32>
    %c0_30 = arith.constant 0 : index
    %c0_31 = arith.constant 0 : index
    %c0_32 = arith.constant 0 : index
    %104 = vector.load %arg4[%c0_30, %c0_31, %c0_32] : memref<1x24x32xf32, #tpu.memory_space<vmem>>, vector<1x24x32xf32>
    %105 = vector.shape_cast %104 : vector<1x24x32xf32> to vector<24x32xf32>
    %106 = arith.addf %103, %105 : vector<24x32xf32>
    %c0_33 = arith.constant 0 : index
    %c0_34 = arith.constant 0 : index
    %c0_35 = arith.constant 0 : index
    %107 = vector.load %arg5[%c0_33, %c0_34, %c0_35] : memref<1x24x32xf32, #tpu.memory_space<vmem>>, vector<1x24x32xf32>
    %108 = vector.shape_cast %107 : vector<1x24x32xf32> to vector<24x32xf32>
    %109 = vector.shape_cast %106 : vector<24x32xf32> to vector<1x24x32xf32>
    tpu.vector_store %arg5[%c0_33, %c0_34, %c0_35], %109 {strides = array<i32>} : memref<1x24x32xf32, #tpu.memory_space<vmem>>, vector<1x24x32xf32>,
    return
  }
  func.func @transform_0(%arg0: i32) -> (i32, i32, i32) {
    %c0_i32 = arith.constant 0 : i32
    %c0_i32_0 = arith.constant 0 : i32
    %c0_i32_1 = arith.constant 0 : i32
    return %arg0, %c0_i32, %c0_i32_0 : i32, i32, i32
  }
  func.func @transform_1(%arg0: i32) -> (i32, i32) {
    %c0_i32 = arith.constant 0 : i32
    %c0_i32_0 = arith.constant 0 : i32
    %c0_i32_1 = arith.constant 0 : i32
    return %c0_i32, %c0_i32_0 : i32, i32
  }
  func.func @transform_2(%arg0: i32) -> (i32, i32) {
    %c0_i32 = arith.constant 0 : i32
    %c0_i32_0 = arith.constant 0 : i32
    %c0_i32_1 = arith.constant 0 : i32
    return %c0_i32, %c0_i32_0 : i32, i32
  }
  func.func @transform_3(%arg0: i32) -> (i32, i32, i32) {
    %c0_i32 = arith.constant 0 : i32
    %c0_i32_0 = arith.constant 0 : i32
    %c0_i32_1 = arith.constant 0 : i32
    return %arg0, %c0_i32, %c0_i32_0 : i32, i32, i32
  }
  func.func @transform_4(%arg0: i32) -> (i32, i32, i32) {
    %c0_i32 = arith.constant 0 : i32
    %c0_i32_0 = arith.constant 0 : i32
    %c0_i32_1 = arith.constant 0 : i32
    return %arg0, %c0_i32, %c0_i32_0 : i32, i32, i32
  }
}

module attributes {stable_mosaic.version = 11 : i64} {
  func.func @_ln_dense_kernel(%arg0: i32, %arg1: i32, %arg2: memref<48x32xf32, #tpu.memory_space<vmem>>, %arg3: memref<1x32xf32, #tpu.memory_space<vmem>>, %arg4: memref<1x32xf32, #tpu.memory_space<vmem>>, %arg5: memref<32x64xbf16, #tpu.memory_space<vmem>>, %arg6: memref<1x64xf32, #tpu.memory_space<vmem>>, %arg7: memref<48x64xf32, #tpu.memory_space<vmem>>) attributes {dimension_semantics = [#tpu.dimension_semantics<parallel>, #tpu.dimension_semantics<parallel>], iteration_bounds = array<i64: 1, 1>, scalar_prefetch = 0 : i64, scratch_operands = 0 : i64, tpu.core_type = #tpu.core_type<tc>, window_params = [{transform_indices = @transform_0, window_bounds = array<i64: 48, 32>}, {pipeline_mode = #tpu.pipeline_mode<synchronous>, transform_indices = @transform_1, window_bounds = array<i64: 1, 32>}, {pipeline_mode = #tpu.pipeline_mode<synchronous>, transform_indices = @transform_2, window_bounds = array<i64: 1, 32>}, {transform_indices = @transform_3, window_bounds = array<i64: 32, 64>}, {transform_indices = @transform_4, window_bounds = array<i64: 1, 64>}, {transform_indices = @transform_5, window_bounds = array<i64: 48, 64>}]} {
    %c0 = arith.constant 0 : index
    %c0_0 = arith.constant 0 : index
    %0 = vector.load %arg2[%c0, %c0_0] : memref<48x32xf32, #tpu.memory_space<vmem>>, vector<48x32xf32>
    %cst = arith.constant dense<0.000000e+00> : vector<48xf32>
    %1 = vector.multi_reduction <add>, %0, %cst [1] : vector<48x32xf32> to vector<48xf32>
    %2 = vector.shape_cast %1 : vector<48xf32> to vector<48x1xf32>
    %cst_1 = arith.constant 3.200000e+01 : f32
    %3 = vector.broadcast %cst_1 : f32 to vector<48x1xf32>
    %4 = arith.divf %2, %3 : vector<48x1xf32>
    %5 = vector.broadcast %4 : vector<48x1xf32> to vector<48x32xf32>
    %6 = arith.subf %0, %5 : vector<48x32xf32>
    %7 = arith.mulf %6, %6 : vector<48x32xf32>
    %cst_2 = arith.constant dense<0.000000e+00> : vector<48xf32>
    %8 = vector.multi_reduction <add>, %7, %cst_2 [1] : vector<48x32xf32> to vector<48xf32>
    %9 = vector.shape_cast %8 : vector<48xf32> to vector<48x1xf32>
    %cst_3 = arith.constant 3.200000e+01 : f32
    %10 = vector.broadcast %cst_3 : f32 to vector<48x1xf32>
    %11 = arith.divf %9, %10 : vector<48x1xf32>
    %cst_4 = arith.constant 9.99999974E-6 : f32
    %12 = vector.broadcast %cst_4 : f32 to vector<48x1xf32>
    %13 = arith.addf %11, %12 : vector<48x1xf32>
    %14 = math.rsqrt %13 : vector<48x1xf32>
    %15 = vector.broadcast %14 : vector<48x1xf32> to vector<48x32xf32>
    %16 = arith.mulf %6, %15 : vector<48x32xf32>
    %c0_5 = arith.constant 0 : index
    %c0_6 = arith.constant 0 : index
    %17 = vector.load %arg3[%c0_5, %c0_6] : memref<1x32xf32, #tpu.memory_space<vmem>>, vector<1x32xf32>
    %18 = vector.broadcast %17 : vector<1x32xf32> to vector<48x32xf32>
    %19 = arith.mulf %16, %18 : vector<48x32xf32>
    %c0_7 = arith.constant 0 : index
    %c0_8 = arith.constant 0 : index
    %20 = vector.load %arg4[%c0_7, %c0_8] : memref<1x32xf32, #tpu.memory_space<vmem>>, vector<1x32xf32>
    %21 = vector.broadcast %20 : vector<1x32xf32> to vector<48x32xf32>
    %22 = arith.addf %19, %21 : vector<48x32xf32>
    %23 = arith.truncf %22 : vector<48x32xf32> to vector<48x32xbf16>
    %c0_9 = arith.constant 0 : index
    %c0_10 = arith.constant 0 : index
    %24 = vector.load %arg5[%c0_9, %c0_10] : memref<32x64xbf16, #tpu.memory_space<vmem>>, vector<32x64xbf16>
    %cst_11 = arith.constant dense<0.000000e+00> : vector<48x64xf32>
    %25 = tpu.matmul %23, %24, %cst_11 {dimension_numbers = #tpu.dot_dimension_numbers<[1], [0], [0], [1], [0, 0, 1, 1], [], []>} : vector<48x32xbf16>, vector<32x64xbf16>, vector<48x64xf32> -> vector<48x64xf32>
    %c0_12 = arith.constant 0 : index
    %c0_13 = arith.constant 0 : index
    %26 = vector.load %arg6[%c0_12, %c0_13] : memref<1x64xf32, #tpu.memory_space<vmem>>, vector<1x64xf32>
    %27 = vector.broadcast %26 : vector<1x64xf32> to vector<48x64xf32>
    %28 = arith.addf %25, %27 : vector<48x64xf32>
    %cst_14 = arith.constant 5.000000e-01 : f32
    %29 = vector.broadcast %cst_14 : f32 to vector<48x64xf32>
    %30 = arith.mulf %29, %28 : vector<48x64xf32>
    %cst_15 = arith.constant 0.707106769 : f32
    %31 = vector.broadcast %cst_15 : f32 to vector<48x64xf32>
    %32 = arith.mulf %28, %31 : vector<48x64xf32>
    %33 = math.erf %32 : vector<48x64xf32>
    %cst_16 = arith.constant 1.000000e+00 : f32
    %34 = vector.broadcast %cst_16 : f32 to vector<48x64xf32>
    %35 = arith.addf %34, %33 : vector<48x64xf32>
    %36 = arith.mulf %30, %35 : vector<48x64xf32>
    %c0_17 = arith.constant 0 : index
    %c0_18 = arith.constant 0 : index
    %37 = vector.load %arg7[%c0_17, %c0_18] : memref<48x64xf32, #tpu.memory_space<vmem>>, vector<48x64xf32>
    tpu.vector_store %arg7[%c0_17, %c0_18], %36 {strides = array<i32>} : memref<48x64xf32, #tpu.memory_space<vmem>>, vector<48x64xf32>,
    return
  }
  func.func @transform_0(%arg0: i32, %arg1: i32) -> (i32, i32) {
    %c0_i32 = arith.constant 0 : i32
    %c0_i32_0 = arith.constant 0 : i32
    return %arg0, %c0_i32 : i32, i32
  }
  func.func @transform_1(%arg0: i32, %arg1: i32) -> (i32, i32) {
    %c0_i32 = arith.constant 0 : i32
    %c0_i32_0 = arith.constant 0 : i32
    %c0_i32_1 = arith.constant 0 : i32
    return %c0_i32, %c0_i32_0 : i32, i32
  }
  func.func @transform_2(%arg0: i32, %arg1: i32) -> (i32, i32) {
    %c0_i32 = arith.constant 0 : i32
    %c0_i32_0 = arith.constant 0 : i32
    %c0_i32_1 = arith.constant 0 : i32
    return %c0_i32, %c0_i32_0 : i32, i32
  }
  func.func @transform_3(%arg0: i32, %arg1: i32) -> (i32, i32) {
    %c0_i32 = arith.constant 0 : i32
    %c0_i32_0 = arith.constant 0 : i32
    return %c0_i32, %arg1 : i32, i32
  }
  func.func @transform_4(%arg0: i32, %arg1: i32) -> (i32, i32) {
    %c0_i32 = arith.constant 0 : i32
    %c0_i32_0 = arith.constant 0 : i32
    return %c0_i32, %arg1 : i32, i32
  }
  func.func @transform_5(%arg0: i32, %arg1: i32) -> (i32, i32) {
    %c0_i32 = arith.constant 0 : i32
    return %arg0, %arg1 : i32, i32
  }
}

module attributes {stable_mosaic.version = 11 : i64} {
  func.func @_dense_kernel(%arg0: i32, %arg1: i32, %arg2: i32, %arg3: memref<48x64xf32, #tpu.memory_space<vmem>>, %arg4: memref<64x32xbf16, #tpu.memory_space<vmem>>, %arg5: memref<1x32xf32, #tpu.memory_space<vmem>>, %arg6: memref<48x32xf32, #tpu.memory_space<vmem>>, %arg7: memref<48x32xf32, #tpu.memory_space<vmem>>, %arg8: memref<48x32xf32, #tpu.memory_space<vmem>>) attributes {dimension_semantics = [#tpu.dimension_semantics<parallel>, #tpu.dimension_semantics<parallel>, #tpu.dimension_semantics<arbitrary>], iteration_bounds = array<i64: 1, 1, 1>, scalar_prefetch = 0 : i64, scratch_operands = 1 : i64, tpu.core_type = #tpu.core_type<tc>, window_params = [{transform_indices = @transform_0, window_bounds = array<i64: 48, 64>}, {transform_indices = @transform_1, window_bounds = array<i64: 64, 32>}, {transform_indices = @transform_2, window_bounds = array<i64: 1, 32>}, {transform_indices = @transform_3, window_bounds = array<i64: 48, 32>}, {transform_indices = @transform_4, window_bounds = array<i64: 48, 32>}]} {
    %c0_i32 = arith.constant 0 : i32
    %0 = arith.cmpi eq, %arg2, %c0_i32 : i32
    %1 = arith.extui %0 : i1 to i32
    %c0_i32_0 = arith.constant 0 : i32
    %2 = arith.cmpi ne, %1, %c0_i32_0 : i32
    scf.if %2 {
      %cst_10 = arith.constant 0.000000e+00 : f32
      %13 = vector.broadcast %cst_10 : f32 to vector<48x32xf32>
      %c0_11 = arith.constant 0 : index
      %c0_12 = arith.constant 0 : index
      %14 = vector.load %arg8[%c0_11, %c0_12] : memref<48x32xf32, #tpu.memory_space<vmem>>, vector<48x32xf32>
      tpu.vector_store %arg8[%c0_11, %c0_12], %13 {strides = array<i32>} : memref<48x32xf32, #tpu.memory_space<vmem>>, vector<48x32xf32>,
    } else {
    }
    %c0 = arith.constant 0 : index
    %c0_1 = arith.constant 0 : index
    %3 = vector.load %arg8[%c0, %c0_1] : memref<48x32xf32, #tpu.memory_space<vmem>>, vector<48x32xf32>
    %c0_2 = arith.constant 0 : index
    %c0_3 = arith.constant 0 : index
    %4 = vector.load %arg3[%c0_2, %c0_3] : memref<48x64xf32, #tpu.memory_space<vmem>>, vector<48x64xf32>
    %5 = arith.truncf %4 : vector<48x64xf32> to vector<48x64xbf16>
    %c0_4 = arith.constant 0 : index
    %c0_5 = arith.constant 0 : index
    %6 = vector.load %arg4[%c0_4, %c0_5] : memref<64x32xbf16, #tpu.memory_space<vmem>>, vector<64x32xbf16>
    %cst = arith.constant dense<0.000000e+00> : vector<48x32xf32>
    %7 = tpu.matmul %5, %6, %cst {dimension_numbers = #tpu.dot_dimension_numbers<[1], [0], [0], [1], [0, 0, 1, 1], [], []>} : vector<48x64xbf16>, vector<64x32xbf16>, vector<48x32xf32> -> vector<48x32xf32>
    %8 = arith.addf %3, %7 : vector<48x32xf32>
    %c0_6 = arith.constant 0 : index
    %c0_7 = arith.constant 0 : index
    %9 = vector.load %arg8[%c0_6, %c0_7] : memref<48x32xf32, #tpu.memory_space<vmem>>, vector<48x32xf32>
    tpu.vector_store %arg8[%c0_6, %c0_7], %8 {strides = array<i32>} : memref<48x32xf32, #tpu.memory_space<vmem>>, vector<48x32xf32>,
    %c0_i32_8 = arith.constant 0 : i32
    %10 = arith.cmpi eq, %arg2, %c0_i32_8 : i32
    %11 = arith.extui %10 : i1 to i32
    %c0_i32_9 = arith.constant 0 : i32
    %12 = arith.cmpi ne, %11, %c0_i32_9 : i32
    scf.if %12 {
      %c0_10 = arith.constant 0 : index
      %c0_11 = arith.constant 0 : index
      %13 = vector.load %arg8[%c0_10, %c0_11] : memref<48x32xf32, #tpu.memory_space<vmem>>, vector<48x32xf32>
      %c0_12 = arith.constant 0 : index
      %c0_13 = arith.constant 0 : index
      %14 = vector.load %arg5[%c0_12, %c0_13] : memref<1x32xf32, #tpu.memory_space<vmem>>, vector<1x32xf32>
      %15 = vector.broadcast %14 : vector<1x32xf32> to vector<48x32xf32>
      %16 = arith.addf %13, %15 : vector<48x32xf32>
      %c0_14 = arith.constant 0 : index
      %c0_15 = arith.constant 0 : index
      %17 = vector.load %arg6[%c0_14, %c0_15] : memref<48x32xf32, #tpu.memory_space<vmem>>, vector<48x32xf32>
      %18 = arith.addf %16, %17 : vector<48x32xf32>
      %c0_16 = arith.constant 0 : index
      %c0_17 = arith.constant 0 : index
      %19 = vector.load %arg7[%c0_16, %c0_17] : memref<48x32xf32, #tpu.memory_space<vmem>>, vector<48x32xf32>
      tpu.vector_store %arg7[%c0_16, %c0_17], %18 {strides = array<i32>} : memref<48x32xf32, #tpu.memory_space<vmem>>, vector<48x32xf32>,
    } else {
    }
    return
  }
  func.func @transform_0(%arg0: i32, %arg1: i32, %arg2: i32) -> (i32, i32) {
    %c0_i32 = arith.constant 0 : i32
    return %arg0, %arg2 : i32, i32
  }
  func.func @transform_1(%arg0: i32, %arg1: i32, %arg2: i32) -> (i32, i32) {
    %c0_i32 = arith.constant 0 : i32
    return %arg2, %arg1 : i32, i32
  }
  func.func @transform_2(%arg0: i32, %arg1: i32, %arg2: i32) -> (i32, i32) {
    %c0_i32 = arith.constant 0 : i32
    %c0_i32_0 = arith.constant 0 : i32
    return %c0_i32, %arg1 : i32, i32
  }
  func.func @transform_3(%arg0: i32, %arg1: i32, %arg2: i32) -> (i32, i32) {
    %c0_i32 = arith.constant 0 : i32
    return %arg0, %arg1 : i32, i32
  }
  func.func @transform_4(%arg0: i32, %arg1: i32, %arg2: i32) -> (i32, i32) {
    %c0_i32 = arith.constant 0 : i32
    return %arg0, %arg1 : i32, i32
  }
}

module attributes {stable_mosaic.version = 11 : i64} {
  func.func @_ln_dense_kernel(%arg0: i32, %arg1: i32, %arg2: memref<2x32xf32, #tpu.memory_space<vmem>>, %arg3: memref<1x32xf32, #tpu.memory_space<vmem>>, %arg4: memref<1x32xf32, #tpu.memory_space<vmem>>, %arg5: memref<32x64xbf16, #tpu.memory_space<vmem>>, %arg6: memref<1x64xf32, #tpu.memory_space<vmem>>, %arg7: memref<2x64xf32, #tpu.memory_space<vmem>>) attributes {dimension_semantics = [#tpu.dimension_semantics<parallel>, #tpu.dimension_semantics<parallel>], iteration_bounds = array<i64: 1, 1>, scalar_prefetch = 0 : i64, scratch_operands = 0 : i64, tpu.core_type = #tpu.core_type<tc>, window_params = [{transform_indices = @transform_0, window_bounds = array<i64: 2, 32>}, {pipeline_mode = #tpu.pipeline_mode<synchronous>, transform_indices = @transform_1, window_bounds = array<i64: 1, 32>}, {pipeline_mode = #tpu.pipeline_mode<synchronous>, transform_indices = @transform_2, window_bounds = array<i64: 1, 32>}, {transform_indices = @transform_3, window_bounds = array<i64: 32, 64>}, {transform_indices = @transform_4, window_bounds = array<i64: 1, 64>}, {transform_indices = @transform_5, window_bounds = array<i64: 2, 64>}]} {
    %c0 = arith.constant 0 : index
    %c0_0 = arith.constant 0 : index
    %0 = vector.load %arg2[%c0, %c0_0] : memref<2x32xf32, #tpu.memory_space<vmem>>, vector<2x32xf32>
    %cst = arith.constant dense<0.000000e+00> : vector<2xf32>
    %1 = vector.multi_reduction <add>, %0, %cst [1] : vector<2x32xf32> to vector<2xf32>
    %2 = vector.shape_cast %1 : vector<2xf32> to vector<2x1xf32>
    %cst_1 = arith.constant 3.200000e+01 : f32
    %3 = vector.broadcast %cst_1 : f32 to vector<2x1xf32>
    %4 = arith.divf %2, %3 : vector<2x1xf32>
    %5 = vector.broadcast %4 : vector<2x1xf32> to vector<2x32xf32>
    %6 = arith.subf %0, %5 : vector<2x32xf32>
    %7 = arith.mulf %6, %6 : vector<2x32xf32>
    %cst_2 = arith.constant dense<0.000000e+00> : vector<2xf32>
    %8 = vector.multi_reduction <add>, %7, %cst_2 [1] : vector<2x32xf32> to vector<2xf32>
    %9 = vector.shape_cast %8 : vector<2xf32> to vector<2x1xf32>
    %cst_3 = arith.constant 3.200000e+01 : f32
    %10 = vector.broadcast %cst_3 : f32 to vector<2x1xf32>
    %11 = arith.divf %9, %10 : vector<2x1xf32>
    %cst_4 = arith.constant 9.99999974E-6 : f32
    %12 = vector.broadcast %cst_4 : f32 to vector<2x1xf32>
    %13 = arith.addf %11, %12 : vector<2x1xf32>
    %14 = math.rsqrt %13 : vector<2x1xf32>
    %15 = vector.broadcast %14 : vector<2x1xf32> to vector<2x32xf32>
    %16 = arith.mulf %6, %15 : vector<2x32xf32>
    %c0_5 = arith.constant 0 : index
    %c0_6 = arith.constant 0 : index
    %17 = vector.load %arg3[%c0_5, %c0_6] : memref<1x32xf32, #tpu.memory_space<vmem>>, vector<1x32xf32>
    %18 = vector.broadcast %17 : vector<1x32xf32> to vector<2x32xf32>
    %19 = arith.mulf %16, %18 : vector<2x32xf32>
    %c0_7 = arith.constant 0 : index
    %c0_8 = arith.constant 0 : index
    %20 = vector.load %arg4[%c0_7, %c0_8] : memref<1x32xf32, #tpu.memory_space<vmem>>, vector<1x32xf32>
    %21 = vector.broadcast %20 : vector<1x32xf32> to vector<2x32xf32>
    %22 = arith.addf %19, %21 : vector<2x32xf32>
    %23 = arith.truncf %22 : vector<2x32xf32> to vector<2x32xbf16>
    %c0_9 = arith.constant 0 : index
    %c0_10 = arith.constant 0 : index
    %24 = vector.load %arg5[%c0_9, %c0_10] : memref<32x64xbf16, #tpu.memory_space<vmem>>, vector<32x64xbf16>
    %cst_11 = arith.constant dense<0.000000e+00> : vector<2x64xf32>
    %25 = tpu.matmul %23, %24, %cst_11 {dimension_numbers = #tpu.dot_dimension_numbers<[1], [0], [0], [1], [0, 0, 1, 1], [], []>} : vector<2x32xbf16>, vector<32x64xbf16>, vector<2x64xf32> -> vector<2x64xf32>
    %c0_12 = arith.constant 0 : index
    %c0_13 = arith.constant 0 : index
    %26 = vector.load %arg6[%c0_12, %c0_13] : memref<1x64xf32, #tpu.memory_space<vmem>>, vector<1x64xf32>
    %27 = vector.broadcast %26 : vector<1x64xf32> to vector<2x64xf32>
    %28 = arith.addf %25, %27 : vector<2x64xf32>
    %cst_14 = arith.constant 5.000000e-01 : f32
    %29 = vector.broadcast %cst_14 : f32 to vector<2x64xf32>
    %30 = arith.mulf %29, %28 : vector<2x64xf32>
    %cst_15 = arith.constant 0.707106769 : f32
    %31 = vector.broadcast %cst_15 : f32 to vector<2x64xf32>
    %32 = arith.mulf %28, %31 : vector<2x64xf32>
    %33 = math.erf %32 : vector<2x64xf32>
    %cst_16 = arith.constant 1.000000e+00 : f32
    %34 = vector.broadcast %cst_16 : f32 to vector<2x64xf32>
    %35 = arith.addf %34, %33 : vector<2x64xf32>
    %36 = arith.mulf %30, %35 : vector<2x64xf32>
    %c0_17 = arith.constant 0 : index
    %c0_18 = arith.constant 0 : index
    %37 = vector.load %arg7[%c0_17, %c0_18] : memref<2x64xf32, #tpu.memory_space<vmem>>, vector<2x64xf32>
    tpu.vector_store %arg7[%c0_17, %c0_18], %36 {strides = array<i32>} : memref<2x64xf32, #tpu.memory_space<vmem>>, vector<2x64xf32>,
    return
  }
  func.func @transform_0(%arg0: i32, %arg1: i32) -> (i32, i32) {
    %c0_i32 = arith.constant 0 : i32
    %c0_i32_0 = arith.constant 0 : i32
    return %arg0, %c0_i32 : i32, i32
  }
  func.func @transform_1(%arg0: i32, %arg1: i32) -> (i32, i32) {
    %c0_i32 = arith.constant 0 : i32
    %c0_i32_0 = arith.constant 0 : i32
    %c0_i32_1 = arith.constant 0 : i32
    return %c0_i32, %c0_i32_0 : i32, i32
  }
  func.func @transform_2(%arg0: i32, %arg1: i32) -> (i32, i32) {
    %c0_i32 = arith.constant 0 : i32
    %c0_i32_0 = arith.constant 0 : i32
    %c0_i32_1 = arith.constant 0 : i32
    return %c0_i32, %c0_i32_0 : i32, i32
  }
  func.func @transform_3(%arg0: i32, %arg1: i32) -> (i32, i32) {
    %c0_i32 = arith.constant 0 : i32
    %c0_i32_0 = arith.constant 0 : i32
    return %c0_i32, %arg1 : i32, i32
  }
  func.func @transform_4(%arg0: i32, %arg1: i32) -> (i32, i32) {
    %c0_i32 = arith.constant 0 : i32
    %c0_i32_0 = arith.constant 0 : i32
    return %c0_i32, %arg1 : i32, i32
  }
  func.func @transform_5(%arg0: i32, %arg1: i32) -> (i32, i32) {
    %c0_i32 = arith.constant 0 : i32
    return %arg0, %arg1 : i32, i32
  }
}

module attributes {stable_mosaic.version = 11 : i64} {
  func.func @_dense_kernel(%arg0: i32, %arg1: i32, %arg2: i32, %arg3: memref<2x64xf32, #tpu.memory_space<vmem>>, %arg4: memref<64x10xbf16, #tpu.memory_space<vmem>>, %arg5: memref<1x10xf32, #tpu.memory_space<vmem>>, %arg6: memref<2x10xf32, #tpu.memory_space<vmem>>, %arg7: memref<2x10xf32, #tpu.memory_space<vmem>>) attributes {dimension_semantics = [#tpu.dimension_semantics<parallel>, #tpu.dimension_semantics<parallel>, #tpu.dimension_semantics<arbitrary>], iteration_bounds = array<i64: 1, 1, 1>, scalar_prefetch = 0 : i64, scratch_operands = 1 : i64, tpu.core_type = #tpu.core_type<tc>, window_params = [{transform_indices = @transform_0, window_bounds = array<i64: 2, 64>}, {transform_indices = @transform_1, window_bounds = array<i64: 64, 10>}, {transform_indices = @transform_2, window_bounds = array<i64: 1, 10>}, {transform_indices = @transform_3, window_bounds = array<i64: 2, 10>}]} {
    %c0_i32 = arith.constant 0 : i32
    %0 = arith.cmpi eq, %arg2, %c0_i32 : i32
    %1 = arith.extui %0 : i1 to i32
    %c0_i32_0 = arith.constant 0 : i32
    %2 = arith.cmpi ne, %1, %c0_i32_0 : i32
    scf.if %2 {
      %cst_10 = arith.constant 0.000000e+00 : f32
      %13 = vector.broadcast %cst_10 : f32 to vector<2x10xf32>
      %c0_11 = arith.constant 0 : index
      %c0_12 = arith.constant 0 : index
      %14 = vector.load %arg7[%c0_11, %c0_12] : memref<2x10xf32, #tpu.memory_space<vmem>>, vector<2x10xf32>
      tpu.vector_store %arg7[%c0_11, %c0_12], %13 {strides = array<i32>} : memref<2x10xf32, #tpu.memory_space<vmem>>, vector<2x10xf32>,
    } else {
    }
    %c0 = arith.constant 0 : index
    %c0_1 = arith.constant 0 : index
    %3 = vector.load %arg7[%c0, %c0_1] : memref<2x10xf32, #tpu.memory_space<vmem>>, vector<2x10xf32>
    %c0_2 = arith.constant 0 : index
    %c0_3 = arith.constant 0 : index
    %4 = vector.load %arg3[%c0_2, %c0_3] : memref<2x64xf32, #tpu.memory_space<vmem>>, vector<2x64xf32>
    %5 = arith.truncf %4 : vector<2x64xf32> to vector<2x64xbf16>
    %c0_4 = arith.constant 0 : index
    %c0_5 = arith.constant 0 : index
    %6 = vector.load %arg4[%c0_4, %c0_5] : memref<64x10xbf16, #tpu.memory_space<vmem>>, vector<64x10xbf16>
    %cst = arith.constant dense<0.000000e+00> : vector<2x10xf32>
    %7 = tpu.matmul %5, %6, %cst {dimension_numbers = #tpu.dot_dimension_numbers<[1], [0], [0], [1], [0, 0, 1, 1], [], []>} : vector<2x64xbf16>, vector<64x10xbf16>, vector<2x10xf32> -> vector<2x10xf32>
    %8 = arith.addf %3, %7 : vector<2x10xf32>
    %c0_6 = arith.constant 0 : index
    %c0_7 = arith.constant 0 : index
    %9 = vector.load %arg7[%c0_6, %c0_7] : memref<2x10xf32, #tpu.memory_space<vmem>>, vector<2x10xf32>
    tpu.vector_store %arg7[%c0_6, %c0_7], %8 {strides = array<i32>} : memref<2x10xf32, #tpu.memory_space<vmem>>, vector<2x10xf32>,
    %c0_i32_8 = arith.constant 0 : i32
    %10 = arith.cmpi eq, %arg2, %c0_i32_8 : i32
    %11 = arith.extui %10 : i1 to i32
    %c0_i32_9 = arith.constant 0 : i32
    %12 = arith.cmpi ne, %11, %c0_i32_9 : i32
    scf.if %12 {
      %c0_10 = arith.constant 0 : index
      %c0_11 = arith.constant 0 : index
      %13 = vector.load %arg7[%c0_10, %c0_11] : memref<2x10xf32, #tpu.memory_space<vmem>>, vector<2x10xf32>
      %c0_12 = arith.constant 0 : index
      %c0_13 = arith.constant 0 : index
      %14 = vector.load %arg5[%c0_12, %c0_13] : memref<1x10xf32, #tpu.memory_space<vmem>>, vector<1x10xf32>
      %15 = vector.broadcast %14 : vector<1x10xf32> to vector<2x10xf32>
      %16 = arith.addf %13, %15 : vector<2x10xf32>
      %c0_14 = arith.constant 0 : index
      %c0_15 = arith.constant 0 : index
      %17 = vector.load %arg6[%c0_14, %c0_15] : memref<2x10xf32, #tpu.memory_space<vmem>>, vector<2x10xf32>
      tpu.vector_store %arg6[%c0_14, %c0_15], %16 {strides = array<i32>} : memref<2x10xf32, #tpu.memory_space<vmem>>, vector<2x10xf32>,
    } else {
    }
    return
  }
  func.func @transform_0(%arg0: i32, %arg1: i32, %arg2: i32) -> (i32, i32) {
    %c0_i32 = arith.constant 0 : i32
    return %arg0, %arg2 : i32, i32
  }
  func.func @transform_1(%arg0: i32, %arg1: i32, %arg2: i32) -> (i32, i32) {
    %c0_i32 = arith.constant 0 : i32
    return %arg2, %arg1 : i32, i32
  }
  func.func @transform_2(%arg0: i32, %arg1: i32, %arg2: i32) -> (i32, i32) {
    %c0_i32 = arith.constant 0 : i32
    %c0_i32_0 = arith.constant 0 : i32
    return %c0_i32, %arg1 : i32, i32
  }
  func.func @transform_3(%arg0: i32, %arg1: i32, %arg2: i32) -> (i32, i32) {
    %c0_i32 = arith.constant 0 : i32
    return %arg0, %arg1 : i32, i32
  }
}

</mosaic_0001>

<llo_original>
// kernel: vit_forward.11
$region0: #{vit_forward.11}
  #allocation0 [shape = 'u32[]', space=smem, size = 0x4, offset = 0x4, fixed_abs, tag = 'smem constant byte address 0x4 - core index']
  #allocation1 [shape = 'u32[144,128]{1,0:T(1,128)}', space=vmem, size = 0x12000, scoped, tag = 'internal scratch']
  #allocation2 [shape = 'f32[32,32]{1,0:T(8,128)}', space=vmem, size = 0x4000, scoped, tag = 'scratch operand']
  %s0 = inlined_call_operand.vmem [shape: f32[32,48], index: 0, kind: input, shape index: {}]
  %s1 = inlined_call_operand.vmem [shape: bf16[48,32], index: 1, kind: input, shape index: {}]
  %s2 = inlined_call_operand.vmem [shape: f32[1,32], index: 2, kind: input, shape index: {}]
  %s3 = inlined_call_operand.vmem [shape: f32[32,32], index: 3, kind: output, shape index: {}]
  %s4 = sld [smem:[#allocation0]]
  $region30: #{vit_forward.11} parent=0
    _
  %s6 = ssub.s32 1, %s4
  %s7 = scalar_select 0, %s6, %s4
  // Predicated region
  $region2: #{vit_forward.11} parent=0 // pred_check
    _
  $region3: #{vit_forward.11} parent=0 // pred_check_branch
    %9 = sbr.rel (0) target = $region5
  $region4: #{vit_forward.11} parent=0 // pred_region
    _
  $region5: #{vit_forward.11} parent=0 // pred_fallthru
    _
  // Predicated region
  $region6: #{vit_forward.11} parent=0 // pred_check
    _
  $region7: #{vit_forward.11} parent=0 // pred_check_branch
    %11 = sbr.rel (0) target = $region9
  $region8: #{vit_forward.11} parent=0 // pred_region
    _
  $region9: #{vit_forward.11} parent=0 // pred_fallthru
    _
  // Predicated region
  $region10: #{vit_forward.11} parent=0 // pred_check
    _
  $region11: #{vit_forward.11} parent=0 // pred_check_branch
    %13 = sbr.rel (0) target = $region13
  $region12: #{vit_forward.11} parent=0 // pred_region
    _
  $region13: #{vit_forward.11} parent=0 // pred_fallthru
    _
  %p15 = scmp.eq.s32.totalorder 0, 0
  // Predicated region
  $region14: #{vit_forward.11} parent=0 // pred_check
    %p16 = pneg %p15
  $region15: #{vit_forward.11} parent=0 // pred_check_branch
    %18 = sbr.rel (%p16) target = $region17
  $region16: #{vit_forward.11} parent=0 // pred_region
    %vm19 = vcmask 261120
    %20 = vst.msk [vmem:[#allocation2] sm:$0xff] %vm19, 0.0
    %21 = vst.msk [vmem:[#allocation2 + $0x8] sm:$0xff] %vm19, 0.0
    %22 = vst.msk [vmem:[#allocation2 + $0x10] sm:$0xff] %vm19, 0.0
    %23 = vst.msk [vmem:[#allocation2 + $0x18] sm:$0xff] %vm19, 0.0
  $region17: #{vit_forward.11} parent=0 // pred_fallthru
    _
  %v24 = vld [vmem:[#allocation2] sm:$0xff]
  %v25 = vld [vmem:[#allocation2 + $0x8] sm:$0xff]
  %v26 = vld [vmem:[#allocation2 + $0x10] sm:$0xff]
  %v27 = vld [vmem:[#allocation2 + $0x18] sm:$0xff]
  %v28 = vld [vmem:[%s0] sm:$0xff]
  %v29 = vld [vmem:[%s0 + $0x8] sm:$0xff]
  %v30 = vld [vmem:[%s0 + $0x10] sm:$0xff]
  %v31 = vld [vmem:[%s0 + $0x18] sm:$0xff]
  %v32 = vpack.c.bf16 %v29, %v28
  %v33 = vpack.c.bf16 %v31, %v30
  %v34 = vld [vmem:[%s1] sm:$0xf]
  %v35 = vld [vmem:[%s1 + $0x4] sm:$0xf]
  %v36 = vld [vmem:[%s1 + $0x8] sm:$0xf]
  %v37 = vld [vmem:[%s1 + $0xc] sm:$0xf]
  %v38 = vld [vmem:[%s1 + $0x10] sm:$0xf]
  %v39 = vld [vmem:[%s1 + $0x14] sm:$0xf]
  %v46 = vunpack.c.l.b16 %v34
  %v47 = vunpack.c.l.b16 %v35
  %v48 = vunpack.c.l.b16 %v36
  %v49 = vunpack.c.l.b16 %v37
  %v50 = vunpack.c.l.b16 %v38
  %v51 = vunpack.c.l.b16 %v39
  %v52 = vpack.c.b16 %v47, %v46
  %v53 = vpack.c.b16 %v49, %v48
  %v54 = vpack.c.b16 %v51, %v50
  %vm58 = vcmask 392192
  %v60 = vsel %vm58, %v32, 0
  %v63 = vsel %vm58, %v33, 0
  %65 = vmatprep.subr.bf16.mxu0 0
  %66 = vmatpush1.bf16.msra.mxu0 0
  %67 = vmatprep.subr.bf16.mxu0 0
  %68 = vmatpush1.bf16.msra.mxu0 0
  %69 = vmatprep.subr.bf16.mxu0 0
  %70 = vmatpush1.bf16.msra.mxu0 0
  %71 = vmatprep.subr.bf16.mxu0 0
  %72 = vmatpush1.bf16.msra.mxu0 0
  %73 = vmatprep.subr.bf16.mxu0 0
  %74 = vmatpush1.bf16.msra.mxu0 0
  %75 = vmatprep.subr.bf16.mxu0 0
  %76 = vmatpush1.bf16.msra.mxu0 %v54
  %77 = vmatprep.subr.bf16.mxu0 0
  %78 = vmatpush1.bf16.msra.mxu0 %v53
  %79 = vmatprep.subr.bf16.mxu0 0
  %80 = vmatpush1.bf16.msra.mxu0 %v52
  %81 = vmatprep.subr.bf16.mxu0 0
  %82 = vmatpush2.bf16.msra.mxu0 0
  %83 = vmatprep.subr.bf16.mxu0 0
  %84 = vmatpush2.bf16.msra.mxu0 0
  %85 = vmatprep.subr.bf16.mxu0 0
  %86 = vmatpush2.bf16.msra.mxu0 0
  %87 = vmatprep.subr.bf16.mxu0 0
  %88 = vmatpush2.bf16.msra.mxu0 0
  %89 = vmatprep.subr.bf16.mxu0 0
  %90 = vmatpush2.bf16.msra.mxu0 0
  %91 = vmatprep.subr.bf16.mxu0 0
  %92 = vmatpush2.bf16.msra.mxu0 0
  %93 = vmatprep.subr.bf16.mxu0 0
  %94 = vmatpush2.bf16.msra.mxu0 0
  %95 = vmatprep.subr.bf16.mxu0 0
  %96 = vmatpush2.bf16.msra.mxu0 0
  %97 = vmatprep.mubr.bf16.mxu0 0
  %98 = vmatmul.mubr.bf16.gmra.mxu0 %v60
  %v99 = vpop.f32.mrf.mxu0
  %v100 = vadd.f32 0.0, %v99
  %v101 = vpop.f32.mrf.mxu0
  %v102 = vpop.f32.mrf.mxu0
  %v103 = vadd.f32 0.0, %v102
  %v104 = vpop.f32.mrf.mxu0
  %105 = vmatprep.mubr.bf16.mxu0 0
  %106 = vmatmul.mubr.bf16.gmra.mxu0 %v63
  %v107 = vpop.f32.mrf.mxu0
  %v108 = vadd.f32 0.0, %v107
  %v109 = vpop.f32.mrf.mxu0
  %v110 = vpop.f32.mrf.mxu0
  %v111 = vadd.f32 0.0, %v110
  %v112 = vpop.f32.mrf.mxu0
  %113 = vdwg.mxu0
  %v114 = vadd.f32 %v24, %v100
  %v115 = vadd.f32 %v25, %v103
  %v116 = vadd.f32 %v26, %v108
  %v117 = vadd.f32 %v27, %v111
  %vm118 = vcmask 261120
  %119 = vst.msk [vmem:[#allocation2] sm:$0xff] %vm118, %v114
  %120 = vst.msk [vmem:[#allocation2 + $0x8] sm:$0xff] %vm118, %v115
  %121 = vst.msk [vmem:[#allocation2 + $0x10] sm:$0xff] %vm118, %v116
  %122 = vst.msk [vmem:[#allocation2 + $0x18] sm:$0xff] %vm118, %v117
  // Predicated region
  $region18: #{vit_forward.11} parent=0 // pred_check
    %p123 = pneg %p15
  $region19: #{vit_forward.11} parent=0 // pred_check_branch
    %125 = sbr.rel (%p123) target = $region21
  $region20: #{vit_forward.11} parent=0 // pred_region
    %v126 = vld [vmem:[#allocation2] sm:$0xff]
    %v127 = vld [vmem:[#allocation2 + $0x8] sm:$0xff]
    %v128 = vld [vmem:[#allocation2 + $0x10] sm:$0xff]
    %v129 = vld [vmem:[#allocation2 + $0x18] sm:$0xff]
    %v130 = vld [vmem:[%s2] sm:$0x1]
    %v132 = vlaneseq
    %v133 = vshrl.u32 %v132, 7
    %v134 = vsub.s32 0, %v133
    %v135 = vrot.slane %v130, %v134
    %v137 = vadd.f32 %v126, %v135
    %v138 = vadd.f32 %v127, %v135
    %v139 = vadd.f32 %v128, %v135
    %v140 = vadd.f32 %v129, %v135
    %141 = vst.msk [vmem:[%s3] sm:$0xff] %vm118, %v137
    %142 = vst.msk [vmem:[%s3 + $0x8] sm:$0xff] %vm118, %v138
    %143 = vst.msk [vmem:[%s3 + $0x10] sm:$0xff] %vm118, %v139
    %144 = vst.msk [vmem:[%s3 + $0x18] sm:$0xff] %vm118, %v140
  $region21: #{vit_forward.11} parent=0 // pred_fallthru
    _
  // Predicated region
  $region22: #{vit_forward.11} parent=0 // pred_check
    _
  $region23: #{vit_forward.11} parent=0 // pred_check_branch
    %146 = sbr.rel (0) target = $region25
  $region24: #{vit_forward.11} parent=0 // pred_region
    _
  $region25: #{vit_forward.11} parent=0 // pred_fallthru
    _
  // Predicated region
  $region26: #{vit_forward.11} parent=0 // pred_check
    _
  $region27: #{vit_forward.11} parent=0 // pred_check_branch
    %148 = sbr.rel (0) target = $region29
  $region28: #{vit_forward.11} parent=0 // pred_region
    _
  $region29: #{vit_forward.11} parent=0 // pred_fallthru
    _

// kernel: vit_forward.12
$region0: #{vit_forward.12}
  #allocation0 [shape = 'u32[]', space=smem, size = 0x4, offset = 0x4, fixed_abs, tag = 'smem constant byte address 0x4 - core index']
  #allocation1 [shape = 'u32[144,128]{1,0:T(1,128)}', space=vmem, size = 0x12000, scoped, tag = 'internal scratch']
  %s0 = inlined_call_operand.vmem [shape: f32[48,32], index: 0, kind: input, shape index: {}]
  %s1 = inlined_call_operand.vmem [shape: f32[1,32], index: 1, kind: input, shape index: {}]
  %s2 = inlined_call_operand.vmem [shape: f32[1,32], index: 2, kind: input, shape index: {}]
  %s3 = inlined_call_operand.vmem [shape: bf16[32,96], index: 3, kind: input, shape index: {}]
  %s4 = inlined_call_operand.vmem [shape: f32[1,96], index: 4, kind: input, shape index: {}]
  %s5 = inlined_call_operand.vmem [shape: f32[48,96], index: 5, kind: output, shape index: {}]
  %s6 = sld [smem:[#allocation0]]
  $region30: #{vit_forward.12} parent=0
    _
  %s8 = ssub.s32 1, %s6
  %s9 = scalar_select 0, %s8, %s6
  // Predicated region
  $region2: #{vit_forward.12} parent=0 // pred_check
    _
  $region3: #{vit_forward.12} parent=0 // pred_check_branch
    %11 = sbr.rel (0) target = $region5
  $region4: #{vit_forward.12} parent=0 // pred_region
    _
  $region5: #{vit_forward.12} parent=0 // pred_fallthru
    _
  // Predicated region
  $region6: #{vit_forward.12} parent=0 // pred_check
    _
  $region7: #{vit_forward.12} parent=0 // pred_check_branch
    %13 = sbr.rel (0) target = $region9
  $region8: #{vit_forward.12} parent=0 // pred_region
    _
  $region9: #{vit_forward.12} parent=0 // pred_fallthru
    _
  // Predicated region
  $region10: #{vit_forward.12} parent=0 // pred_check
    _
  $region11: #{vit_forward.12} parent=0 // pred_check_branch
    %15 = sbr.rel (0) target = $region13
  $region12: #{vit_forward.12} parent=0 // pred_region
    _
  $region13: #{vit_forward.12} parent=0 // pred_fallthru
    _
  // Predicated region
  $region14: #{vit_forward.12} parent=0 // pred_check
    _
  $region15: #{vit_forward.12} parent=0 // pred_check_branch
    %17 = sbr.rel (0) target = $region17
  $region16: #{vit_forward.12} parent=0 // pred_region
    _
  $region17: #{vit_forward.12} parent=0 // pred_fallthru
    _
  // Predicated region
  $region18: #{vit_forward.12} parent=0 // pred_check
    _
  $region19: #{vit_forward.12} parent=0 // pred_check_branch
    %19 = sbr.rel (0) target = $region21
  $region20: #{vit_forward.12} parent=0 // pred_region
    _
  $region21: #{vit_forward.12} parent=0 // pred_fallthru
    _
  %v21 = vld [vmem:[%s0] sm:$0xff]
  %v22 = vld [vmem:[%s0 + $0x8] sm:$0xff]
  %v23 = vld [vmem:[%s0 + $0x10] sm:$0xff]
  %v24 = vld [vmem:[%s0 + $0x18] sm:$0xff]
  %v25 = vld [vmem:[%s0 + $0x20] sm:$0xff]
  %v26 = vld [vmem:[%s0 + $0x28] sm:$0xff]
  %vm27 = vcmask 261120
  %v28 = vsel %vm27, %v21, 0.0
  %29 = vadd.xlane.f32.xlu0 %v28
  %v30 = vpop.xlane.xlu0 %29
  %v31 = vsel %vm27, %v22, 0.0
  %32 = vadd.xlane.f32.xlu0 %v31
  %v33 = vpop.xlane.xlu0 %32
  %v34 = vsel %vm27, %v23, 0.0
  %35 = vadd.xlane.f32.xlu0 %v34
  %v36 = vpop.xlane.xlu0 %35
  %v37 = vsel %vm27, %v24, 0.0
  %38 = vadd.xlane.f32.xlu0 %v37
  %v39 = vpop.xlane.xlu0 %38
  %v40 = vsel %vm27, %v25, 0.0
  %41 = vadd.xlane.f32.xlu0 %v40
  %v42 = vpop.xlane.xlu0 %41
  %v43 = vsel %vm27, %v26, 0.0
  %44 = vadd.xlane.f32.xlu0 %v43
  %v45 = vpop.xlane.xlu0 %44
  %v46 = vrcp.pop 32.0
  %v47 = vmul.f32 %v30, %v46
  %v48 = vmul.f32 %v33, %v46
  %v49 = vmul.f32 %v36, %v46
  %v50 = vmul.f32 %v39, %v46
  %v51 = vmul.f32 %v42, %v46
  %v52 = vmul.f32 %v45, %v46
  %v53 = vsub.f32 %v21, %v47
  %v54 = vsub.f32 %v22, %v48
  %v55 = vsub.f32 %v23, %v49
  %v56 = vsub.f32 %v24, %v50
  %v57 = vsub.f32 %v25, %v51
  %v58 = vsub.f32 %v26, %v52
  %v59 = vmul.f32 %v53, %v53
  %v60 = vmul.f32 %v54, %v54
  %v61 = vmul.f32 %v55, %v55
  %v62 = vmul.f32 %v56, %v56
  %v63 = vmul.f32 %v57, %v57
  %v64 = vmul.f32 %v58, %v58
  %v65 = vsel %vm27, %v59, 0.0
  %66 = vadd.xlane.f32.xlu0 %v65
  %v67 = vpop.xlane.xlu0 %66
  %v68 = vsel %vm27, %v60, 0.0
  %69 = vadd.xlane.f32.xlu0 %v68
  %v70 = vpop.xlane.xlu0 %69
  %v71 = vsel %vm27, %v61, 0.0
  %72 = vadd.xlane.f32.xlu0 %v71
  %v73 = vpop.xlane.xlu0 %72
  %v74 = vsel %vm27, %v62, 0.0
  %75 = vadd.xlane.f32.xlu0 %v74
  %v76 = vpop.xlane.xlu0 %75
  %v77 = vsel %vm27, %v63, 0.0
  %78 = vadd.xlane.f32.xlu0 %v77
  %v79 = vpop.xlane.xlu0 %78
  %v80 = vsel %vm27, %v64, 0.0
  %81 = vadd.xlane.f32.xlu0 %v80
  %v82 = vpop.xlane.xlu0 %81
  %v83 = vmul.f32 %v67, %v46
  %v84 = vmul.f32 %v70, %v46
  %v85 = vmul.f32 %v73, %v46
  %v86 = vmul.f32 %v76, %v46
  %v87 = vmul.f32 %v79, %v46
  %v88 = vmul.f32 %v82, %v46
  %v89 = vadd.f32 %v83, 1e-05
  %v90 = vadd.f32 %v84, 1e-05
  %v91 = vadd.f32 %v85, 1e-05
  %v92 = vadd.f32 %v86, 1e-05
  %v93 = vadd.f32 %v87, 1e-05
  %v94 = vadd.f32 %v88, 1e-05
  %v95 = vrsqrt.pop %v89
  %v96 = vrsqrt.pop %v90
  %v97 = vrsqrt.pop %v91
  %v98 = vrsqrt.pop %v92
  %v99 = vrsqrt.pop %v93
  %v100 = vrsqrt.pop %v94
  %v101 = vmul.f32 %v53, %v95
  %v102 = vmul.f32 %v54, %v96
  %v103 = vmul.f32 %v55, %v97
  %v104 = vmul.f32 %v56, %v98
  %v105 = vmul.f32 %v57, %v99
  %v106 = vmul.f32 %v58, %v100
  %v107 = vld [vmem:[%s1] sm:$0x1]
  %v109 = vlaneseq
  %v110 = vshrl.u32 %v109, 7
  %v111 = vsub.s32 0, %v110
  %v112 = vrot.slane %v107, %v111
  %v114 = vmul.f32 %v101, %v112
  %v115 = vmul.f32 %v102, %v112
  %v116 = vmul.f32 %v103, %v112
  %v117 = vmul.f32 %v104, %v112
  %v118 = vmul.f32 %v105, %v112
  %v119 = vmul.f32 %v106, %v112
  %v120 = vld [vmem:[%s2] sm:$0x1]
  %v122 = vlaneseq
  %v123 = vshrl.u32 %v122, 7
  %v124 = vsub.s32 0, %v123
  %v125 = vrot.slane %v120, %v124
  %v127 = vadd.f32 %v114, %v125
  %v128 = vadd.f32 %v115, %v125
  %v129 = vadd.f32 %v116, %v125
  %v130 = vadd.f32 %v117, %v125
  %v131 = vadd.f32 %v118, %v125
  %v132 = vadd.f32 %v119, %v125
  %v133 = vpack.c.bf16 %v128, %v127
  %v134 = vpack.c.bf16 %v130, %v129
  %v135 = vpack.c.bf16 %v132, %v131
  %v136 = vld [vmem:[%s3] sm:$0xf]
  %v137 = vld [vmem:[%s3 + $0x4] sm:$0xf]
  %v138 = vld [vmem:[%s3 + $0x8] sm:$0xf]
  %v139 = vld [vmem:[%s3 + $0xc] sm:$0xf]
  %v140 = vld [vmem:[%s4] sm:$0x1]
  %v142 = vlaneseq
  %v143 = vshrl.u32 %v142, 7
  %v144 = vsub.s32 0, %v143
  %v145 = vrot.slane %v140, %v144
  %v151 = vunpack.c.l.b16 %v136
  %v152 = vunpack.c.l.b16 %v137
  %v153 = vunpack.c.l.b16 %v138
  %v154 = vunpack.c.l.b16 %v139
  %v155 = vpack.c.b16 %v152, %v151
  %v156 = vpack.c.b16 %v154, %v153
  %v160 = vsel %vm27, %v133, 0
  %v163 = vsel %vm27, %v134, 0
  %v166 = vsel %vm27, %v135, 0
  %168 = vmatprep.subr.bf16.mxu0 0
  %169 = vmatpush1.bf16.msra.mxu0 0
  %170 = vmatprep.subr.bf16.mxu0 0
  %171 = vmatpush1.bf16.msra.mxu0 0
  %172 = vmatprep.subr.bf16.mxu0 0
  %173 = vmatpush1.bf16.msra.mxu0 0
  %174 = vmatprep.subr.bf16.mxu0 0
  %175 = vmatpush1.bf16.msra.mxu0 0
  %176 = vmatprep.subr.bf16.mxu0 0
  %177 = vmatpush1.bf16.msra.mxu0 0
  %178 = vmatprep.subr.bf16.mxu0 0
  %179 = vmatpush1.bf16.msra.mxu0 0
  %180 = vmatprep.subr.bf16.mxu0 0
  %181 = vmatpush1.bf16.msra.mxu0 %v156
  %182 = vmatprep.subr.bf16.mxu0 0
  %183 = vmatpush1.bf16.msra.mxu0 %v155
  %184 = vmatprep.subr.bf16.mxu0 0
  %185 = vmatpush2.bf16.msra.mxu0 0
  %186 = vmatprep.subr.bf16.mxu0 0
  %187 = vmatpush2.bf16.msra.mxu0 0
  %188 = vmatprep.subr.bf16.mxu0 0
  %189 = vmatpush2.bf16.msra.mxu0 0
  %190 = vmatprep.subr.bf16.mxu0 0
  %191 = vmatpush2.bf16.msra.mxu0 0
  %192 = vmatprep.subr.bf16.mxu0 0
  %193 = vmatpush2.bf16.msra.mxu0 0
  %194 = vmatprep.subr.bf16.mxu0 0
  %195 = vmatpush2.bf16.msra.mxu0 0
  %196 = vmatprep.subr.bf16.mxu0 0
  %197 = vmatpush2.bf16.msra.mxu0 0
  %198 = vmatprep.subr.bf16.mxu0 0
  %199 = vmatpush2.bf16.msra.mxu0 0
  %200 = vmatprep.mubr.bf16.mxu0 0
  %201 = vmatmul.mubr.bf16.gmra.mxu0 %v160
  %v202 = vpop.f32.mrf.mxu0
  %v203 = vadd.f32 %v145, %v202
  %v204 = vpop.f32.mrf.mxu0
  %v205 = vpop.f32.mrf.mxu0
  %v206 = vadd.f32 %v145, %v205
  %v207 = vpop.f32.mrf.mxu0
  %208 = vmatprep.mubr.bf16.mxu0 0
  %209 = vmatmul.mubr.bf16.gmra.mxu0 %v163
  %v210 = vpop.f32.mrf.mxu0
  %v211 = vadd.f32 %v145, %v210
  %v212 = vpop.f32.mrf.mxu0
  %v213 = vpop.f32.mrf.mxu0
  %v214 = vadd.f32 %v145, %v213
  %v215 = vpop.f32.mrf.mxu0
  %216 = vmatprep.mubr.bf16.mxu0 0
  %217 = vmatmul.mubr.bf16.gmra.mxu0 %v166
  %v218 = vpop.f32.mrf.mxu0
  %v219 = vadd.f32 %v145, %v218
  %v220 = vpop.f32.mrf.mxu0
  %v221 = vpop.f32.mrf.mxu0
  %v222 = vadd.f32 %v145, %v221
  %v223 = vpop.f32.mrf.mxu0
  %224 = vdwg.mxu0
  %vm225 = vcmask 785408
  %226 = vst.msk [vmem:[%s5] sm:$0xff] %vm225, %v203
  %227 = vst.msk [vmem:[%s5 + $0x8] sm:$0xff] %vm225, %v206
  %228 = vst.msk [vmem:[%s5 + $0x10] sm:$0xff] %vm225, %v211
  %229 = vst.msk [vmem:[%s5 + $0x18] sm:$0xff] %vm225, %v214
  %230 = vst.msk [vmem:[%s5 + $0x20] sm:$0xff] %vm225, %v219
  %231 = vst.msk [vmem:[%s5 + $0x28] sm:$0xff] %vm225, %v222
  // Predicated region
  $region22: #{vit_forward.12} parent=0 // pred_check
    _
  $region23: #{vit_forward.12} parent=0 // pred_check_branch
    %233 = sbr.rel (0) target = $region25
  $region24: #{vit_forward.12} parent=0 // pred_region
    _
  $region25: #{vit_forward.12} parent=0 // pred_fallthru
    _
  // Predicated region
  $region26: #{vit_forward.12} parent=0 // pred_check
    _
  $region27: #{vit_forward.12} parent=0 // pred_check_branch
    %235 = sbr.rel (0) target = $region29
  $region28: #{vit_forward.12} parent=0 // pred_region
    _
  $region29: #{vit_forward.12} parent=0 // pred_fallthru
    _

// kernel: vit_forward.14
$region0: #{vit_forward.14}
  #allocation0 [shape = 'u32[]', space=smem, size = 0x4, offset = 0x4, fixed_abs, tag = 'smem constant byte address 0x4 - core index']
  #allocation1 [shape = 'u32[144,128]{1,0:T(1,128)}', space=vmem, size = 0x12000, scoped, tag = 'internal scratch']
  %s0 = inlined_call_operand.vmem [shape: f32[48,32], index: 0, kind: input, shape index: {}]
  %s1 = inlined_call_operand.vmem [shape: f32[1,32], index: 1, kind: input, shape index: {}]
  %s2 = inlined_call_operand.vmem [shape: f32[1,32], index: 2, kind: input, shape index: {}]
  %s3 = inlined_call_operand.vmem [shape: bf16[32,64], index: 3, kind: input, shape index: {}]
  %s4 = inlined_call_operand.vmem [shape: f32[1,64], index: 4, kind: input, shape index: {}]
  %s5 = inlined_call_operand.vmem [shape: f32[48,64], index: 5, kind: output, shape index: {}]
  %s6 = sld [smem:[#allocation0]]
  $region30: #{vit_forward.14} parent=0
    _
  %s8 = ssub.s32 1, %s6
  %s9 = scalar_select 0, %s8, %s6
  // Predicated region
  $region2: #{vit_forward.14} parent=0 // pred_check
    _
  $region3: #{vit_forward.14} parent=0 // pred_check_branch
    %11 = sbr.rel (0) target = $region5
  $region4: #{vit_forward.14} parent=0 // pred_region
    _
  $region5: #{vit_forward.14} parent=0 // pred_fallthru
    _
  // Predicated region
  $region6: #{vit_forward.14} parent=0 // pred_check
    _
  $region7: #{vit_forward.14} parent=0 // pred_check_branch
    %13 = sbr.rel (0) target = $region9
  $region8: #{vit_forward.14} parent=0 // pred_region
    _
  $region9: #{vit_forward.14} parent=0 // pred_fallthru
    _
  // Predicated region
  $region10: #{vit_forward.14} parent=0 // pred_check
    _
  $region11: #{vit_forward.14} parent=0 // pred_check_branch
    %15 = sbr.rel (0) target = $region13
  $region12: #{vit_forward.14} parent=0 // pred_region
    _
  $region13: #{vit_forward.14} parent=0 // pred_fallthru
    _
  // Predicated region
  $region14: #{vit_forward.14} parent=0 // pred_check
    _
  $region15: #{vit_forward.14} parent=0 // pred_check_branch
    %17 = sbr.rel (0) target = $region17
  $region16: #{vit_forward.14} parent=0 // pred_region
    _
  $region17: #{vit_forward.14} parent=0 // pred_fallthru
    _
  // Predicated region
  $region18: #{vit_forward.14} parent=0 // pred_check
    _
  $region19: #{vit_forward.14} parent=0 // pred_check_branch
    %19 = sbr.rel (0) target = $region21
  $region20: #{vit_forward.14} parent=0 // pred_region
    _
  $region21: #{vit_forward.14} parent=0 // pred_fallthru
    _
  %v21 = vld [vmem:[%s0] sm:$0xff]
  %v22 = vld [vmem:[%s0 + $0x8] sm:$0xff]
  %v23 = vld [vmem:[%s0 + $0x10] sm:$0xff]
  %v24 = vld [vmem:[%s0 + $0x18] sm:$0xff]
  %v25 = vld [vmem:[%s0 + $0x20] sm:$0xff]
  %v26 = vld [vmem:[%s0 + $0x28] sm:$0xff]
  %vm27 = vcmask 261120
  %v28 = vsel %vm27, %v21, 0.0
  %29 = vadd.xlane.f32.xlu0 %v28
  %v30 = vpop.xlane.xlu0 %29
  %v31 = vsel %vm27, %v22, 0.0
  %32 = vadd.xlane.f32.xlu0 %v31
  %v33 = vpop.xlane.xlu0 %32
  %v34 = vsel %vm27, %v23, 0.0
  %35 = vadd.xlane.f32.xlu0 %v34
  %v36 = vpop.xlane.xlu0 %35
  %v37 = vsel %vm27, %v24, 0.0
  %38 = vadd.xlane.f32.xlu0 %v37
  %v39 = vpop.xlane.xlu0 %38
  %v40 = vsel %vm27, %v25, 0.0
  %41 = vadd.xlane.f32.xlu0 %v40
  %v42 = vpop.xlane.xlu0 %41
  %v43 = vsel %vm27, %v26, 0.0
  %44 = vadd.xlane.f32.xlu0 %v43
  %v45 = vpop.xlane.xlu0 %44
  %v46 = vrcp.pop 32.0
  %v47 = vmul.f32 %v30, %v46
  %v48 = vmul.f32 %v33, %v46
  %v49 = vmul.f32 %v36, %v46
  %v50 = vmul.f32 %v39, %v46
  %v51 = vmul.f32 %v42, %v46
  %v52 = vmul.f32 %v45, %v46
  %v53 = vsub.f32 %v21, %v47
  %v54 = vsub.f32 %v22, %v48
  %v55 = vsub.f32 %v23, %v49
  %v56 = vsub.f32 %v24, %v50
  %v57 = vsub.f32 %v25, %v51
  %v58 = vsub.f32 %v26, %v52
  %v59 = vmul.f32 %v53, %v53
  %v60 = vmul.f32 %v54, %v54
  %v61 = vmul.f32 %v55, %v55
  %v62 = vmul.f32 %v56, %v56
  %v63 = vmul.f32 %v57, %v57
  %v64 = vmul.f32 %v58, %v58
  %v65 = vsel %vm27, %v59, 0.0
  %66 = vadd.xlane.f32.xlu0 %v65
  %v67 = vpop.xlane.xlu0 %66
  %v68 = vsel %vm27, %v60, 0.0
  %69 = vadd.xlane.f32.xlu0 %v68
  %v70 = vpop.xlane.xlu0 %69
  %v71 = vsel %vm27, %v61, 0.0
  %72 = vadd.xlane.f32.xlu0 %v71
  %v73 = vpop.xlane.xlu0 %72
  %v74 = vsel %vm27, %v62, 0.0
  %75 = vadd.xlane.f32.xlu0 %v74
  %v76 = vpop.xlane.xlu0 %75
  %v77 = vsel %vm27, %v63, 0.0
  %78 = vadd.xlane.f32.xlu0 %v77
  %v79 = vpop.xlane.xlu0 %78
  %v80 = vsel %vm27, %v64, 0.0
  %81 = vadd.xlane.f32.xlu0 %v80
  %v82 = vpop.xlane.xlu0 %81
  %v83 = vmul.f32 %v67, %v46
  %v84 = vmul.f32 %v70, %v46
  %v85 = vmul.f32 %v73, %v46
  %v86 = vmul.f32 %v76, %v46
  %v87 = vmul.f32 %v79, %v46
  %v88 = vmul.f32 %v82, %v46
  %v89 = vadd.f32 %v83, 1e-05
  %v90 = vadd.f32 %v84, 1e-05
  %v91 = vadd.f32 %v85, 1e-05
  %v92 = vadd.f32 %v86, 1e-05
  %v93 = vadd.f32 %v87, 1e-05
  %v94 = vadd.f32 %v88, 1e-05
  %v95 = vrsqrt.pop %v89
  %v96 = vrsqrt.pop %v90
  %v97 = vrsqrt.pop %v91
  %v98 = vrsqrt.pop %v92
  %v99 = vrsqrt.pop %v93
  %v100 = vrsqrt.pop %v94
  %v101 = vmul.f32 %v53, %v95
  %v102 = vmul.f32 %v54, %v96
  %v103 = vmul.f32 %v55, %v97
  %v104 = vmul.f32 %v56, %v98
  %v105 = vmul.f32 %v57, %v99
  %v106 = vmul.f32 %v58, %v100
  %v107 = vld [vmem:[%s1] sm:$0x1]
  %v109 = vlaneseq
  %v110 = vshrl.u32 %v109, 7
  %v111 = vsub.s32 0, %v110
  %v112 = vrot.slane %v107, %v111
  %v114 = vmul.f32 %v101, %v112
  %v115 = vmul.f32 %v102, %v112
  %v116 = vmul.f32 %v103, %v112
  %v117 = vmul.f32 %v104, %v112
  %v118 = vmul.f32 %v105, %v112
  %v119 = vmul.f32 %v106, %v112
  %v120 = vld [vmem:[%s2] sm:$0x1]
  %v122 = vlaneseq
  %v123 = vshrl.u32 %v122, 7
  %v124 = vsub.s32 0, %v123
  %v125 = vrot.slane %v120, %v124
  %v127 = vadd.f32 %v114, %v125
  %v128 = vadd.f32 %v115, %v125
  %v129 = vadd.f32 %v116, %v125
  %v130 = vadd.f32 %v117, %v125
  %v131 = vadd.f32 %v118, %v125
  %v132 = vadd.f32 %v119, %v125
  %v133 = vpack.c.bf16 %v128, %v127
  %v134 = vpack.c.bf16 %v130, %v129
  %v135 = vpack.c.bf16 %v132, %v131
  %v136 = vld [vmem:[%s3] sm:$0xf]
  %v137 = vld [vmem:[%s3 + $0x4] sm:$0xf]
  %v138 = vld [vmem:[%s3 + $0x8] sm:$0xf]
  %v139 = vld [vmem:[%s3 + $0xc] sm:$0xf]
  %v140 = vld [vmem:[%s4] sm:$0x1]
  %v142 = vlaneseq
  %v143 = vshrl.u32 %v142, 7
  %v144 = vsub.s32 0, %v143
  %v145 = vrot.slane %v140, %v144
  %v151 = vunpack.c.l.b16 %v136
  %v152 = vunpack.c.l.b16 %v137
  %v153 = vunpack.c.l.b16 %v138
  %v154 = vunpack.c.l.b16 %v139
  %v155 = vpack.c.b16 %v152, %v151
  %v156 = vpack.c.b16 %v154, %v153
  %v160 = vsel %vm27, %v133, 0
  %v163 = vsel %vm27, %v134, 0
  %v166 = vsel %vm27, %v135, 0
  %168 = vmatprep.subr.bf16.mxu0 0
  %169 = vmatpush1.bf16.msra.mxu0 0
  %170 = vmatprep.subr.bf16.mxu0 0
  %171 = vmatpush1.bf16.msra.mxu0 0
  %172 = vmatprep.subr.bf16.mxu0 0
  %173 = vmatpush1.bf16.msra.mxu0 0
  %174 = vmatprep.subr.bf16.mxu0 0
  %175 = vmatpush1.bf16.msra.mxu0 0
  %176 = vmatprep.subr.bf16.mxu0 0
  %177 = vmatpush1.bf16.msra.mxu0 0
  %178 = vmatprep.subr.bf16.mxu0 0
  %179 = vmatpush1.bf16.msra.mxu0 0
  %180 = vmatprep.subr.bf16.mxu0 0
  %181 = vmatpush1.bf16.msra.mxu0 %v156
  %182 = vmatprep.subr.bf16.mxu0 0
  %183 = vmatpush1.bf16.msra.mxu0 %v155
  %184 = vmatprep.subr.bf16.mxu0 0
  %185 = vmatpush2.bf16.msra.mxu0 0
  %186 = vmatprep.subr.bf16.mxu0 0
  %187 = vmatpush2.bf16.msra.mxu0 0
  %188 = vmatprep.subr.bf16.mxu0 0
  %189 = vmatpush2.bf16.msra.mxu0 0
  %190 = vmatprep.subr.bf16.mxu0 0
  %191 = vmatpush2.bf16.msra.mxu0 0
  %192 = vmatprep.subr.bf16.mxu0 0
  %193 = vmatpush2.bf16.msra.mxu0 0
  %194 = vmatprep.subr.bf16.mxu0 0
  %195 = vmatpush2.bf16.msra.mxu0 0
  %196 = vmatprep.subr.bf16.mxu0 0
  %197 = vmatpush2.bf16.msra.mxu0 0
  %198 = vmatprep.subr.bf16.mxu0 0
  %199 = vmatpush2.bf16.msra.mxu0 0
  %200 = vmatprep.mubr.bf16.mxu0 0
  %201 = vmatmul.mubr.bf16.gmra.mxu0 %v160
  %v202 = vpop.f32.mrf.mxu0
  %v203 = vadd.f32 %v145, %v202
  %v204 = vpop.f32.mrf.mxu0
  %v205 = vpop.f32.mrf.mxu0
  %v206 = vadd.f32 %v145, %v205
  %v207 = vpop.f32.mrf.mxu0
  %208 = vmatprep.mubr.bf16.mxu0 0
  %209 = vmatmul.mubr.bf16.gmra.mxu0 %v163
  %v210 = vpop.f32.mrf.mxu0
  %v211 = vadd.f32 %v145, %v210
  %v212 = vpop.f32.mrf.mxu0
  %v213 = vpop.f32.mrf.mxu0
  %v214 = vadd.f32 %v145, %v213
  %v215 = vpop.f32.mrf.mxu0
  %216 = vmatprep.mubr.bf16.mxu0 0
  %217 = vmatmul.mubr.bf16.gmra.mxu0 %v166
  %v218 = vpop.f32.mrf.mxu0
  %v219 = vadd.f32 %v145, %v218
  %v220 = vpop.f32.mrf.mxu0
  %v221 = vpop.f32.mrf.mxu0
  %v222 = vadd.f32 %v145, %v221
  %v223 = vpop.f32.mrf.mxu0
  %224 = vdwg.mxu0
  %v225 = vmul.f32 %v203, 0.5
  %v226 = vmul.f32 %v206, 0.5
  %v227 = vmul.f32 %v211, 0.5
  %v228 = vmul.f32 %v214, 0.5
  %v229 = vmul.f32 %v219, 0.5
  %v230 = vmul.f32 %v222, 0.5
  %v231 = vmul.f32 %v203, 0.70710677
  %v232 = vmul.f32 %v206, 0.70710677
  %v233 = vmul.f32 %v211, 0.70710677
  %v234 = vmul.f32 %v214, 0.70710677
  %v235 = vmul.f32 %v219, 0.70710677
  %v236 = vmul.f32 %v222, 0.70710677
  %v237 = verf.f32.pop %v231
  %v238 = verf.f32.pop %v232
  %v239 = verf.f32.pop %v233
  %v240 = verf.f32.pop %v234
  %v241 = verf.f32.pop %v235
  %v242 = verf.f32.pop %v236
  %v243 = vadd.f32 %v237, 1.0
  %v244 = vadd.f32 %v238, 1.0
  %v245 = vadd.f32 %v239, 1.0
  %v246 = vadd.f32 %v240, 1.0
  %v247 = vadd.f32 %v241, 1.0
  %v248 = vadd.f32 %v242, 1.0
  %v249 = vmul.f32 %v225, %v243
  %v250 = vmul.f32 %v226, %v244
  %v251 = vmul.f32 %v227, %v245
  %v252 = vmul.f32 %v228, %v246
  %v253 = vmul.f32 %v229, %v247
  %v254 = vmul.f32 %v230, %v248
  %vm255 = vcmask 523264
  %256 = vst.msk [vmem:[%s5] sm:$0xff] %vm255, %v249
  %257 = vst.msk [vmem:[%s5 + $0x8] sm:$0xff] %vm255, %v250
  %258 = vst.msk [vmem:[%s5 + $0x10] sm:$0xff] %vm255, %v251
  %259 = vst.msk [vmem:[%s5 + $0x18] sm:$0xff] %vm255, %v252
  %260 = vst.msk [vmem:[%s5 + $0x20] sm:$0xff] %vm255, %v253
  %261 = vst.msk [vmem:[%s5 + $0x28] sm:$0xff] %vm255, %v254
  // Predicated region
  $region22: #{vit_forward.14} parent=0 // pred_check
    _
  $region23: #{vit_forward.14} parent=0 // pred_check_branch
    %263 = sbr.rel (0) target = $region25
  $region24: #{vit_forward.14} parent=0 // pred_region
    _
  $region25: #{vit_forward.14} parent=0 // pred_fallthru
    _
  // Predicated region
  $region26: #{vit_forward.14} parent=0 // pred_check
    _
  $region27: #{vit_forward.14} parent=0 // pred_check_branch
    %265 = sbr.rel (0) target = $region29
  $region28: #{vit_forward.14} parent=0 // pred_region
    _
  $region29: #{vit_forward.14} parent=0 // pred_fallthru
    _

// kernel: vit_forward.13
$region0: #{vit_forward.13}
  #allocation0 [shape = 'u32[]', space=smem, size = 0x4, offset = 0x4, fixed_abs, tag = 'smem constant byte address 0x4 - core index']
  #allocation1 [shape = 'u32[144,128]{1,0:T(1,128)}', space=vmem, size = 0x12000, scoped, tag = 'internal scratch']
  %s0 = inlined_call_operand.vmem [shape: f32[2,24,96], index: 0, kind: input, shape index: {}]
  %s1 = inlined_call_operand.vmem [shape: bf16[32,32], index: 1, kind: input, shape index: {}]
  %s2 = inlined_call_operand.vmem [shape: f32[1,32], index: 2, kind: input, shape index: {}]
  %s3 = inlined_call_operand.vmem [shape: f32[2,24,32], index: 3, kind: input, shape index: {}]
  %s4 = inlined_call_operand.vmem [shape: f32[2,24,32], index: 4, kind: output, shape index: {}]
  %s5 = sld [smem:[#allocation0]]
  $region49: #{vit_forward.13} parent=0
    _
  %s7 = ssub.s32 1, %s5
  %s8 = scalar_select 0, %s7, %s5
  loop: start=0, step=1, limit=4
  $region2: #{vit_forward.13} parent=0 // loop_pre_header
    _
  $region3: #{vit_forward.13} parent=0 // loop_header
    %s10 = sphi 0, %s14
    %p11 = scmp.ge.s32.totalorder %s10, 4
    %s20 = sphi 0, %s22
    %s23 = sphi 0, %s20
    %s24 = sphi 0, %s23
    %s40 = sphi 0, %s24
    %s44 = sphi 0, %s44
    %s46 = sphi 0, %s44
    %s47 = sphi 0, %s46
    %s61 = sphi 0, %s47
    %s65 = sphi 0, %s65
    %s67 = sphi 0, %s65
    %s68 = sphi 0, %s67
    %s82 = sphi 0, %s68
    %s88 = sphi 0, %s90
    %s91 = sphi 0, %s88
    %s92 = sphi 0, %s91
    %s108 = sphi 0, %s92
    %s114 = sphi 0, %s116
    %s117 = sphi 0, %s114
    %s118 = sphi 0, %s117
    %s134 = sphi 0, %s118
  $region4: #{vit_forward.13} parent=0 // loop_header_branch
    %13 = sbr.rel (%p11) target = $region8
  $region5: #{vit_forward.13} parent=0 // loop_body
    %s15 = ssub.s32 %s10, 1
    %s16 = ssub.s32 %s10, 2
    %s17 = sadd.s32 %s10, 1
    %s18 = ssub.s32 %s10, %s17
    %p19 = scmp.eq.s32.totalorder %s18, 0
    %s21 = sadd.s32 %s20, 1
    %s22 = scalar_select %p19, %s20, %s21
    %p25 = pneg %p19
    %p26 = scmp.eq.s32.totalorder %s10, 1
    %p27 = por %p25, %p26
    %p28 = scmp.ne.s32.totalorder %s20, %s23
    %p29 = scmp.eq.s32.totalorder %s10, 0
    %p30 = por %p28, %p29
    %p31 = scmp.ne.s32.totalorder %s20, %s23
    %p32 = scmp.eq.s32.totalorder %s15, 1
    %p33 = por %p31, %p32
    %p34 = scmp.ne.s32.totalorder %s23, %s24
    %p35 = scmp.eq.s32.totalorder %s15, 0
    %p36 = por %p34, %p35
    %p37 = scmp.ne.s32.totalorder %s23, %s24
    %p38 = scmp.eq.s32.totalorder %s16, 1
    %p39 = por %p37, %p38
    %p41 = scmp.ne.s32.totalorder %s24, %s40
    %p42 = scmp.eq.s32.totalorder %s16, 0
    %p43 = por %p41, %p42
    %s45 = sadd.s32 %s44, 1
    %p48 = scmp.eq.s32.totalorder %s10, 1
    %p49 = scmp.ne.s32.totalorder %s44, %s46
    %p50 = scmp.eq.s32.totalorder %s10, 0
    %p51 = por %p49, %p50
    %p52 = scmp.ne.s32.totalorder %s44, %s46
    %p53 = scmp.eq.s32.totalorder %s15, 1
    %p54 = por %p52, %p53
    %p55 = scmp.ne.s32.totalorder %s46, %s47
    %p56 = scmp.eq.s32.totalorder %s15, 0
    %p57 = por %p55, %p56
    %p58 = scmp.ne.s32.totalorder %s46, %s47
    %p59 = scmp.eq.s32.totalorder %s16, 1
    %p60 = por %p58, %p59
    %p62 = scmp.ne.s32.totalorder %s47, %s61
    %p63 = scmp.eq.s32.totalorder %s16, 0
    %p64 = por %p62, %p63
    %s66 = sadd.s32 %s65, 1
    %p69 = scmp.eq.s32.totalorder %s10, 1
    %p70 = scmp.ne.s32.totalorder %s65, %s67
    %p71 = scmp.eq.s32.totalorder %s10, 0
    %p72 = por %p70, %p71
    %p73 = scmp.ne.s32.totalorder %s65, %s67
    %p74 = scmp.eq.s32.totalorder %s15, 1
    %p75 = por %p73, %p74
    %p76 = scmp.ne.s32.totalorder %s67, %s68
    %p77 = scmp.eq.s32.totalorder %s15, 0
    %p78 = por %p76, %p77
    %p79 = scmp.ne.s32.totalorder %s67, %s68
    %p80 = scmp.eq.s32.totalorder %s16, 1
    %p81 = por %p79, %p80
    %p83 = scmp.ne.s32.totalorder %s68, %s82
    %p84 = scmp.eq.s32.totalorder %s16, 0
    %p85 = por %p83, %p84
    %s86 = ssub.s32 %s10, %s17
    %p87 = scmp.eq.s32.totalorder %s86, 0
    %s89 = sadd.s32 %s88, 1
    %s90 = scalar_select %p87, %s88, %s89
    %p93 = pneg %p87
    %p94 = scmp.eq.s32.totalorder %s10, 1
    %p95 = por %p93, %p94
    %p96 = scmp.ne.s32.totalorder %s88, %s91
    %p97 = scmp.eq.s32.totalorder %s10, 0
    %p98 = por %p96, %p97
    %p99 = scmp.ne.s32.totalorder %s88, %s91
    %p100 = scmp.eq.s32.totalorder %s15, 1
    %p101 = por %p99, %p100
    %p102 = scmp.ne.s32.totalorder %s91, %s92
    %p103 = scmp.eq.s32.totalorder %s15, 0
    %p104 = por %p102, %p103
    %p105 = scmp.ne.s32.totalorder %s91, %s92
    %p106 = scmp.eq.s32.totalorder %s16, 1
    %p107 = por %p105, %p106
    %p109 = scmp.ne.s32.totalorder %s92, %s108
    %p110 = scmp.eq.s32.totalorder %s16, 0
    %p111 = por %p109, %p110
    %s112 = ssub.s32 %s10, %s17
    %p113 = scmp.eq.s32.totalorder %s112, 0
    %s115 = sadd.s32 %s114, 1
    %s116 = scalar_select %p113, %s114, %s115
    %p119 = pneg %p113
    %p120 = scmp.eq.s32.totalorder %s10, 1
    %p121 = por %p119, %p120
    %p122 = scmp.ne.s32.totalorder %s114, %s117
    %p123 = scmp.eq.s32.totalorder %s10, 0
    %p124 = por %p122, %p123
    %p125 = scmp.ne.s32.totalorder %s114, %s117
    %p126 = scmp.eq.s32.totalorder %s15, 1
    %p127 = por %p125, %p126
    %p128 = scmp.ne.s32.totalorder %s117, %s118
    %p129 = scmp.eq.s32.totalorder %s15, 0
    %p130 = por %p128, %p129
    %p131 = scmp.ne.s32.totalorder %s117, %s118
    %p132 = scmp.eq.s32.totalorder %s16, 1
    %p133 = por %p131, %p132
    %p135 = scmp.ne.s32.totalorder %s118, %s134
    %p136 = scmp.eq.s32.totalorder %s16, 0
    %p137 = por %p135, %p136
    %p138 = scmp.le.s32.totalorder 1, %s10
    %p139 = scmp.lt.s32.totalorder %s10, 3
    %p140 = pnand %p138, %p139
    %p141 = pneg %p140
    // Predicated region
    $region9: #{vit_forward.13} parent=5 // pred_check
      _
    $region10: #{vit_forward.13} parent=5 // pred_check_branch
      %143 = sbr.rel (%p140) target = $region12
    $region11: #{vit_forward.13} parent=5 // pred_region
      %s144 = ssub.s32 %s10, 1
      // Predicated region
      $region13: #{vit_forward.13} parent=11 // pred_check
        %p145 = pneg %p57
      $region14: #{vit_forward.13} parent=11 // pred_check_branch
        %147 = sbr.rel (%p145) target = $region16
      $region15: #{vit_forward.13} parent=11 // pred_region
        _
      $region16: #{vit_forward.13} parent=11 // pred_fallthru
        _
      // Predicated region
      $region17: #{vit_forward.13} parent=11 // pred_check
        %p148 = pneg %p78
      $region18: #{vit_forward.13} parent=11 // pred_check_branch
        %150 = sbr.rel (%p148) target = $region20
      $region19: #{vit_forward.13} parent=11 // pred_region
        _
      $region20: #{vit_forward.13} parent=11 // pred_fallthru
        _
    $region12: #{vit_forward.13} parent=5 // pred_fallthru
      _
    %p151 = scmp.lt.s32.totalorder %s10, 2
    // Predicated region
    $region21: #{vit_forward.13} parent=5 // pred_check
      %p152 = pneg %p151
    $region22: #{vit_forward.13} parent=5 // pred_check_branch
      %154 = sbr.rel (%p152) target = $region24
    $region23: #{vit_forward.13} parent=5 // pred_region
      // Predicated region
      $region25: #{vit_forward.13} parent=23 // pred_check
        %p155 = pneg %p30
      $region26: #{vit_forward.13} parent=23 // pred_check_branch
        %157 = sbr.rel (%p155) target = $region28
      $region27: #{vit_forward.13} parent=23 // pred_region
        %p158 = scmp.lt.s32.totalorder %s10, 1
        %s159 = scalar_select %p158, %s10, 1
        %s160 = smul.addr %s159, 3
        %s161 = smul.addr %s160, 8
        %s162 = scalar_lea.vmem %s0, %s161
      $region28: #{vit_forward.13} parent=23 // pred_fallthru
        _
      // Predicated region
      $region29: #{vit_forward.13} parent=23 // pred_check
        %p163 = pneg %p98
      $region30: #{vit_forward.13} parent=23 // pred_check_branch
        %165 = sbr.rel (%p163) target = $region32
      $region31: #{vit_forward.13} parent=23 // pred_region
        %p166 = scmp.lt.s32.totalorder %s10, 1
        %s167 = scalar_select %p166, %s10, 1
        %s168 = smul.addr %s167, 3
        %s169 = smul.addr %s168, 8
        %s170 = scalar_lea.vmem %s3, %s169
      $region32: #{vit_forward.13} parent=23 // pred_fallthru
        _
    $region24: #{vit_forward.13} parent=5 // pred_fallthru
      _
    %p171 = scmp.le.s32.totalorder 1, %s10
    %p172 = scmp.lt.s32.totalorder %s10, 3
    %p173 = pnand %p171, %p172
    %p174 = pneg %p173
    // Predicated region
    $region33: #{vit_forward.13} parent=5 // pred_check
      _
    $region34: #{vit_forward.13} parent=5 // pred_check_branch
      %176 = sbr.rel (%p173) target = $region36
    $region35: #{vit_forward.13} parent=5 // pred_region
      %s177 = ssub.s32 %s10, 1
      %p178 = scmp.lt.s32.totalorder %s15, 1
      %s179 = scalar_select %p178, %s15, 1
      %s180 = smul.addr %s179, 3
      %s181 = smul.addr %s180, 8
      %s182 = scalar_lea.vmem %s0, %s181
      %p183 = pneg %p36
      %p184 = pneg %p33
      %p185 = pneg %p57
      %p186 = pneg %p54
      %p187 = pneg %p78
      %p188 = pneg %p75
      %p189 = scmp.lt.s32.totalorder %s15, 1
      %s190 = scalar_select %p189, %s15, 1
      %s191 = smul.addr %s190, 3
      %s192 = smul.addr %s191, 8
      %s193 = scalar_lea.vmem %s3, %s192
      %p194 = pneg %p104
      %p195 = pneg %p101
      %p196 = pneg %p130
      %p197 = pneg %p127
      %p198 = scmp.lt.s32.totalorder %s15, 1
      %s199 = scalar_select %p198, %s15, 1
      %s200 = smul.addr %s199, 3
      %s201 = smul.addr %s200, 8
      %s202 = scalar_lea.vmem %s4, %s201
      %p203 = scmp.lt.s32.totalorder %s15, 1
      %s204 = scalar_select %p203, %s15, 1
      %s205 = smul.addr %s204, 3
      %s206 = smul.addr %s205, 8
      %s207 = scalar_lea.vmem %s0, %s206
      %p208 = scmp.lt.s32.totalorder %s15, 1
      %s209 = scalar_select %p208, %s15, 1
      %s210 = smul.addr %s209, 3
      %s211 = smul.addr %s210, 8
      %s212 = scalar_lea.vmem %s3, %s211
      %p213 = scmp.lt.s32.totalorder %s15, 1
      %s214 = scalar_select %p213, %s15, 1
      %s215 = smul.addr %s214, 3
      %s216 = smul.addr %s215, 8
      %s217 = scalar_lea.vmem %s4, %s216
      %v219 = vld [vmem:[%s207] sm:$0xff]
      %v220 = vld [vmem:[%s207 + $0x8] sm:$0xff]
      %v221 = vld [vmem:[%s207 + $0x10] sm:$0xff]
      %v222 = vlaneseq
      %v223 = vand.u32 %v222, 127
      %vm224 = vcmp.lt.s32.totalorder %v223, 17
      %v225 = vpack.c.bf16 %v220, %v219
      %v226 = vpack.c.bf16 %v221, %v221
      %229 = vrot.lane.b32.xlu0 %v225, 96
      %v230 = vpop.permute.xlu0 %229
      %231 = vrot.lane.b32.xlu0 %v226, 96
      %v232 = vpop.permute.xlu0 %231
      %vm233 = vcmask 64512
      %v235 = vsel %vm233, %v225, 0
      %v238 = vsel %vm233, %v226, 0
      %v241 = vsel %vm233, %v230, 0
      %v244 = vsel %vm233, %v232, 0
      %246 = vmatprep.subr.bf16.mxu0 0
      %247 = vmatpush1.bf16.xpose.msra.mxu0 0
      %248 = vmatprep.subr.bf16.mxu0 0
      %249 = vmatpush1.bf16.xpose.msra.mxu0 0
      %250 = vmatprep.subr.bf16.mxu0 0
      %251 = vmatpush1.bf16.xpose.msra.mxu0 0
      %252 = vmatprep.subr.bf16.mxu0 0
      %253 = vmatpush1.bf16.xpose.msra.mxu0 0
      %254 = vmatprep.subr.bf16.mxu0 0
      %255 = vmatpush1.bf16.xpose.msra.mxu0 0
      %256 = vmatprep.subr.bf16.mxu0 0
      %257 = vmatpush1.bf16.xpose.msra.mxu0 0
      %258 = vmatprep.subr.bf16.mxu0 0
      %259 = vmatpush1.bf16.xpose.msra.mxu0 %v244
      %260 = vmatprep.subr.bf16.mxu0 0
      %261 = vmatpush1.bf16.xpose.msra.mxu0 %v241
      %262 = vmatprep.subr.bf16.mxu0 0
      %263 = vmatpush2.bf16.xpose.msra.mxu0 0
      %264 = vmatprep.subr.bf16.mxu0 0
      %265 = vmatpush2.bf16.xpose.msra.mxu0 0
      %266 = vmatprep.subr.bf16.mxu0 0
      %267 = vmatpush2.bf16.xpose.msra.mxu0 0
      %268 = vmatprep.subr.bf16.mxu0 0
      %269 = vmatpush2.bf16.xpose.msra.mxu0 0
      %270 = vmatprep.subr.bf16.mxu0 0
      %271 = vmatpush2.bf16.xpose.msra.mxu0 0
      %272 = vmatprep.subr.bf16.mxu0 0
      %273 = vmatpush2.bf16.xpose.msra.mxu0 0
      %274 = vmatprep.subr.bf16.mxu0 0
      %275 = vmatpush2.bf16.xpose.msra.mxu0 0
      %276 = vmatprep.subr.bf16.mxu0 0
      %277 = vmatpush2.bf16.xpose.msra.mxu0 0
      %278 = vmatprep.mubr.bf16.mxu0 0
      %279 = vmatmul.mubr.bf16.gmra.mxu0 %v235
      %v280 = vpop.f32.mrf.mxu0
      %v281 = vadd.f32 0.0, %v280
      %v282 = vpop.f32.mrf.mxu0
      %v283 = vpop.f32.mrf.mxu0
      %v284 = vadd.f32 0.0, %v283
      %v285 = vpop.f32.mrf.mxu0
      %286 = vmatprep.mubr.bf16.mxu0 0
      %287 = vmatmul.mubr.bf16.gmra.mxu0 %v238
      %v288 = vpop.f32.mrf.mxu0
      %v289 = vadd.f32 0.0, %v288
      %v290 = vpop.f32.mrf.mxu0
      %v291 = vpop.f32.mrf.mxu0
      %v292 = vpop.f32.mrf.mxu0
      %293 = vdwg.mxu0
      %v294 = vmul.f32 %v281, 0.35355338
      %v295 = vmul.f32 %v284, 0.35355338
      %v296 = vmul.f32 %v289, 0.35355338
      %v297 = vsel %vm224, %v294, -1e+30
      %v298 = vsel %vm224, %v295, -1e+30
      %v299 = vsel %vm224, %v296, -1e+30
      %vm300 = vcmask 195584
      %v301 = vsel %vm300, %v297, -inf
      %302 = vmax.xlane.f32.xlu0 %v301
      %v303 = vpop.xlane.xlu0 %302
      %v304 = vsel %vm300, %v298, -inf
      %305 = vmax.xlane.f32.xlu0 %v304
      %v306 = vpop.xlane.xlu0 %305
      %v307 = vsel %vm300, %v299, -inf
      %308 = vmax.xlane.f32.xlu0 %v307
      %v309 = vpop.xlane.xlu0 %308
      %v310 = vsub.f32 %v297, %v303
      %v311 = vsub.f32 %v298, %v306
      %v312 = vsub.f32 %v299, %v309
      %v313 = vmul.f32 %v310, 1.442695
      %v314 = vpow.pop %v313
      %v315 = vmul.f32 %v311, 1.442695
      %v316 = vpow.pop %v315
      %v317 = vmul.f32 %v312, 1.442695
      %v318 = vpow.pop %v317
      %v319 = vsel %vm300, %v314, 0.0
      %320 = vadd.xlane.f32.xlu0 %v319
      %v321 = vpop.xlane.xlu0 %320
      %v322 = vsel %vm300, %v316, 0.0
      %323 = vadd.xlane.f32.xlu0 %v322
      %v324 = vpop.xlane.xlu0 %323
      %v325 = vsel %vm300, %v318, 0.0
      %326 = vadd.xlane.f32.xlu0 %v325
      %v327 = vpop.xlane.xlu0 %326
      %v328 = vrcp.pop %v321
      %v329 = vrcp.pop %v324
      %v330 = vrcp.pop %v327
      %v331 = vmul.f32 %v314, %v328
      %v332 = vmul.f32 %v316, %v329
      %v333 = vmul.f32 %v318, %v330
      %v334 = vpack.c.bf16 %v332, %v331
      %v335 = vpack.c.bf16 %v333, %v333
      %336 = vrot.lane.b32.xlu0 %v225, 64
      %v337 = vpop.permute.xlu0 %336
      %338 = vrot.lane.b32.xlu0 %v226, 64
      %v339 = vpop.permute.xlu0 %338
      %v342 = vsel %vm300, %v334, 0
      %v345 = vsel %vm300, %v335, 0
      %vm347 = vcmask 1043456
      %v349 = vsel %vm347, %v339, 0
      %351 = vmatprep.subr.bf16.mxu0 0
      %352 = vmatpush1.bf16.msra.mxu0 0
      %353 = vmatprep.subr.bf16.mxu0 0
      %354 = vmatpush1.bf16.msra.mxu0 0
      %355 = vmatprep.subr.bf16.mxu0 0
      %356 = vmatpush1.bf16.msra.mxu0 0
      %357 = vmatprep.subr.bf16.mxu0 0
      %358 = vmatpush1.bf16.msra.mxu0 0
      %359 = vmatprep.subr.bf16.mxu0 0
      %360 = vmatpush1.bf16.msra.mxu0 0
      %361 = vmatprep.subr.bf16.mxu0 0
      %362 = vmatpush1.bf16.msra.mxu0 0
      %363 = vmatprep.subr.bf16.mxu0 0
      %364 = vmatpush1.bf16.msra.mxu0 %v349
      %365 = vmatprep.subr.bf16.mxu0 0
      %366 = vmatpush1.bf16.msra.mxu0 %v337
      %367 = vmatprep.subr.bf16.mxu0 0
      %368 = vmatpush2.bf16.msra.mxu0 0
      %369 = vmatprep.subr.bf16.mxu0 0
      %370 = vmatpush2.bf16.msra.mxu0 0
      %371 = vmatprep.subr.bf16.mxu0 0
      %372 = vmatpush2.bf16.msra.mxu0 0
      %373 = vmatprep.subr.bf16.mxu0 0
      %374 = vmatpush2.bf16.msra.mxu0 0
      %375 = vmatprep.subr.bf16.mxu0 0
      %376 = vmatpush2.bf16.msra.mxu0 0
      %377 = vmatprep.subr.bf16.mxu0 0
      %378 = vmatpush2.bf16.msra.mxu0 0
      %379 = vmatprep.subr.bf16.mxu0 0
      %380 = vmatpush2.bf16.msra.mxu0 0
      %381 = vmatprep.subr.bf16.mxu0 0
      %382 = vmatpush2.bf16.msra.mxu0 0
      %383 = vmatprep.mubr.bf16.mxu0 0
      %384 = vmatmul.mubr.bf16.gmra.mxu0 %v342
      %v385 = vpop.f32.mrf.mxu0
      %v386 = vadd.f32 0.0, %v385
      %v387 = vpop.f32.mrf.mxu0
      %v388 = vpop.f32.mrf.mxu0
      %v389 = vadd.f32 0.0, %v388
      %v390 = vpop.f32.mrf.mxu0
      %391 = vmatprep.mubr.bf16.mxu0 0
      %392 = vmatmul.mubr.bf16.gmra.mxu0 %v345
      %v393 = vpop.f32.mrf.mxu0
      %v394 = vadd.f32 0.0, %v393
      %v395 = vpop.f32.mrf.mxu0
      %v396 = vpop.f32.mrf.mxu0
      %v397 = vpop.f32.mrf.mxu0
      %398 = vdwg.mxu0
      %399 = vrot.lane.b32.xlu0 %v225, 120
      %v400 = vpop.permute.xlu0 %399
      %401 = vrot.lane.b32.xlu0 %v226, 120
      %v402 = vpop.permute.xlu0 %401
      %403 = vrot.lane.b32.xlu0 %v225, 88
      %v404 = vpop.permute.xlu0 %403
      %405 = vrot.lane.b32.xlu0 %v226, 88
      %v406 = vpop.permute.xlu0 %405
      %v408 = vsel %vm233, %v400, 0
      %v411 = vsel %vm233, %v402, 0
      %v414 = vsel %vm233, %v404, 0
      %v417 = vsel %vm233, %v406, 0
      %419 = vmatprep.subr.bf16.mxu0 0
      %420 = vmatpush1.bf16.xpose.msra.mxu0 0
      %421 = vmatprep.subr.bf16.mxu0 0
      %422 = vmatpush1.bf16.xpose.msra.mxu0 0
      %423 = vmatprep.subr.bf16.mxu0 0
      %424 = vmatpush1.bf16.xpose.msra.mxu0 0
      %425 = vmatprep.subr.bf16.mxu0 0
      %426 = vmatpush1.bf16.xpose.msra.mxu0 0
      %427 = vmatprep.subr.bf16.mxu0 0
      %428 = vmatpush1.bf16.xpose.msra.mxu0 0
      %429 = vmatprep.subr.bf16.mxu0 0
      %430 = vmatpush1.bf16.xpose.msra.mxu0 0
      %431 = vmatprep.subr.bf16.mxu0 0
      %432 = vmatpush1.bf16.xpose.msra.mxu0 %v417
      %433 = vmatprep.subr.bf16.mxu0 0
      %434 = vmatpush1.bf16.xpose.msra.mxu0 %v414
      %435 = vmatprep.subr.bf16.mxu0 0
      %436 = vmatpush2.bf16.xpose.msra.mxu0 0
      %437 = vmatprep.subr.bf16.mxu0 0
      %438 = vmatpush2.bf16.xpose.msra.mxu0 0
      %439 = vmatprep.subr.bf16.mxu0 0
      %440 = vmatpush2.bf16.xpose.msra.mxu0 0
      %441 = vmatprep.subr.bf16.mxu0 0
      %442 = vmatpush2.bf16.xpose.msra.mxu0 0
      %443 = vmatprep.subr.bf16.mxu0 0
      %444 = vmatpush2.bf16.xpose.msra.mxu0 0
      %445 = vmatprep.subr.bf16.mxu0 0
      %446 = vmatpush2.bf16.xpose.msra.mxu0 0
      %447 = vmatprep.subr.bf16.mxu0 0
      %448 = vmatpush2.bf16.xpose.msra.mxu0 0
      %449 = vmatprep.subr.bf16.mxu0 0
      %450 = vmatpush2.bf16.xpose.msra.mxu0 0
      %451 = vmatprep.mubr.bf16.mxu0 0
      %452 = vmatmul.mubr.bf16.gmra.mxu0 %v408
      %v453 = vpop.f32.mrf.mxu0
      %v454 = vadd.f32 0.0, %v453
      %v455 = vpop.f32.mrf.mxu0
      %v456 = vpop.f32.mrf.mxu0
      %v457 = vadd.f32 0.0, %v456
      %v458 = vpop.f32.mrf.mxu0
      %459 = vmatprep.mubr.bf16.mxu0 0
      %460 = vmatmul.mubr.bf16.gmra.mxu0 %v411
      %v461 = vpop.f32.mrf.mxu0
      %v462 = vadd.f32 0.0, %v461
      %v463 = vpop.f32.mrf.mxu0
      %v464 = vpop.f32.mrf.mxu0
      %v465 = vpop.f32.mrf.mxu0
      %466 = vdwg.mxu0
      %v467 = vmul.f32 %v454, 0.35355338
      %v468 = vmul.f32 %v457, 0.35355338
      %v469 = vmul.f32 %v462, 0.35355338
      %v470 = vsel %vm224, %v467, -1e+30
      %v471 = vsel %vm224, %v468, -1e+30
      %v472 = vsel %vm224, %v469, -1e+30
      %v473 = vsel %vm300, %v470, -inf
      %474 = vmax.xlane.f32.xlu0 %v473
      %v475 = vpop.xlane.xlu0 %474
      %v476 = vsel %vm300, %v471, -inf
      %477 = vmax.xlane.f32.xlu0 %v476
      %v478 = vpop.xlane.xlu0 %477
      %v479 = vsel %vm300, %v472, -inf
      %480 = vmax.xlane.f32.xlu0 %v479
      %v481 = vpop.xlane.xlu0 %480
      %v482 = vsub.f32 %v470, %v475
      %v483 = vsub.f32 %v471, %v478
      %v484 = vsub.f32 %v472, %v481
      %v485 = vmul.f32 %v482, 1.442695
      %v486 = vpow.pop %v485
      %v487 = vmul.f32 %v483, 1.442695
      %v488 = vpow.pop %v487
      %v489 = vmul.f32 %v484, 1.442695
      %v490 = vpow.pop %v489
      %v491 = vsel %vm300, %v486, 0.0
      %492 = vadd.xlane.f32.xlu0 %v491
      %v493 = vpop.xlane.xlu0 %492
      %v494 = vsel %vm300, %v488, 0.0
      %495 = vadd.xlane.f32.xlu0 %v494
      %v496 = vpop.xlane.xlu0 %495
      %v497 = vsel %vm300, %v490, 0.0
      %498 = vadd.xlane.f32.xlu0 %v497
      %v499 = vpop.xlane.xlu0 %498
      %v500 = vrcp.pop %v493
      %v501 = vrcp.pop %v496
      %v502 = vrcp.pop %v499
      %v503 = vmul.f32 %v486, %v500
      %v504 = vmul.f32 %v488, %v501
      %v505 = vmul.f32 %v490, %v502
      %v506 = vpack.c.bf16 %v504, %v503
      %v507 = vpack.c.bf16 %v505, %v505
      %508 = vrot.lane.b32.xlu0 %v225, 56
      %v509 = vpop.permute.xlu0 %508
      %510 = vrot.lane.b32.xlu0 %v226, 56
      %v511 = vpop.permute.xlu0 %510
      %v514 = vsel %vm300, %v506, 0
      %v517 = vsel %vm300, %v507, 0
      %v520 = vsel %vm347, %v511, 0
      %522 = vmatprep.subr.bf16.mxu0 0
      %523 = vmatpush1.bf16.msra.mxu0 0
      %524 = vmatprep.subr.bf16.mxu0 0
      %525 = vmatpush1.bf16.msra.mxu0 0
      %526 = vmatprep.subr.bf16.mxu0 0
      %527 = vmatpush1.bf16.msra.mxu0 0
      %528 = vmatprep.subr.bf16.mxu0 0
      %529 = vmatpush1.bf16.msra.mxu0 0
      %530 = vmatprep.subr.bf16.mxu0 0
      %531 = vmatpush1.bf16.msra.mxu0 0
      %532 = vmatprep.subr.bf16.mxu0 0
      %533 = vmatpush1.bf16.msra.mxu0 0
      %534 = vmatprep.subr.bf16.mxu0 0
      %535 = vmatpush1.bf16.msra.mxu0 %v520
      %536 = vmatprep.subr.bf16.mxu0 0
      %537 = vmatpush1.bf16.msra.mxu0 %v509
      %538 = vmatprep.subr.bf16.mxu0 0
      %539 = vmatpush2.bf16.msra.mxu0 0
      %540 = vmatprep.subr.bf16.mxu0 0
      %541 = vmatpush2.bf16.msra.mxu0 0
      %542 = vmatprep.subr.bf16.mxu0 0
      %543 = vmatpush2.bf16.msra.mxu0 0
      %544 = vmatprep.subr.bf16.mxu0 0
      %545 = vmatpush2.bf16.msra.mxu0 0
      %546 = vmatprep.subr.bf16.mxu0 0
      %547 = vmatpush2.bf16.msra.mxu0 0
      %548 = vmatprep.subr.bf16.mxu0 0
      %549 = vmatpush2.bf16.msra.mxu0 0
      %550 = vmatprep.subr.bf16.mxu0 0
      %551 = vmatpush2.bf16.msra.mxu0 0
      %552 = vmatprep.subr.bf16.mxu0 0
      %553 = vmatpush2.bf16.msra.mxu0 0
      %554 = vmatprep.mubr.bf16.mxu0 0
      %555 = vmatmul.mubr.bf16.gmra.mxu0 %v514
      %v556 = vpop.f32.mrf.mxu0
      %v557 = vadd.f32 0.0, %v556
      %v558 = vpop.f32.mrf.mxu0
      %v559 = vpop.f32.mrf.mxu0
      %v560 = vadd.f32 0.0, %v559
      %v561 = vpop.f32.mrf.mxu0
      %562 = vmatprep.mubr.bf16.mxu0 0
      %563 = vmatmul.mubr.bf16.gmra.mxu0 %v517
      %v564 = vpop.f32.mrf.mxu0
      %v565 = vadd.f32 0.0, %v564
      %v566 = vpop.f32.mrf.mxu0
      %v567 = vpop.f32.mrf.mxu0
      %v568 = vpop.f32.mrf.mxu0
      %569 = vdwg.mxu0
      %570 = vrot.lane.b32.xlu0 %v225, 112
      %v571 = vpop.permute.xlu0 %570
      %572 = vrot.lane.b32.xlu0 %v226, 112
      %v573 = vpop.permute.xlu0 %572
      %574 = vrot.lane.b32.xlu0 %v225, 80
      %v575 = vpop.permute.xlu0 %574
      %576 = vrot.lane.b32.xlu0 %v226, 80
      %v577 = vpop.permute.xlu0 %576
      %v579 = vsel %vm233, %v571, 0
      %v582 = vsel %vm233, %v573, 0
      %v585 = vsel %vm233, %v575, 0
      %v588 = vsel %vm233, %v577, 0
      %590 = vmatprep.subr.bf16.mxu0 0
      %591 = vmatpush1.bf16.xpose.msra.mxu0 0
      %592 = vmatprep.subr.bf16.mxu0 0
      %593 = vmatpush1.bf16.xpose.msra.mxu0 0
      %594 = vmatprep.subr.bf16.mxu0 0
      %595 = vmatpush1.bf16.xpose.msra.mxu0 0
      %596 = vmatprep.subr.bf16.mxu0 0
      %597 = vmatpush1.bf16.xpose.msra.mxu0 0
      %598 = vmatprep.subr.bf16.mxu0 0
      %599 = vmatpush1.bf16.xpose.msra.mxu0 0
      %600 = vmatprep.subr.bf16.mxu0 0
      %601 = vmatpush1.bf16.xpose.msra.mxu0 0
      %602 = vmatprep.subr.bf16.mxu0 0
      %603 = vmatpush1.bf16.xpose.msra.mxu0 %v588
      %604 = vmatprep.subr.bf16.mxu0 0
      %605 = vmatpush1.bf16.xpose.msra.mxu0 %v585
      %606 = vmatprep.subr.bf16.mxu0 0
      %607 = vmatpush2.bf16.xpose.msra.mxu0 0
      %608 = vmatprep.subr.bf16.mxu0 0
      %609 = vmatpush2.bf16.xpose.msra.mxu0 0
      %610 = vmatprep.subr.bf16.mxu0 0
      %611 = vmatpush2.bf16.xpose.msra.mxu0 0
      %612 = vmatprep.subr.bf16.mxu0 0
      %613 = vmatpush2.bf16.xpose.msra.mxu0 0
      %614 = vmatprep.subr.bf16.mxu0 0
      %615 = vmatpush2.bf16.xpose.msra.mxu0 0
      %616 = vmatprep.subr.bf16.mxu0 0
      %617 = vmatpush2.bf16.xpose.msra.mxu0 0
      %618 = vmatprep.subr.bf16.mxu0 0
      %619 = vmatpush2.bf16.xpose.msra.mxu0 0
      %620 = vmatprep.subr.bf16.mxu0 0
      %621 = vmatpush2.bf16.xpose.msra.mxu0 0
      %622 = vmatprep.mubr.bf16.mxu0 0
      %623 = vmatmul.mubr.bf16.gmra.mxu0 %v579
      %v624 = vpop.f32.mrf.mxu0
      %v625 = vadd.f32 0.0, %v624
      %v626 = vpop.f32.mrf.mxu0
      %v627 = vpop.f32.mrf.mxu0
      %v628 = vadd.f32 0.0, %v627
      %v629 = vpop.f32.mrf.mxu0
      %630 = vmatprep.mubr.bf16.mxu0 0
      %631 = vmatmul.mubr.bf16.gmra.mxu0 %v582
      %v632 = vpop.f32.mrf.mxu0
      %v633 = vadd.f32 0.0, %v632
      %v634 = vpop.f32.mrf.mxu0
      %v635 = vpop.f32.mrf.mxu0
      %v636 = vpop.f32.mrf.mxu0
      %637 = vdwg.mxu0
      %v638 = vmul.f32 %v625, 0.35355338
      %v639 = vmul.f32 %v628, 0.35355338
      %v640 = vmul.f32 %v633, 0.35355338
      %v641 = vsel %vm224, %v638, -1e+30
      %v642 = vsel %vm224, %v639, -1e+30
      %v643 = vsel %vm224, %v640, -1e+30
      %v644 = vsel %vm300, %v641, -inf
      %645 = vmax.xlane.f32.xlu0 %v644
      %v646 = vpop.xlane.xlu0 %645
      %v647 = vsel %vm300, %v642, -inf
      %648 = vmax.xlane.f32.xlu0 %v647
      %v649 = vpop.xlane.xlu0 %648
      %v650 = vsel %vm300, %v643, -inf
      %651 = vmax.xlane.f32.xlu0 %v650
      %v652 = vpop.xlane.xlu0 %651
      %v653 = vsub.f32 %v641, %v646
      %v654 = vsub.f32 %v642, %v649
      %v655 = vsub.f32 %v643, %v652
      %v656 = vmul.f32 %v653, 1.442695
      %v657 = vpow.pop %v656
      %v658 = vmul.f32 %v654, 1.442695
      %v659 = vpow.pop %v658
      %v660 = vmul.f32 %v655, 1.442695
      %v661 = vpow.pop %v660
      %v662 = vsel %vm300, %v657, 0.0
      %663 = vadd.xlane.f32.xlu0 %v662
      %v664 = vpop.xlane.xlu0 %663
      %v665 = vsel %vm300, %v659, 0.0
      %666 = vadd.xlane.f32.xlu0 %v665
      %v667 = vpop.xlane.xlu0 %666
      %v668 = vsel %vm300, %v661, 0.0
      %669 = vadd.xlane.f32.xlu0 %v668
      %v670 = vpop.xlane.xlu0 %669
      %v671 = vrcp.pop %v664
      %v672 = vrcp.pop %v667
      %v673 = vrcp.pop %v670
      %v674 = vmul.f32 %v657, %v671
      %v675 = vmul.f32 %v659, %v672
      %v676 = vmul.f32 %v661, %v673
      %v677 = vpack.c.bf16 %v675, %v674
      %v678 = vpack.c.bf16 %v676, %v676
      %679 = vrot.lane.b32.xlu0 %v225, 48
      %v680 = vpop.permute.xlu0 %679
      %681 = vrot.lane.b32.xlu0 %v226, 48
      %v682 = vpop.permute.xlu0 %681
      %v685 = vsel %vm300, %v677, 0
      %v688 = vsel %vm300, %v678, 0
      %v691 = vsel %vm347, %v682, 0
      %693 = vmatprep.subr.bf16.mxu0 0
      %694 = vmatpush1.bf16.msra.mxu0 0
      %695 = vmatprep.subr.bf16.mxu0 0
      %696 = vmatpush1.bf16.msra.mxu0 0
      %697 = vmatprep.subr.bf16.mxu0 0
      %698 = vmatpush1.bf16.msra.mxu0 0
      %699 = vmatprep.subr.bf16.mxu0 0
      %700 = vmatpush1.bf16.msra.mxu0 0
      %701 = vmatprep.subr.bf16.mxu0 0
      %702 = vmatpush1.bf16.msra.mxu0 0
      %703 = vmatprep.subr.bf16.mxu0 0
      %704 = vmatpush1.bf16.msra.mxu0 0
      %705 = vmatprep.subr.bf16.mxu0 0
      %706 = vmatpush1.bf16.msra.mxu0 %v691
      %707 = vmatprep.subr.bf16.mxu0 0
      %708 = vmatpush1.bf16.msra.mxu0 %v680
      %709 = vmatprep.subr.bf16.mxu0 0
      %710 = vmatpush2.bf16.msra.mxu0 0
      %711 = vmatprep.subr.bf16.mxu0 0
      %712 = vmatpush2.bf16.msra.mxu0 0
      %713 = vmatprep.subr.bf16.mxu0 0
      %714 = vmatpush2.bf16.msra.mxu0 0
      %715 = vmatprep.subr.bf16.mxu0 0
      %716 = vmatpush2.bf16.msra.mxu0 0
      %717 = vmatprep.subr.bf16.mxu0 0
      %718 = vmatpush2.bf16.msra.mxu0 0
      %719 = vmatprep.subr.bf16.mxu0 0
      %720 = vmatpush2.bf16.msra.mxu0 0
      %721 = vmatprep.subr.bf16.mxu0 0
      %722 = vmatpush2.bf16.msra.mxu0 0
      %723 = vmatprep.subr.bf16.mxu0 0
      %724 = vmatpush2.bf16.msra.mxu0 0
      %725 = vmatprep.mubr.bf16.mxu0 0
      %726 = vmatmul.mubr.bf16.gmra.mxu0 %v685
      %v727 = vpop.f32.mrf.mxu0
      %v728 = vadd.f32 0.0, %v727
      %v729 = vpop.f32.mrf.mxu0
      %v730 = vpop.f32.mrf.mxu0
      %v731 = vadd.f32 0.0, %v730
      %v732 = vpop.f32.mrf.mxu0
      %733 = vmatprep.mubr.bf16.mxu0 0
      %734 = vmatmul.mubr.bf16.gmra.mxu0 %v688
      %v735 = vpop.f32.mrf.mxu0
      %v736 = vadd.f32 0.0, %v735
      %v737 = vpop.f32.mrf.mxu0
      %v738 = vpop.f32.mrf.mxu0
      %v739 = vpop.f32.mrf.mxu0
      %740 = vdwg.mxu0
      %741 = vrot.lane.b32.xlu0 %v225, 104
      %v742 = vpop.permute.xlu0 %741
      %743 = vrot.lane.b32.xlu0 %v226, 104
      %v744 = vpop.permute.xlu0 %743
      %745 = vrot.lane.b32.xlu0 %v225, 72
      %v746 = vpop.permute.xlu0 %745
      %747 = vrot.lane.b32.xlu0 %v226, 72
      %v748 = vpop.permute.xlu0 %747
      %v750 = vsel %vm233, %v742, 0
      %v753 = vsel %vm233, %v744, 0
      %v756 = vsel %vm233, %v746, 0
      %v759 = vsel %vm233, %v748, 0
      %761 = vmatprep.subr.bf16.mxu0 0
      %762 = vmatpush1.bf16.xpose.msra.mxu0 0
      %763 = vmatprep.subr.bf16.mxu0 0
      %764 = vmatpush1.bf16.xpose.msra.mxu0 0
      %765 = vmatprep.subr.bf16.mxu0 0
      %766 = vmatpush1.bf16.xpose.msra.mxu0 0
      %767 = vmatprep.subr.bf16.mxu0 0
      %768 = vmatpush1.bf16.xpose.msra.mxu0 0
      %769 = vmatprep.subr.bf16.mxu0 0
      %770 = vmatpush1.bf16.xpose.msra.mxu0 0
      %771 = vmatprep.subr.bf16.mxu0 0
      %772 = vmatpush1.bf16.xpose.msra.mxu0 0
      %773 = vmatprep.subr.bf16.mxu0 0
      %774 = vmatpush1.bf16.xpose.msra.mxu0 %v759
      %775 = vmatprep.subr.bf16.mxu0 0
      %776 = vmatpush1.bf16.xpose.msra.mxu0 %v756
      %777 = vmatprep.subr.bf16.mxu0 0
      %778 = vmatpush2.bf16.xpose.msra.mxu0 0
      %779 = vmatprep.subr.bf16.mxu0 0
      %780 = vmatpush2.bf16.xpose.msra.mxu0 0
      %781 = vmatprep.subr.bf16.mxu0 0
      %782 = vmatpush2.bf16.xpose.msra.mxu0 0
      %783 = vmatprep.subr.bf16.mxu0 0
      %784 = vmatpush2.bf16.xpose.msra.mxu0 0
      %785 = vmatprep.subr.bf16.mxu0 0
      %786 = vmatpush2.bf16.xpose.msra.mxu0 0
      %787 = vmatprep.subr.bf16.mxu0 0
      %788 = vmatpush2.bf16.xpose.msra.mxu0 0
      %789 = vmatprep.subr.bf16.mxu0 0
      %790 = vmatpush2.bf16.xpose.msra.mxu0 0
      %791 = vmatprep.subr.bf16.mxu0 0
      %792 = vmatpush2.bf16.xpose.msra.mxu0 0
      %793 = vmatprep.mubr.bf16.mxu0 0
      %794 = vmatmul.mubr.bf16.gmra.mxu0 %v750
      %v795 = vpop.f32.mrf.mxu0
      %v796 = vadd.f32 0.0, %v795
      %v797 = vpop.f32.mrf.mxu0
      %v798 = vpop.f32.mrf.mxu0
      %v799 = vadd.f32 0.0, %v798
      %v800 = vpop.f32.mrf.mxu0
      %801 = vmatprep.mubr.bf16.mxu0 0
      %802 = vmatmul.mubr.bf16.gmra.mxu0 %v753
      %v803 = vpop.f32.mrf.mxu0
      %v804 = vadd.f32 0.0, %v803
      %v805 = vpop.f32.mrf.mxu0
      %v806 = vpop.f32.mrf.mxu0
      %v807 = vpop.f32.mrf.mxu0
      %808 = vdwg.mxu0
      %v809 = vmul.f32 %v796, 0.35355338
      %v810 = vmul.f32 %v799, 0.35355338
      %v811 = vmul.f32 %v804, 0.35355338
      %v812 = vsel %vm224, %v809, -1e+30
      %v813 = vsel %vm224, %v810, -1e+30
      %v814 = vsel %vm224, %v811, -1e+30
      %v815 = vsel %vm300, %v812, -inf
      %816 = vmax.xlane.f32.xlu0 %v815
      %v817 = vpop.xlane.xlu0 %816
      %v818 = vsel %vm300, %v813, -inf
      %819 = vmax.xlane.f32.xlu0 %v818
      %v820 = vpop.xlane.xlu0 %819
      %v821 = vsel %vm300, %v814, -inf
      %822 = vmax.xlane.f32.xlu0 %v821
      %v823 = vpop.xlane.xlu0 %822
      %v824 = vsub.f32 %v812, %v817
      %v825 = vsub.f32 %v813, %v820
      %v826 = vsub.f32 %v814, %v823
      %v827 = vmul.f32 %v824, 1.442695
      %v828 = vpow.pop %v827
      %v829 = vmul.f32 %v825, 1.442695
      %v830 = vpow.pop %v829
      %v831 = vmul.f32 %v826, 1.442695
      %v832 = vpow.pop %v831
      %v833 = vsel %vm300, %v828, 0.0
      %834 = vadd.xlane.f32.xlu0 %v833
      %v835 = vpop.xlane.xlu0 %834
      %v836 = vsel %vm300, %v830, 0.0
      %837 = vadd.xlane.f32.xlu0 %v836
      %v838 = vpop.xlane.xlu0 %837
      %v839 = vsel %vm300, %v832, 0.0
      %840 = vadd.xlane.f32.xlu0 %v839
      %v841 = vpop.xlane.xlu0 %840
      %v842 = vrcp.pop %v835
      %v843 = vrcp.pop %v838
      %v844 = vrcp.pop %v841
      %v845 = vmul.f32 %v828, %v842
      %v846 = vmul.f32 %v830, %v843
      %v847 = vmul.f32 %v832, %v844
      %v848 = vpack.c.bf16 %v846, %v845
      %v849 = vpack.c.bf16 %v847, %v847
      %850 = vrot.lane.b32.xlu0 %v225, 40
      %v851 = vpop.permute.xlu0 %850
      %852 = vrot.lane.b32.xlu0 %v226, 40
      %v853 = vpop.permute.xlu0 %852
      %v856 = vsel %vm300, %v848, 0
      %v859 = vsel %vm300, %v849, 0
      %v862 = vsel %vm347, %v853, 0
      %864 = vmatprep.subr.bf16.mxu0 0
      %865 = vmatpush1.bf16.msra.mxu0 0
      %866 = vmatprep.subr.bf16.mxu0 0
      %867 = vmatpush1.bf16.msra.mxu0 0
      %868 = vmatprep.subr.bf16.mxu0 0
      %869 = vmatpush1.bf16.msra.mxu0 0
      %870 = vmatprep.subr.bf16.mxu0 0
      %871 = vmatpush1.bf16.msra.mxu0 0
      %872 = vmatprep.subr.bf16.mxu0 0
      %873 = vmatpush1.bf16.msra.mxu0 0
      %874 = vmatprep.subr.bf16.mxu0 0
      %875 = vmatpush1.bf16.msra.mxu0 0
      %876 = vmatprep.subr.bf16.mxu0 0
      %877 = vmatpush1.bf16.msra.mxu0 %v862
      %878 = vmatprep.subr.bf16.mxu0 0
      %879 = vmatpush1.bf16.msra.mxu0 %v851
      %880 = vmatprep.subr.bf16.mxu0 0
      %881 = vmatpush2.bf16.msra.mxu0 0
      %882 = vmatprep.subr.bf16.mxu0 0
      %883 = vmatpush2.bf16.msra.mxu0 0
      %884 = vmatprep.subr.bf16.mxu0 0
      %885 = vmatpush2.bf16.msra.mxu0 0
      %886 = vmatprep.subr.bf16.mxu0 0
      %887 = vmatpush2.bf16.msra.mxu0 0
      %888 = vmatprep.subr.bf16.mxu0 0
      %889 = vmatpush2.bf16.msra.mxu0 0
      %890 = vmatprep.subr.bf16.mxu0 0
      %891 = vmatpush2.bf16.msra.mxu0 0
      %892 = vmatprep.subr.bf16.mxu0 0
      %893 = vmatpush2.bf16.msra.mxu0 0
      %894 = vmatprep.subr.bf16.mxu0 0
      %895 = vmatpush2.bf16.msra.mxu0 0
      %896 = vmatprep.mubr.bf16.mxu0 0
      %897 = vmatmul.mubr.bf16.gmra.mxu0 %v856
      %v898 = vpop.f32.mrf.mxu0
      %v899 = vadd.f32 0.0, %v898
      %v900 = vpop.f32.mrf.mxu0
      %v901 = vpop.f32.mrf.mxu0
      %v902 = vadd.f32 0.0, %v901
      %v903 = vpop.f32.mrf.mxu0
      %904 = vmatprep.mubr.bf16.mxu0 0
      %905 = vmatmul.mubr.bf16.gmra.mxu0 %v859
      %v906 = vpop.f32.mrf.mxu0
      %v907 = vadd.f32 0.0, %v906
      %v908 = vpop.f32.mrf.mxu0
      %v909 = vpop.f32.mrf.mxu0
      %v910 = vpop.f32.mrf.mxu0
      %911 = vdwg.mxu0
      %915 = vrot.lane.b32.xlu0 %v557, 8
      %v916 = vpop.permute.xlu0 %915
      %917 = vrot.lane.b32.xlu0 %v560, 8
      %v918 = vpop.permute.xlu0 %917
      %919 = vrot.lane.b32.xlu0 %v565, 8
      %v920 = vpop.permute.xlu0 %919
      %927 = vrot.lane.b32.xlu0 %v728, 16
      %v928 = vpop.permute.xlu0 %927
      %929 = vrot.lane.b32.xlu0 %v731, 16
      %v930 = vpop.permute.xlu0 %929
      %931 = vrot.lane.b32.xlu0 %v736, 16
      %v932 = vpop.permute.xlu0 %931
      %939 = vrot.lane.b32.xlu0 %v899, 24
      %v940 = vpop.permute.xlu0 %939
      %941 = vrot.lane.b32.xlu0 %v902, 24
      %v942 = vpop.permute.xlu0 %941
      %943 = vrot.lane.b32.xlu0 %v907, 24
      %v944 = vpop.permute.xlu0 %943
      %v948 = vsel %vm233, %v386, %v916
      %v949 = vsel %vm233, %v389, %v918
      %v950 = vsel %vm233, %v394, %v920
      %vm951 = vcmask 130048
      %v952 = vsel %vm951, %v948, %v928
      %v953 = vsel %vm951, %v949, %v930
      %v954 = vsel %vm951, %v950, %v932
      %v955 = vsel %vm300, %v952, %v940
      %v956 = vsel %vm300, %v953, %v942
      %v957 = vsel %vm300, %v954, %v944
      %v958 = vpack.c.bf16 %v956, %v955
      %v959 = vpack.c.bf16 %v957, %v957
      %v960 = vld [vmem:[%s1] sm:$0xf]
      %v961 = vld [vmem:[%s1 + $0x4] sm:$0xf]
      %v962 = vld [vmem:[%s1 + $0x8] sm:$0xf]
      %v963 = vld [vmem:[%s1 + $0xc] sm:$0xf]
      %v964 = vld [vmem:[%s2] sm:$0x1]
      %v966 = vlaneseq
      %v967 = vshrl.u32 %v966, 7
      %v968 = vsub.s32 0, %v967
      %v969 = vrot.slane %v964, %v968
      %v975 = vunpack.c.l.b16 %v960
      %v976 = vunpack.c.l.b16 %v961
      %v977 = vunpack.c.l.b16 %v962
      %v978 = vunpack.c.l.b16 %v963
      %v979 = vpack.c.b16 %v976, %v975
      %v980 = vpack.c.b16 %v978, %v977
      %vm983 = vcmask 261120
      %v985 = vsel %vm983, %v958, 0
      %v988 = vsel %vm983, %v959, 0
      %990 = vmatprep.subr.bf16.mxu0 0
      %991 = vmatpush1.bf16.msra.mxu0 0
      %992 = vmatprep.subr.bf16.mxu0 0
      %993 = vmatpush1.bf16.msra.mxu0 0
      %994 = vmatprep.subr.bf16.mxu0 0
      %995 = vmatpush1.bf16.msra.mxu0 0
      %996 = vmatprep.subr.bf16.mxu0 0
      %997 = vmatpush1.bf16.msra.mxu0 0
      %998 = vmatprep.subr.bf16.mxu0 0
      %999 = vmatpush1.bf16.msra.mxu0 0
      %1000 = vmatprep.subr.bf16.mxu0 0
      %1001 = vmatpush1.bf16.msra.mxu0 0
      %1002 = vmatprep.subr.bf16.mxu0 0
      %1003 = vmatpush1.bf16.msra.mxu0 %v980
      %1004 = vmatprep.subr.bf16.mxu0 0
      %1005 = vmatpush1.bf16.msra.mxu0 %v979
      %1006 = vmatprep.subr.bf16.mxu0 0
      %1007 = vmatpush2.bf16.msra.mxu0 0
      %1008 = vmatprep.subr.bf16.mxu0 0
      %1009 = vmatpush2.bf16.msra.mxu0 0
      %1010 = vmatprep.subr.bf16.mxu0 0
      %1011 = vmatpush2.bf16.msra.mxu0 0
      %1012 = vmatprep.subr.bf16.mxu0 0
      %1013 = vmatpush2.bf16.msra.mxu0 0
      %1014 = vmatprep.subr.bf16.mxu0 0
      %1015 = vmatpush2.bf16.msra.mxu0 0
      %1016 = vmatprep.subr.bf16.mxu0 0
      %1017 = vmatpush2.bf16.msra.mxu0 0
      %1018 = vmatprep.subr.bf16.mxu0 0
      %1019 = vmatpush2.bf16.msra.mxu0 0
      %1020 = vmatprep.subr.bf16.mxu0 0
      %1021 = vmatpush2.bf16.msra.mxu0 0
      %1022 = vmatprep.mubr.bf16.mxu0 0
      %1023 = vmatmul.mubr.bf16.gmra.mxu0 %v985
      %v1024 = vpop.f32.mrf.mxu0
      %v1025 = vadd.f32 %v969, %v1024
      %v1026 = vpop.f32.mrf.mxu0
      %v1027 = vpop.f32.mrf.mxu0
      %v1028 = vadd.f32 %v969, %v1027
      %v1029 = vpop.f32.mrf.mxu0
      %1030 = vmatprep.mubr.bf16.mxu0 0
      %1031 = vmatmul.mubr.bf16.gmra.mxu0 %v988
      %v1032 = vpop.f32.mrf.mxu0
      %v1033 = vadd.f32 %v969, %v1032
      %v1034 = vpop.f32.mrf.mxu0
      %v1035 = vpop.f32.mrf.mxu0
      %v1036 = vpop.f32.mrf.mxu0
      %1037 = vdwg.mxu0
      %v1038 = vld [vmem:[%s212] sm:$0xff]
      %v1039 = vld [vmem:[%s212 + $0x8] sm:$0xff]
      %v1040 = vld [vmem:[%s212 + $0x10] sm:$0xff]
      %v1041 = vadd.f32 %v1025, %v1038
      %v1042 = vadd.f32 %v1028, %v1039
      %v1043 = vadd.f32 %v1033, %v1040
      %1044 = vst.msk [vmem:[%s217] sm:$0xff] %vm983, %v1041
      %1045 = vst.msk [vmem:[%s217 + $0x8] sm:$0xff] %vm983, %v1042
      %1046 = vst.msk [vmem:[%s217 + $0x10] sm:$0xff] %vm983, %v1043
      %p1047 = scmp.lt.s32.totalorder %s15, 1
      %s1048 = scalar_select %p1047, %s15, 1
      %s1049 = smul.addr %s1048, 3
      %s1050 = smul.addr %s1049, 8
      %s1051 = scalar_lea.vmem %s4, %s1050
      // Predicated region
      $region37: #{vit_forward.13} parent=35 // pred_check
        %p1052 = pneg %p127
      $region38: #{vit_forward.13} parent=35 // pred_check_branch
        %1054 = sbr.rel (%p1052) target = $region40
      $region39: #{vit_forward.13} parent=35 // pred_region
        _
      $region40: #{vit_forward.13} parent=35 // pred_fallthru
        _
    $region36: #{vit_forward.13} parent=5 // pred_fallthru
      _
    %p1055 = scmp.le.s32.totalorder 2, %s10
    // Predicated region
    $region41: #{vit_forward.13} parent=5 // pred_check
      %p1056 = pneg %p1055
    $region42: #{vit_forward.13} parent=5 // pred_check_branch
      %1058 = sbr.rel (%p1056) target = $region44
    $region43: #{vit_forward.13} parent=5 // pred_region
      %s1059 = ssub.s32 %s10, 2
      // Predicated region
      $region45: #{vit_forward.13} parent=43 // pred_check
        %p1060 = pneg %p133
      $region46: #{vit_forward.13} parent=43 // pred_check_branch
        %1062 = sbr.rel (%p1060) target = $region48
      $region47: #{vit_forward.13} parent=43 // pred_region
        %p1063 = scmp.lt.s32.totalorder %s16, 1
        %s1064 = scalar_select %p1063, %s16, 1
        %s1065 = smul.addr %s1064, 3
        %s1066 = smul.addr %s1065, 8
        %s1067 = scalar_lea.vmem %s4, %s1066
      $region48: #{vit_forward.13} parent=43 // pred_fallthru
        _
    $region44: #{vit_forward.13} parent=5 // pred_fallthru
      _
  $region6: #{vit_forward.13} parent=0 // loop_footer
    %s14 = sadd.s32 1, %s10
  $region7: #{vit_forward.13} parent=0 // loop_footer_branch
    %9 = sbr.rel target = $region3
  $region8: #{vit_forward.13} parent=0 // loop_exit
    _

// kernel: vit_forward.15
$region0: #{vit_forward.15}
  #allocation0 [shape = 'u32[]', space=smem, size = 0x4, offset = 0x4, fixed_abs, tag = 'smem constant byte address 0x4 - core index']
  #allocation1 [shape = 'u32[144,128]{1,0:T(1,128)}', space=vmem, size = 0x12000, scoped, tag = 'internal scratch']
  #allocation2 [shape = 'f32[48,32]{1,0:T(8,128)}', space=vmem, size = 0x6000, scoped, tag = 'scratch operand']
  %s0 = inlined_call_operand.vmem [shape: f32[48,64], index: 0, kind: input, shape index: {}]
  %s1 = inlined_call_operand.vmem [shape: bf16[64,32], index: 1, kind: input, shape index: {}]
  %s2 = inlined_call_operand.vmem [shape: f32[1,32], index: 2, kind: input, shape index: {}]
  %s3 = inlined_call_operand.vmem [shape: f32[48,32], index: 3, kind: input, shape index: {}]
  %s4 = inlined_call_operand.vmem [shape: f32[48,32], index: 4, kind: output, shape index: {}]
  %s5 = sld [smem:[#allocation0]]
  $region34: #{vit_forward.15} parent=0
    _
  %s7 = ssub.s32 1, %s5
  %s8 = scalar_select 0, %s7, %s5
  // Predicated region
  $region2: #{vit_forward.15} parent=0 // pred_check
    _
  $region3: #{vit_forward.15} parent=0 // pred_check_branch
    %10 = sbr.rel (0) target = $region5
  $region4: #{vit_forward.15} parent=0 // pred_region
    _
  $region5: #{vit_forward.15} parent=0 // pred_fallthru
    _
  // Predicated region
  $region6: #{vit_forward.15} parent=0 // pred_check
    _
  $region7: #{vit_forward.15} parent=0 // pred_check_branch
    %12 = sbr.rel (0) target = $region9
  $region8: #{vit_forward.15} parent=0 // pred_region
    _
  $region9: #{vit_forward.15} parent=0 // pred_fallthru
    _
  // Predicated region
  $region10: #{vit_forward.15} parent=0 // pred_check
    _
  $region11: #{vit_forward.15} parent=0 // pred_check_branch
    %14 = sbr.rel (0) target = $region13
  $region12: #{vit_forward.15} parent=0 // pred_region
    _
  $region13: #{vit_forward.15} parent=0 // pred_fallthru
    _
  // Predicated region
  $region14: #{vit_forward.15} parent=0 // pred_check
    _
  $region15: #{vit_forward.15} parent=0 // pred_check_branch
    %16 = sbr.rel (0) target = $region17
  $region16: #{vit_forward.15} parent=0 // pred_region
    _
  $region17: #{vit_forward.15} parent=0 // pred_fallthru
    _
  %p18 = scmp.eq.s32.totalorder 0, 0
  // Predicated region
  $region18: #{vit_forward.15} parent=0 // pred_check
    %p19 = pneg %p18
  $region19: #{vit_forward.15} parent=0 // pred_check_branch
    %21 = sbr.rel (%p19) target = $region21
  $region20: #{vit_forward.15} parent=0 // pred_region
    %vm22 = vcmask 261120
    %23 = vst.msk [vmem:[#allocation2] sm:$0xff] %vm22, 0.0
    %24 = vst.msk [vmem:[#allocation2 + $0x8] sm:$0xff] %vm22, 0.0
    %25 = vst.msk [vmem:[#allocation2 + $0x10] sm:$0xff] %vm22, 0.0
    %26 = vst.msk [vmem:[#allocation2 + $0x18] sm:$0xff] %vm22, 0.0
    %27 = vst.msk [vmem:[#allocation2 + $0x20] sm:$0xff] %vm22, 0.0
    %28 = vst.msk [vmem:[#allocation2 + $0x28] sm:$0xff] %vm22, 0.0
  $region21: #{vit_forward.15} parent=0 // pred_fallthru
    _
  %v29 = vld [vmem:[#allocation2] sm:$0xff]
  %v30 = vld [vmem:[#allocation2 + $0x8] sm:$0xff]
  %v31 = vld [vmem:[#allocation2 + $0x10] sm:$0xff]
  %v32 = vld [vmem:[#allocation2 + $0x18] sm:$0xff]
  %v33 = vld [vmem:[#allocation2 + $0x20] sm:$0xff]
  %v34 = vld [vmem:[#allocation2 + $0x28] sm:$0xff]
  %v35 = vld [vmem:[%s0] sm:$0xff]
  %v36 = vld [vmem:[%s0 + $0x8] sm:$0xff]
  %v37 = vld [vmem:[%s0 + $0x10] sm:$0xff]
  %v38 = vld [vmem:[%s0 + $0x18] sm:$0xff]
  %v39 = vld [vmem:[%s0 + $0x20] sm:$0xff]
  %v40 = vld [vmem:[%s0 + $0x28] sm:$0xff]
  %v41 = vpack.c.bf16 %v36, %v35
  %v42 = vpack.c.bf16 %v38, %v37
  %v43 = vpack.c.bf16 %v40, %v39
  %v44 = vld [vmem:[%s1] sm:$0xf]
  %v45 = vld [vmem:[%s1 + $0x4] sm:$0xf]
  %v46 = vld [vmem:[%s1 + $0x8] sm:$0xf]
  %v47 = vld [vmem:[%s1 + $0xc] sm:$0xf]
  %v48 = vld [vmem:[%s1 + $0x10] sm:$0xf]
  %v49 = vld [vmem:[%s1 + $0x14] sm:$0xf]
  %v50 = vld [vmem:[%s1 + $0x18] sm:$0xf]
  %v51 = vld [vmem:[%s1 + $0x1c] sm:$0xf]
  %v60 = vunpack.c.l.b16 %v44
  %v61 = vunpack.c.l.b16 %v45
  %v62 = vunpack.c.l.b16 %v46
  %v63 = vunpack.c.l.b16 %v47
  %v64 = vunpack.c.l.b16 %v48
  %v65 = vunpack.c.l.b16 %v49
  %v66 = vunpack.c.l.b16 %v50
  %v67 = vunpack.c.l.b16 %v51
  %v68 = vpack.c.b16 %v61, %v60
  %v69 = vpack.c.b16 %v63, %v62
  %v70 = vpack.c.b16 %v65, %v64
  %v71 = vpack.c.b16 %v67, %v66
  %vm76 = vcmask 523264
  %v78 = vsel %vm76, %v41, 0
  %v81 = vsel %vm76, %v42, 0
  %v84 = vsel %vm76, %v43, 0
  %86 = vmatprep.subr.bf16.mxu0 0
  %87 = vmatpush1.bf16.msra.mxu0 0
  %88 = vmatprep.subr.bf16.mxu0 0
  %89 = vmatpush1.bf16.msra.mxu0 0
  %90 = vmatprep.subr.bf16.mxu0 0
  %91 = vmatpush1.bf16.msra.mxu0 0
  %92 = vmatprep.subr.bf16.mxu0 0
  %93 = vmatpush1.bf16.msra.mxu0 0
  %94 = vmatprep.subr.bf16.mxu0 0
  %95 = vmatpush1.bf16.msra.mxu0 %v71
  %96 = vmatprep.subr.bf16.mxu0 0
  %97 = vmatpush1.bf16.msra.mxu0 %v70
  %98 = vmatprep.subr.bf16.mxu0 0
  %99 = vmatpush1.bf16.msra.mxu0 %v69
  %100 = vmatprep.subr.bf16.mxu0 0
  %101 = vmatpush1.bf16.msra.mxu0 %v68
  %102 = vmatprep.subr.bf16.mxu0 0
  %103 = vmatpush2.bf16.msra.mxu0 0
  %104 = vmatprep.subr.bf16.mxu0 0
  %105 = vmatpush2.bf16.msra.mxu0 0
  %106 = vmatprep.subr.bf16.mxu0 0
  %107 = vmatpush2.bf16.msra.mxu0 0
  %108 = vmatprep.subr.bf16.mxu0 0
  %109 = vmatpush2.bf16.msra.mxu0 0
  %110 = vmatprep.subr.bf16.mxu0 0
  %111 = vmatpush2.bf16.msra.mxu0 0
  %112 = vmatprep.subr.bf16.mxu0 0
  %113 = vmatpush2.bf16.msra.mxu0 0
  %114 = vmatprep.subr.bf16.mxu0 0
  %115 = vmatpush2.bf16.msra.mxu0 0
  %116 = vmatprep.subr.bf16.mxu0 0
  %117 = vmatpush2.bf16.msra.mxu0 0
  %118 = vmatprep.mubr.bf16.mxu0 0
  %119 = vmatmul.mubr.bf16.gmra.mxu0 %v78
  %v120 = vpop.f32.mrf.mxu0
  %v121 = vadd.f32 0.0, %v120
  %v122 = vpop.f32.mrf.mxu0
  %v123 = vpop.f32.mrf.mxu0
  %v124 = vadd.f32 0.0, %v123
  %v125 = vpop.f32.mrf.mxu0
  %126 = vmatprep.mubr.bf16.mxu0 0
  %127 = vmatmul.mubr.bf16.gmra.mxu0 %v81
  %v128 = vpop.f32.mrf.mxu0
  %v129 = vadd.f32 0.0, %v128
  %v130 = vpop.f32.mrf.mxu0
  %v131 = vpop.f32.mrf.mxu0
  %v132 = vadd.f32 0.0, %v131
  %v133 = vpop.f32.mrf.mxu0
  %134 = vmatprep.mubr.bf16.mxu0 0
  %135 = vmatmul.mubr.bf16.gmra.mxu0 %v84
  %v136 = vpop.f32.mrf.mxu0
  %v137 = vadd.f32 0.0, %v136
  %v138 = vpop.f32.mrf.mxu0
  %v139 = vpop.f32.mrf.mxu0
  %v140 = vadd.f32 0.0, %v139
  %v141 = vpop.f32.mrf.mxu0
  %142 = vdwg.mxu0
  %v143 = vadd.f32 %v29, %v121
  %v144 = vadd.f32 %v30, %v124
  %v145 = vadd.f32 %v31, %v129
  %v146 = vadd.f32 %v32, %v132
  %v147 = vadd.f32 %v33, %v137
  %v148 = vadd.f32 %v34, %v140
  %vm149 = vcmask 261120
  %150 = vst.msk [vmem:[#allocation2] sm:$0xff] %vm149, %v143
  %151 = vst.msk [vmem:[#allocation2 + $0x8] sm:$0xff] %vm149, %v144
  %152 = vst.msk [vmem:[#allocation2 + $0x10] sm:$0xff] %vm149, %v145
  %153 = vst.msk [vmem:[#allocation2 + $0x18] sm:$0xff] %vm149, %v146
  %154 = vst.msk [vmem:[#allocation2 + $0x20] sm:$0xff] %vm149, %v147
  %155 = vst.msk [vmem:[#allocation2 + $0x28] sm:$0xff] %vm149, %v148
  // Predicated region
  $region22: #{vit_forward.15} parent=0 // pred_check
    %p156 = pneg %p18
  $region23: #{vit_forward.15} parent=0 // pred_check_branch
    %158 = sbr.rel (%p156) target = $region25
  $region24: #{vit_forward.15} parent=0 // pred_region
    %v159 = vld [vmem:[#allocation2] sm:$0xff]
    %v160 = vld [vmem:[#allocation2 + $0x8] sm:$0xff]
    %v161 = vld [vmem:[#allocation2 + $0x10] sm:$0xff]
    %v162 = vld [vmem:[#allocation2 + $0x18] sm:$0xff]
    %v163 = vld [vmem:[#allocation2 + $0x20] sm:$0xff]
    %v164 = vld [vmem:[#allocation2 + $0x28] sm:$0xff]
    %v165 = vld [vmem:[%s2] sm:$0x1]
    %v167 = vlaneseq
    %v168 = vshrl.u32 %v167, 7
    %v169 = vsub.s32 0, %v168
    %v170 = vrot.slane %v165, %v169
    %v172 = vadd.f32 %v159, %v170
    %v173 = vadd.f32 %v160, %v170
    %v174 = vadd.f32 %v161, %v170
    %v175 = vadd.f32 %v162, %v170
    %v176 = vadd.f32 %v163, %v170
    %v177 = vadd.f32 %v164, %v170
    %v178 = vld [vmem:[%s3] sm:$0xff]
    %v179 = vld [vmem:[%s3 + $0x8] sm:$0xff]
    %v180 = vld [vmem:[%s3 + $0x10] sm:$0xff]
    %v181 = vld [vmem:[%s3 + $0x18] sm:$0xff]
    %v182 = vld [vmem:[%s3 + $0x20] sm:$0xff]
    %v183 = vld [vmem:[%s3 + $0x28] sm:$0xff]
    %v184 = vadd.f32 %v172, %v178
    %v185 = vadd.f32 %v173, %v179
    %v186 = vadd.f32 %v174, %v180
    %v187 = vadd.f32 %v175, %v181
    %v188 = vadd.f32 %v176, %v182
    %v189 = vadd.f32 %v177, %v183
    %190 = vst.msk [vmem:[%s4] sm:$0xff] %vm149, %v184
    %191 = vst.msk [vmem:[%s4 + $0x8] sm:$0xff] %vm149, %v185
    %192 = vst.msk [vmem:[%s4 + $0x10] sm:$0xff] %vm149, %v186
    %193 = vst.msk [vmem:[%s4 + $0x18] sm:$0xff] %vm149, %v187
    %194 = vst.msk [vmem:[%s4 + $0x20] sm:$0xff] %vm149, %v188
    %195 = vst.msk [vmem:[%s4 + $0x28] sm:$0xff] %vm149, %v189
  $region25: #{vit_forward.15} parent=0 // pred_fallthru
    _
  // Predicated region
  $region26: #{vit_forward.15} parent=0 // pred_check
    _
  $region27: #{vit_forward.15} parent=0 // pred_check_branch
    %197 = sbr.rel (0) target = $region29
  $region28: #{vit_forward.15} parent=0 // pred_region
    _
  $region29: #{vit_forward.15} parent=0 // pred_fallthru
    _
  // Predicated region
  $region30: #{vit_forward.15} parent=0 // pred_check
    _
  $region31: #{vit_forward.15} parent=0 // pred_check_branch
    %199 = sbr.rel (0) target = $region33
  $region32: #{vit_forward.15} parent=0 // pred_region
    _
  $region33: #{vit_forward.15} parent=0 // pred_fallthru
    _

// kernel: vit_forward.20
$region0: #{vit_forward.20}
  #allocation0 [shape = 'u32[]', space=smem, size = 0x4, offset = 0x4, fixed_abs, tag = 'smem constant byte address 0x4 - core index']
  #allocation1 [shape = 'u32[144,128]{1,0:T(1,128)}', space=vmem, size = 0x12000, scoped, tag = 'internal scratch']
  %s0 = inlined_call_operand.vmem [shape: f32[2,32], index: 0, kind: input, shape index: {}]
  %s1 = inlined_call_operand.vmem [shape: f32[1,32], index: 1, kind: input, shape index: {}]
  %s2 = inlined_call_operand.vmem [shape: f32[1,32], index: 2, kind: input, shape index: {}]
  %s3 = inlined_call_operand.vmem [shape: bf16[32,64], index: 3, kind: input, shape index: {}]
  %s4 = inlined_call_operand.vmem [shape: f32[1,64], index: 4, kind: input, shape index: {}]
  %s5 = inlined_call_operand.vmem [shape: f32[2,64], index: 5, kind: output, shape index: {}]
  %s6 = sld [smem:[#allocation0]]
  $region30: #{vit_forward.20} parent=0
    _
  %s8 = ssub.s32 1, %s6
  %s9 = scalar_select 0, %s8, %s6
  // Predicated region
  $region2: #{vit_forward.20} parent=0 // pred_check
    _
  $region3: #{vit_forward.20} parent=0 // pred_check_branch
    %11 = sbr.rel (0) target = $region5
  $region4: #{vit_forward.20} parent=0 // pred_region
    _
  $region5: #{vit_forward.20} parent=0 // pred_fallthru
    _
  // Predicated region
  $region6: #{vit_forward.20} parent=0 // pred_check
    _
  $region7: #{vit_forward.20} parent=0 // pred_check_branch
    %13 = sbr.rel (0) target = $region9
  $region8: #{vit_forward.20} parent=0 // pred_region
    _
  $region9: #{vit_forward.20} parent=0 // pred_fallthru
    _
  // Predicated region
  $region10: #{vit_forward.20} parent=0 // pred_check
    _
  $region11: #{vit_forward.20} parent=0 // pred_check_branch
    %15 = sbr.rel (0) target = $region13
  $region12: #{vit_forward.20} parent=0 // pred_region
    _
  $region13: #{vit_forward.20} parent=0 // pred_fallthru
    _
  // Predicated region
  $region14: #{vit_forward.20} parent=0 // pred_check
    _
  $region15: #{vit_forward.20} parent=0 // pred_check_branch
    %17 = sbr.rel (0) target = $region17
  $region16: #{vit_forward.20} parent=0 // pred_region
    _
  $region17: #{vit_forward.20} parent=0 // pred_fallthru
    _
  // Predicated region
  $region18: #{vit_forward.20} parent=0 // pred_check
    _
  $region19: #{vit_forward.20} parent=0 // pred_check_branch
    %19 = sbr.rel (0) target = $region21
  $region20: #{vit_forward.20} parent=0 // pred_region
    _
  $region21: #{vit_forward.20} parent=0 // pred_fallthru
    _
  %v21 = vld [vmem:[%s0] sm:$0x3]
  %vm22 = vcmask 254976
  %v23 = vsel %vm22, %v21, 0.0
  %24 = vadd.xlane.f32.xlu0 %v23
  %v25 = vpop.xlane.xlu0 %24
  %v26 = vrcp.pop 32.0
  %v27 = vmul.f32 %v25, %v26
  %v28 = vsub.f32 %v21, %v27
  %v29 = vmul.f32 %v28, %v28
  %v30 = vsel %vm22, %v29, 0.0
  %31 = vadd.xlane.f32.xlu0 %v30
  %v32 = vpop.xlane.xlu0 %31
  %v33 = vmul.f32 %v32, %v26
  %v34 = vadd.f32 %v33, 1e-05
  %v35 = vrsqrt.pop %v34
  %v36 = vmul.f32 %v28, %v35
  %v37 = vld [vmem:[%s1] sm:$0x1]
  %v39 = vlaneseq
  %v40 = vshrl.u32 %v39, 7
  %v41 = vsub.s32 0, %v40
  %v42 = vrot.slane %v37, %v41
  %v44 = vmul.f32 %v36, %v42
  %v45 = vld [vmem:[%s2] sm:$0x1]
  %v47 = vlaneseq
  %v48 = vshrl.u32 %v47, 7
  %v49 = vsub.s32 0, %v48
  %v50 = vrot.slane %v45, %v49
  %v52 = vadd.f32 %v44, %v50
  %v53 = vpack.c.bf16 %v52, %v52
  %v54 = vld [vmem:[%s3] sm:$0xf]
  %v55 = vld [vmem:[%s3 + $0x4] sm:$0xf]
  %v56 = vld [vmem:[%s3 + $0x8] sm:$0xf]
  %v57 = vld [vmem:[%s3 + $0xc] sm:$0xf]
  %v58 = vld [vmem:[%s4] sm:$0x1]
  %v60 = vlaneseq
  %v61 = vshrl.u32 %v60, 7
  %v62 = vsub.s32 0, %v61
  %v63 = vrot.slane %v58, %v62
  %v69 = vunpack.c.l.b16 %v54
  %v70 = vunpack.c.l.b16 %v55
  %v71 = vunpack.c.l.b16 %v56
  %v72 = vunpack.c.l.b16 %v57
  %v73 = vpack.c.b16 %v70, %v69
  %v74 = vpack.c.b16 %v72, %v71
  %vm77 = vcmask 261120
  %v79 = vsel %vm77, %v53, 0
  %81 = vmatprep.subr.bf16.mxu0 0
  %82 = vmatpush1.bf16.msra.mxu0 0
  %83 = vmatprep.subr.bf16.mxu0 0
  %84 = vmatpush1.bf16.msra.mxu0 0
  %85 = vmatprep.subr.bf16.mxu0 0
  %86 = vmatpush1.bf16.msra.mxu0 0
  %87 = vmatprep.subr.bf16.mxu0 0
  %88 = vmatpush1.bf16.msra.mxu0 0
  %89 = vmatprep.subr.bf16.mxu0 0
  %90 = vmatpush1.bf16.msra.mxu0 0
  %91 = vmatprep.subr.bf16.mxu0 0
  %92 = vmatpush1.bf16.msra.mxu0 0
  %93 = vmatprep.subr.bf16.mxu0 0
  %94 = vmatpush1.bf16.msra.mxu0 %v74
  %95 = vmatprep.subr.bf16.mxu0 0
  %96 = vmatpush1.bf16.msra.mxu0 %v73
  %97 = vmatprep.subr.bf16.mxu0 0
  %98 = vmatpush2.bf16.msra.mxu0 0
  %99 = vmatprep.subr.bf16.mxu0 0
  %100 = vmatpush2.bf16.msra.mxu0 0
  %101 = vmatprep.subr.bf16.mxu0 0
  %102 = vmatpush2.bf16.msra.mxu0 0
  %103 = vmatprep.subr.bf16.mxu0 0
  %104 = vmatpush2.bf16.msra.mxu0 0
  %105 = vmatprep.subr.bf16.mxu0 0
  %106 = vmatpush2.bf16.msra.mxu0 0
  %107 = vmatprep.subr.bf16.mxu0 0
  %108 = vmatpush2.bf16.msra.mxu0 0
  %109 = vmatprep.subr.bf16.mxu0 0
  %110 = vmatpush2.bf16.msra.mxu0 0
  %111 = vmatprep.subr.bf16.mxu0 0
  %112 = vmatpush2.bf16.msra.mxu0 0
  %113 = vmatprep.mubr.bf16.mxu0 0
  %114 = vmatmul.mubr.bf16.gmra.mxu0 %v79
  %v115 = vpop.f32.mrf.mxu0
  %v116 = vadd.f32 %v63, %v115
  %v117 = vpop.f32.mrf.mxu0
  %v118 = vpop.f32.mrf.mxu0
  %v119 = vpop.f32.mrf.mxu0
  %120 = vdwg.mxu0
  %v121 = vmul.f32 %v116, 0.5
  %v122 = vmul.f32 %v116, 0.70710677
  %v123 = verf.f32.pop %v122
  %v124 = vadd.f32 %v123, 1.0
  %v125 = vmul.f32 %v121, %v124
  %vm126 = vcmask 517120
  %127 = vst.msk [vmem:[%s5] sm:$0x3] %vm126, %v125
  // Predicated region
  $region22: #{vit_forward.20} parent=0 // pred_check
    _
  $region23: #{vit_forward.20} parent=0 // pred_check_branch
    %129 = sbr.rel (0) target = $region25
  $region24: #{vit_forward.20} parent=0 // pred_region
    _
  $region25: #{vit_forward.20} parent=0 // pred_fallthru
    _
  // Predicated region
  $region26: #{vit_forward.20} parent=0 // pred_check
    _
  $region27: #{vit_forward.20} parent=0 // pred_check_branch
    %131 = sbr.rel (0) target = $region29
  $region28: #{vit_forward.20} parent=0 // pred_region
    _
  $region29: #{vit_forward.20} parent=0 // pred_fallthru
    _

// kernel: vit_forward.21
$region0: #{vit_forward.21}
  #allocation0 [shape = 'u32[]', space=smem, size = 0x4, offset = 0x4, fixed_abs, tag = 'smem constant byte address 0x4 - core index']
  #allocation1 [shape = 'u32[144,128]{1,0:T(1,128)}', space=vmem, size = 0x12000, scoped, tag = 'internal scratch']
  #allocation2 [shape = 'f32[2,10]{1,0:T(2,128)}', space=vmem, size = 0x400, scoped, tag = 'scratch operand']
  %s0 = inlined_call_operand.vmem [shape: f32[2,64], index: 0, kind: input, shape index: {}]
  %s1 = inlined_call_operand.vmem [shape: bf16[64,10], index: 1, kind: input, shape index: {}]
  %s2 = inlined_call_operand.vmem [shape: f32[1,10], index: 2, kind: input, shape index: {}]
  %s3 = inlined_call_operand.hbm [shape: f32[2,10], index: 3, kind: output, shape index: {}]
  %s4 = sld [smem:[#allocation0]]
  $region30: #{vit_forward.21} parent=0
    _
  %s6 = ssub.s32 1, %s4
  %s7 = scalar_select 0, %s6, %s4
  $region1: #{vit_forward.21} parent=0
    #allocation3 [shape = 'u8[1024]{0}', space=vmem, size = 0x400, scoped, tag = 'output window, operand 0, single buffered']
    #allocation4 [shape = 's32[1]{0}', space=sflag, size = 0x4, scoped, tag = 'scoped memory for vit_forward.21']
    %8 = vsyncpa [#allocation4], 0
    // Predicated region
    $region2: #{vit_forward.21} parent=1 // pred_check
      _
    $region3: #{vit_forward.21} parent=1 // pred_check_branch
      %10 = sbr.rel (0) target = $region5
    $region4: #{vit_forward.21} parent=1 // pred_region
      _
    $region5: #{vit_forward.21} parent=1 // pred_fallthru
      _
    // Predicated region
    $region6: #{vit_forward.21} parent=1 // pred_check
      _
    $region7: #{vit_forward.21} parent=1 // pred_check_branch
      %12 = sbr.rel (0) target = $region9
    $region8: #{vit_forward.21} parent=1 // pred_region
      _
    $region9: #{vit_forward.21} parent=1 // pred_fallthru
      _
    // Predicated region
    $region10: #{vit_forward.21} parent=1 // pred_check
      _
    $region11: #{vit_forward.21} parent=1 // pred_check_branch
      %14 = sbr.rel (0) target = $region13
    $region12: #{vit_forward.21} parent=1 // pred_region
      _
    $region13: #{vit_forward.21} parent=1 // pred_fallthru
      _
    %p16 = scmp.eq.s32.totalorder 0, 0
    // Predicated region
    $region14: #{vit_forward.21} parent=1 // pred_check
      %p17 = pneg %p16
    $region15: #{vit_forward.21} parent=1 // pred_check_branch
      %19 = sbr.rel (%p17) target = $region17
    $region16: #{vit_forward.21} parent=1 // pred_region
      %vm20 = vcmask 74752
      %21 = vst.msk [vmem:[#allocation2] sm:$0x3] %vm20, 0.0
    $region17: #{vit_forward.21} parent=1 // pred_fallthru
      _
    %v22 = vld [vmem:[#allocation2] sm:$0x3]
    %v23 = vld [vmem:[%s0] sm:$0x3]
    %v24 = vpack.c.bf16 %v23, %v23
    %v25 = vld [vmem:[%s1] sm:$0xf]
    %v26 = vld [vmem:[%s1 + $0x4] sm:$0xf]
    %v27 = vld [vmem:[%s1 + $0x8] sm:$0xf]
    %v28 = vld [vmem:[%s1 + $0xc] sm:$0xf]
    %v29 = vld [vmem:[%s1 + $0x10] sm:$0xf]
    %v30 = vld [vmem:[%s1 + $0x14] sm:$0xf]
    %v31 = vld [vmem:[%s1 + $0x18] sm:$0xf]
    %v32 = vld [vmem:[%s1 + $0x1c] sm:$0xf]
    %v41 = vunpack.c.l.b16 %v25
    %v42 = vunpack.c.l.b16 %v26
    %v43 = vunpack.c.l.b16 %v27
    %v44 = vunpack.c.l.b16 %v28
    %v45 = vunpack.c.l.b16 %v29
    %v46 = vunpack.c.l.b16 %v30
    %v47 = vunpack.c.l.b16 %v31
    %v48 = vunpack.c.l.b16 %v32
    %v49 = vpack.c.b16 %v42, %v41
    %v50 = vpack.c.b16 %v44, %v43
    %v51 = vpack.c.b16 %v46, %v45
    %v52 = vpack.c.b16 %v48, %v47
    %vm57 = vcmask 523264
    %v59 = vsel %vm57, %v24, 0
    %61 = vmatprep.subr.bf16.mxu0 0
    %62 = vmatpush1.bf16.msra.mxu0 0
    %63 = vmatprep.subr.bf16.mxu0 0
    %64 = vmatpush1.bf16.msra.mxu0 0
    %65 = vmatprep.subr.bf16.mxu0 0
    %66 = vmatpush1.bf16.msra.mxu0 0
    %67 = vmatprep.subr.bf16.mxu0 0
    %68 = vmatpush1.bf16.msra.mxu0 0
    %69 = vmatprep.subr.bf16.mxu0 0
    %70 = vmatpush1.bf16.msra.mxu0 %v52
    %71 = vmatprep.subr.bf16.mxu0 0
    %72 = vmatpush1.bf16.msra.mxu0 %v51
    %73 = vmatprep.subr.bf16.mxu0 0
    %74 = vmatpush1.bf16.msra.mxu0 %v50
    %75 = vmatprep.subr.bf16.mxu0 0
    %76 = vmatpush1.bf16.msra.mxu0 %v49
    %77 = vmatprep.subr.bf16.mxu0 0
    %78 = vmatpush2.bf16.msra.mxu0 0
    %79 = vmatprep.subr.bf16.mxu0 0
    %80 = vmatpush2.bf16.msra.mxu0 0
    %81 = vmatprep.subr.bf16.mxu0 0
    %82 = vmatpush2.bf16.msra.mxu0 0
    %83 = vmatprep.subr.bf16.mxu0 0
    %84 = vmatpush2.bf16.msra.mxu0 0
    %85 = vmatprep.subr.bf16.mxu0 0
    %86 = vmatpush2.bf16.msra.mxu0 0
    %87 = vmatprep.subr.bf16.mxu0 0
    %88 = vmatpush2.bf16.msra.mxu0 0
    %89 = vmatprep.subr.bf16.mxu0 0
    %90 = vmatpush2.bf16.msra.mxu0 0
    %91 = vmatprep.subr.bf16.mxu0 0
    %92 = vmatpush2.bf16.msra.mxu0 0
    %93 = vmatprep.mubr.bf16.mxu0 0
    %94 = vmatmul.mubr.bf16.gmra.mxu0 %v59
    %v95 = vpop.f32.mrf.mxu0
    %v96 = vadd.f32 0.0, %v95
    %v97 = vpop.f32.mrf.mxu0
    %v98 = vpop.f32.mrf.mxu0
    %v99 = vpop.f32.mrf.mxu0
    %100 = vdwg.mxu0
    %v101 = vadd.f32 %v22, %v96
    %vm102 = vcmask 74752
    %103 = vst.msk [vmem:[#allocation2] sm:$0x3] %vm102, %v101
    // Predicated region
    $region18: #{vit_forward.21} parent=1 // pred_check
      %p104 = pneg %p16
    $region19: #{vit_forward.21} parent=1 // pred_check_branch
      %106 = sbr.rel (%p104) target = $region21
    $region20: #{vit_forward.21} parent=1 // pred_region
      %v107 = vld [vmem:[#allocation2] sm:$0x3]
      %v108 = vld [vmem:[%s2] sm:$0x1]
      %v110 = vlaneseq
      %v111 = vshrl.u32 %v110, 7
      %v112 = vsub.s32 0, %v111
      %v113 = vrot.slane %v108, %v112
      %v115 = vadd.f32 %v107, %v113
      %116 = vst.msk [vmem:[#allocation3] sm:$0x3] %vm102, %v115
    $region21: #{vit_forward.21} parent=1 // pred_fallthru
      _
    // Predicated region
    $region22: #{vit_forward.21} parent=1 // pred_check
      _
    $region23: #{vit_forward.21} parent=1 // pred_check_branch
      %118 = sbr.rel (0) target = $region25
    $region24: #{vit_forward.21} parent=1 // pred_region
      %s120 = ssub.s32 32, 32
      %121 = vsyncadd [#allocation4], %s120
      %s123 = sshll.u32 [#allocation3], 4
      %s124 = int_to_ptr.vmem [resolvable:$true] %s123
      %126 = dma.vmem_to_hbm [thread:$0]  %s124, 32, %s3, [#allocation4]
    $region25: #{vit_forward.21} parent=1 // pred_fallthru
      _
    // Predicated region
    $region26: #{vit_forward.21} parent=1 // pred_check
      _
    $region27: #{vit_forward.21} parent=1 // pred_check_branch
      %128 = sbr.rel (0) target = $region29
    $region28: #{vit_forward.21} parent=1 // pred_region
      %129 = dma.done [#allocation4], 32
    $region29: #{vit_forward.21} parent=1 // pred_fallthru
      _
    %130 = vsyncpa [#allocation4], 1

</llo_original>
